<compile_context>
chip_gen: v7x
topology: tpu7x:2x2x1
jax: 0.10.0
libtpu: 0.0.40
codegen_flags: <defaults>
</compile_context>

<pallas_src>
import functools
import math

import jax
import jax.numpy as jnp
from jax.experimental import pallas as pl
from jax.experimental.pallas import tpu as pltpu

NEG = -1e30     # stands in for -inf when masking the directional max scans
BN_EPS = 1e-5


# ---------------------------------------------------------------------------
# Fused kernel (one lane-packed group of images per grid step)
# ---------------------------------------------------------------------------
def _landmark_kernel(x_ref, wb_ref, bb_ref, wp_ref, bp_ref, w2_ref, b2_ref,
                     out_ref, *, H, W):
    N = x_ref.shape[2]                 # lane extent = images_per_step * H * W
    mapdim_p = wb_ref.shape[0] // 4    # sublane-aligned per-branch width

    # Per-image (row, col) for every lane position (each image occupies H*W
    # consecutive lanes, so modular arithmetic keeps the masks per-image).
    pos = jax.lax.broadcasted_iota(jnp.int32, (1, N), 1)
    if (W & (W - 1)) == 0:
        col = pos & (W - 1)
        q = pos >> (W.bit_length() - 1)
    else:
        col = pos % W
        q = pos // W
    row = (q & (H - 1)) if (H & (H - 1)) == 0 else (q % H)

    # Bounds masks: built once, pre-broadcast to the operand height, cached.
    mask_cache = {}

    def bounds_mask(oy, ox, nrows):
        base = (oy, ox)
        if base not in mask_cache:
            conds = []
            if ox > 0:
                conds.append(col < W - ox)
            elif ox < 0:
                conds.append(col >= -ox)
            if oy > 0:
                conds.append(row < H - oy)
            elif oy < 0:
                conds.append(row >= -oy)
            m = conds[0]
            for c in conds[1:]:
                m = jnp.logical_and(m, c)
            mask_cache[base] = m
        key = (oy, ox, nrows)
        if key not in mask_cache:
            mask_cache[key] = jnp.broadcast_to(mask_cache[base], (nrows, N))
        return mask_cache[key]

    def shift_gather(v, oy, ox, fill):
        """out[c, (i,j)] = v[c, (i+oy, j+ox)] if inside the same image, else fill."""
        if oy == 0 and ox == 0:
            return v
        s = oy * W + ox
        r = pltpu.roll(v, (-s) % N, axis=1)      # r[p] = v[(p + s) mod N]
        return jnp.where(bounds_mask(oy, ox, v.shape[0]), r, fill)

    def im2col9(v):
        """(C, N) -> (9*C, N); row t*C + c holds tap t = ky*3+kx of channel c."""
        return jnp.concatenate(
            [shift_gather(v, t // 3 - 1, t % 3 - 1, 0.0) for t in range(9)],
            axis=0)

    def dir_cummax(v, dy, dx):
        """Per-image cumulative max along direction (dy, dx), Hillis-Steele."""
        n = W if dy == 0 else (H if dx == 0 else min(H, W))
        off = 1
        while off < n:
            v = jnp.maximum(v, shift_gather(v, -dy * off, -dx * off, NEG))
            off *= 2
        return v

    x = x_ref[0].astype(jnp.float32)                        # (Cin, N)

    # ---- fused p1..p4 branch convs (single im2col matmul) + BN + ReLU ----
    branches = jnp.maximum(
        jnp.dot(wb_ref[...], im2col9(x), preferred_element_type=jnp.float32)
        + bb_ref[...], 0.0)                                 # (4*mapdim_p, N)

    # ---- 8 directional cumulative-max pools, merged in opposite pairs ----
    dirs = (((0, 1), (0, -1)),    # I1/I8  horizontal pair   (branch 1)
            ((1, 0), (-1, 0)),    # I2/I3  vertical pair     (branch 2)
            ((1, 1), (-1, -1)),   # I4/I5  main diagonal     (branch 3)
            ((1, -1), (-1, 1)))   # I6/I7  anti diagonal     (branch 4)
    pools = []
    for i, (da, db) in enumerate(dirs):
        blk = branches[i * mapdim_p:(i + 1) * mapdim_p, :]  # 8-aligned slice
        pools.append(jnp.maximum(dir_cummax(blk, *da), dir_cummax(blk, *db)))
    pool_feat = jnp.concatenate(pools, axis=0)              # (4*mapdim_p, N)

    # ---- relu1 = relu(BN(p_conv1(pool_feat)) + BN(conv1(x))), one matmul ----
    kmat = jnp.concatenate([im2col9(pool_feat), x], axis=0)  # (9*4*mapdim_p+Cin, N)
    relu1 = jnp.maximum(
        jnp.dot(wp_ref[...], kmat, preferred_element_type=jnp.float32)
        + bp_ref[...], 0.0)                                 # (dim, N)

    # ---- conv2 = 3x3 conv + folded BN + ReLU (one im2col matmul) ----
    out = jnp.maximum(
        jnp.dot(w2_ref[...], im2col9(relu1), preferred_element_type=jnp.float32)
        + b2_ref[...], 0.0)

    out_ref[0] = out.astype(out_ref.dtype)


# ---------------------------------------------------------------------------
# Wrapper
# ---------------------------------------------------------------------------
def landmark_p4x_forward(params, x_nchw, images_per_step=None):
    B, dim, H, W = x_nchw.shape
    HW = H * W
    if images_per_step is None:
        # Keep >= 2 grid steps when possible so v7x's two TensorCores both get
        # work; lane-packing still amortizes per-step overhead.  On single-TC
        # parts (v5e/v6e) pass images_per_step=B to collapse to one step.
        images_per_step = B // 2 if (B >= 2 and B % 2 == 0) else B
    assert B % images_per_step == 0
    n_steps = B // images_per_step
    N = images_per_step * HW

    # Lane-pack `images_per_step` images per grid step: (n_steps, C, imgs*HW).
    # When images_per_step == 1 this is a pure reshape (no data movement).
    xp = x_nchw.reshape(n_steps, images_per_step, dim, HW)
    xp = jnp.transpose(xp, (0, 2, 1, 3)).reshape(n_steps, dim, N)

    kernel = functools.partial(_landmark_kernel, H=H, W=W)

    def whole(a):
        nd = a.ndim
        return pl.BlockSpec(a.shape, lambda s: (0,) * nd)

    out = pl.pallas_call(
        kernel,
        out_shape=jax.ShapeDtypeStruct((n_steps, dim, N), x_nchw.dtype),
        grid=(n_steps,),
        in_specs=[
            pl.BlockSpec((1, dim, N), lambda s: (s, 0, 0)),
            whole(params["branch_w"]), whole(params["branch_b"]),
            whole(params["pconv_w"]), whole(params["pconv_b"]),
            whole(params["conv2_w"]), whole(params["conv2_b"]),
        ],
        out_specs=pl.BlockSpec((1, dim, N), lambda s: (s, 0, 0)),
        compiler_params=pltpu.CompilerParams(
            dimension_semantics=("parallel",),        # v7x: steps across TCs
            vmem_limit_bytes=32 * 1024 * 1024),
    )(xp, params["branch_w"], params["branch_b"],
      params["pconv_w"], params["pconv_b"],
      params["conv2_w"], params["conv2_b"])

    out = out.reshape(n_steps, dim, images_per_step, HW)
    out = jnp.transpose(out, (0, 2, 1, 3)).reshape(B, dim, H, W)
    return out


# ---------------------------------------------------------------------------
# Parameters (BN inference stats folded; im2col weight layout; mapdim padded)
# ---------------------------------------------------------------------------
def _bn_identity_fold(c):
    gamma = jnp.ones((c,), jnp.float32)
    beta = jnp.zeros((c,), jnp.float32)
    mean = jnp.zeros((c,), jnp.float32)
    var = jnp.ones((c,), jnp.float32)
    scale = gamma / jnp.sqrt(var + BN_EPS)
    bias = beta - mean * scale
    return scale, bias


def _oihw_to_rows(w):
    """(O, I, 3, 3) -> (O, 9*I); column (ky*3+kx)*I + c  <-  w[o, c, ky, kx]."""
    o, i = w.shape[0], w.shape[1]
    return jnp.transpose(w, (0, 2, 3, 1)).reshape(o, 9 * i)


def init_params(key, dim, mapdim):
    mapdim_p = max(8, ((mapdim + 7) // 8) * 8)   # sublane-aligned branch width
    ks = jax.random.split(key, 7)

    def conv_w(k, cout, cin, kk):
        fan_in = cin * kk * kk
        return jax.random.normal(k, (cout, cin, kk, kk), jnp.float32) / math.sqrt(fan_in)

    # Four branch convs (BN folded), fused along Cout and zero-padded to mapdim_p.
    ref_bw, ref_bb, blocks_w, blocks_b = [], [], [], []
    for i in range(4):
        w = conv_w(ks[i], mapdim, dim, 3)
        s, b = _bn_identity_fold(mapdim)
        wf = w * s[:, None, None, None]
        ref_bw.append(wf)
        ref_bb.append(b)
        blocks_w.append(jnp.pad(_oihw_to_rows(wf), ((0, mapdim_p - mapdim), (0, 0))))
        blocks_b.append(jnp.pad(b, (0, mapdim_p - mapdim)))
    branch_w = jnp.concatenate(blocks_w, axis=0)             # (4*mapdim_p, 9*dim)
    branch_b = jnp.concatenate(blocks_b, axis=0)[:, None]    # (4*mapdim_p, 1)

    # p_conv1 (3x3, BN folded) fused with conv1 (1x1, BN folded).
    wp = conv_w(ks[4], dim, 4 * mapdim, 3)
    sp, bp = _bn_identity_fold(dim)
    wpf = wp * sp[:, None, None, None]
    wp_pad = jnp.pad(wpf.reshape(dim, 4, mapdim, 3, 3),
                     ((0, 0), (0, 0), (0, mapdim_p - mapdim), (0, 0), (0, 0)))
    wp_rows = _oihw_to_rows(wp_pad.reshape(dim, 4 * mapdim_p, 3, 3))

    w1 = jax.random.normal(ks[5], (dim, dim), jnp.float32) / math.sqrt(dim)
    s1, b1 = _bn_identity_fold(dim)
    w1f = w1 * s1[:, None]

    pconv_w = jnp.concatenate([wp_rows, w1f], axis=1)   # (dim, 9*4*mapdim_p + dim)
    pconv_b = (bp + b1)[:, None]

    # conv2 (3x3 + BN folded).
    w2 = conv_w(ks[6], dim, dim, 3)
    s2, b2 = _bn_identity_fold(dim)
    w2f = w2 * s2[:, None, None, None]

    kernel_params = {
        "branch_w": branch_w, "branch_b": branch_b,
        "pconv_w": pconv_w, "pconv_b": pconv_b,
        "conv2_w": _oihw_to_rows(w2f), "conv2_b": b2[:, None],
    }
    ref_params = {
        "bw": ref_bw, "bb": ref_bb,
        "wp": wpf, "bp": bp, "w1": w1f, "b1": b1,
        "w2": w2f, "b2": b2,
    }
    return kernel_params, ref_params


# ---------------------------------------------------------------------------
# Pure-JAX reference (independent implementation, used for validation)
# ---------------------------------------------------------------------------
def _ref_shift(x, sy, sx):
    """y[..., i, j] = x[..., i - sy, j - sx], NEG fill outside (NCHW)."""
    H, W = x.shape[-2], x.shape[-1]
    xp = jnp.pad(x, ((0, 0), (0, 0),
                     (max(sy, 0), max(-sy, 0)),
                     (max(sx, 0), max(-sx, 0))),
                 constant_values=NEG)
    i0, j0 = max(-sy, 0), max(-sx, 0)
    return xp[:, :, i0:i0 + H, j0:j0 + W]


def _ref_dir_cummax(x, dy, dx):
    H, W = x.shape[-2], x.shape[-1]
    n = W if dy == 0 else (H if dx == 0 else min(H, W))
    out = x
    for k in range(1, n):
        out = jnp.maximum(out, _ref_shift(x, k * dy, k * dx))
    return out


def _ref_conv3x3(x, w_oihw, b):
    y = jax.lax.conv_general_dilated(
        x, w_oihw, (1, 1), ((1, 1), (1, 1)),
        dimension_numbers=("NCHW", "OIHW", "NCHW"),
        precision=jax.lax.Precision.HIGHEST)
    return y + b.reshape(1, -1, 1, 1)


def reference_forward(ref, x):
    branches = [jax.nn.relu(_ref_conv3x3(x, ref["bw"][i], ref["bb"][i]))
                for i in range(4)]
    dirs = (((0, 1), (0, -1)), ((1, 0), (-1, 0)),
            ((1, 1), (-1, -1)), ((1, -1), (-1, 1)))
    pools = [jnp.maximum(_ref_dir_cummax(branches[i], *da),
                         _ref_dir_cummax(branches[i], *db))
             for i, (da, db) in enumerate(dirs)]
    pool_feat = jnp.concatenate(pools, axis=1)
    p_bn1 = _ref_conv3x3(pool_feat, ref["wp"], ref["bp"])
    bn1 = jnp.einsum("oc,bchw->bohw", ref["w1"], x,
                     precision=jax.lax.Precision.HIGHEST) \
        + ref["b1"].reshape(1, -1, 1, 1)
    relu1 = jax.nn.relu(p_bn1 + bn1)
    return jax.nn.relu(_ref_conv3x3(relu1, ref["w2"], ref["b2"]))


# ---------------------------------------------------------------------------
if __name__ == "__main__":
    B, dim, mapdim, H, W = 4, 8, 4, 16, 16
    key = jax.random.PRNGKey(0)
    kp, kx = jax.random.split(key)
    kernel_params, ref_params = init_params(kp, dim, mapdim)
    x = jax.random.normal(kx, (B, dim, H, W), jnp.float32)

    # Default packing: 2 images per grid step, 2 grid steps (v7x-friendly).
    out = jax.jit(landmark_p4x_forward)(kernel_params, x)
    out = jax.block_until_ready(out)

    assert out.shape == (B, dim, H, W), out.shape
    assert bool(jnp.isfinite(out).all())

    # Validate against an independent pure-JAX/XLA implementation.
    ref = jax.jit(reference_forward)(ref_params, x)
    ref = jax.block_until_ready(ref)
    err = float(jnp.max(jnp.abs(out - ref)))
    scale = float(jnp.max(jnp.abs(ref))) + 1e-6
    assert err / scale < 2e-2, f"relative error vs reference: {err / scale:.3e}"

    print("KERNEL_OK")
</pallas_src>

<mosaic_0001>
module attributes {stable_mosaic.version = 11 : i64} {
  func.func @_landmark_kernel(%arg0: i32, %arg1: memref<1x8x512xf32, #tpu.memory_space<vmem>>, %arg2: memref<32x72xf32, #tpu.memory_space<vmem>>, %arg3: memref<32x1xf32, #tpu.memory_space<vmem>>, %arg4: memref<8x296xf32, #tpu.memory_space<vmem>>, %arg5: memref<8x1xf32, #tpu.memory_space<vmem>>, %arg6: memref<8x72xf32, #tpu.memory_space<vmem>>, %arg7: memref<8x1xf32, #tpu.memory_space<vmem>>, %arg8: memref<1x8x512xf32, #tpu.memory_space<vmem>>) attributes {dimension_semantics = [#tpu.dimension_semantics<parallel>], iteration_bounds = array<i64: 2>, scalar_prefetch = 0 : i64, scratch_operands = 0 : i64, tpu.core_type = #tpu.core_type<tc>, window_params = [{transform_indices = @transform_0, window_bounds = array<i64: 1, 8, 512>}, {pipeline_mode = #tpu.pipeline_mode<synchronous>, transform_indices = @transform_1, window_bounds = array<i64: 32, 72>}, {pipeline_mode = #tpu.pipeline_mode<synchronous>, transform_indices = @transform_2, window_bounds = array<i64: 32, 1>}, {pipeline_mode = #tpu.pipeline_mode<synchronous>, transform_indices = @transform_3, window_bounds = array<i64: 8, 296>}, {pipeline_mode = #tpu.pipeline_mode<synchronous>, transform_indices = @transform_4, window_bounds = array<i64: 8, 1>}, {pipeline_mode = #tpu.pipeline_mode<synchronous>, transform_indices = @transform_5, window_bounds = array<i64: 8, 72>}, {pipeline_mode = #tpu.pipeline_mode<synchronous>, transform_indices = @transform_6, window_bounds = array<i64: 8, 1>}, {transform_indices = @transform_7, window_bounds = array<i64: 1, 8, 512>}]} {
    %0 = tpu.iota {dimensions = array<i32: 1>} : vector<1x512xi32>
    %c15_i32 = arith.constant 15 : i32
    %1 = vector.broadcast %c15_i32 : i32 to vector<1x512xi32>
    %2 = arith.andi %0, %1 : vector<1x512xi32>
    %c4_i32 = arith.constant 4 : i32
    %3 = vector.broadcast %c4_i32 : i32 to vector<1x512xi32>
    %4 = arith.shrsi %0, %3 : vector<1x512xi32>
    %c15_i32_0 = arith.constant 15 : i32
    %5 = vector.broadcast %c15_i32_0 : i32 to vector<1x512xi32>
    %6 = arith.andi %4, %5 : vector<1x512xi32>
    %c0 = arith.constant 0 : index
    %c0_1 = arith.constant 0 : index
    %c0_2 = arith.constant 0 : index
    %7 = vector.load %arg1[%c0, %c0_1, %c0_2] : memref<1x8x512xf32, #tpu.memory_space<vmem>>, vector<1x8x512xf32>
    %8 = vector.shape_cast %7 : vector<1x8x512xf32> to vector<8x512xf32>
    %c0_3 = arith.constant 0 : index
    %c0_4 = arith.constant 0 : index
    %9 = vector.load %arg2[%c0_3, %c0_4] : memref<32x72xf32, #tpu.memory_space<vmem>>, vector<32x72xf32>
    %c17_i32 = arith.constant 17 : i32
    %10 = tpu.dynamic_rotate %8 by %c17_i32 dim 1 : vector<8x512xf32>, i32 -> vector<8x512xf32>
    %c1_i32 = arith.constant 1 : i32
    %11 = vector.broadcast %c1_i32 : i32 to vector<1x512xi32>
    %12 = arith.cmpi sge, %2, %11 : vector<1x512xi32>
    %c1_i32_5 = arith.constant 1 : i32
    %13 = vector.broadcast %c1_i32_5 : i32 to vector<1x512xi32>
    %14 = arith.cmpi sge, %6, %13 : vector<1x512xi32>
    %15 = arith.andi %12, %14 : vector<1x512xi1>
    %16 = vector.shape_cast %15 : vector<1x512xi1> to vector<1x512xi1>
    %17 = vector.broadcast %16 : vector<1x512xi1> to vector<8x512xi1>
    %cst = arith.constant 0.000000e+00 : f32
    %18 = vector.broadcast %cst : f32 to vector<8x512xf32>
    %19 = arith.select %17, %10, %18 : vector<8x512xi1>, vector<8x512xf32>
    %c16_i32 = arith.constant 16 : i32
    %20 = tpu.dynamic_rotate %8 by %c16_i32 dim 1 : vector<8x512xf32>, i32 -> vector<8x512xf32>
    %c1_i32_6 = arith.constant 1 : i32
    %21 = vector.broadcast %c1_i32_6 : i32 to vector<1x512xi32>
    %22 = arith.cmpi sge, %6, %21 : vector<1x512xi32>
    %23 = vector.shape_cast %22 : vector<1x512xi1> to vector<1x512xi1>
    %24 = vector.broadcast %23 : vector<1x512xi1> to vector<8x512xi1>
    %cst_7 = arith.constant 0.000000e+00 : f32
    %25 = vector.broadcast %cst_7 : f32 to vector<8x512xf32>
    %26 = arith.select %24, %20, %25 : vector<8x512xi1>, vector<8x512xf32>
    %c15_i32_8 = arith.constant 15 : i32
    %27 = tpu.dynamic_rotate %8 by %c15_i32_8 dim 1 : vector<8x512xf32>, i32 -> vector<8x512xf32>
    %c15_i32_9 = arith.constant 15 : i32
    %28 = vector.broadcast %c15_i32_9 : i32 to vector<1x512xi32>
    %29 = arith.cmpi slt, %2, %28 : vector<1x512xi32>
    %c1_i32_10 = arith.constant 1 : i32
    %30 = vector.broadcast %c1_i32_10 : i32 to vector<1x512xi32>
    %31 = arith.cmpi sge, %6, %30 : vector<1x512xi32>
    %32 = arith.andi %29, %31 : vector<1x512xi1>
    %33 = vector.shape_cast %32 : vector<1x512xi1> to vector<1x512xi1>
    %34 = vector.broadcast %33 : vector<1x512xi1> to vector<8x512xi1>
    %cst_11 = arith.constant 0.000000e+00 : f32
    %35 = vector.broadcast %cst_11 : f32 to vector<8x512xf32>
    %36 = arith.select %34, %27, %35 : vector<8x512xi1>, vector<8x512xf32>
    %c1_i32_12 = arith.constant 1 : i32
    %37 = tpu.dynamic_rotate %8 by %c1_i32_12 dim 1 : vector<8x512xf32>, i32 -> vector<8x512xf32>
    %c1_i32_13 = arith.constant 1 : i32
    %38 = vector.broadcast %c1_i32_13 : i32 to vector<1x512xi32>
    %39 = arith.cmpi sge, %2, %38 : vector<1x512xi32>
    %40 = vector.shape_cast %39 : vector<1x512xi1> to vector<1x512xi1>
    %41 = vector.broadcast %40 : vector<1x512xi1> to vector<8x512xi1>
    %cst_14 = arith.constant 0.000000e+00 : f32
    %42 = vector.broadcast %cst_14 : f32 to vector<8x512xf32>
    %43 = arith.select %41, %37, %42 : vector<8x512xi1>, vector<8x512xf32>
    %c511_i32 = arith.constant 511 : i32
    %44 = tpu.dynamic_rotate %8 by %c511_i32 dim 1 : vector<8x512xf32>, i32 -> vector<8x512xf32>
    %c15_i32_15 = arith.constant 15 : i32
    %45 = vector.broadcast %c15_i32_15 : i32 to vector<1x512xi32>
    %46 = arith.cmpi slt, %2, %45 : vector<1x512xi32>
    %47 = vector.shape_cast %46 : vector<1x512xi1> to vector<1x512xi1>
    %48 = vector.broadcast %47 : vector<1x512xi1> to vector<8x512xi1>
    %cst_16 = arith.constant 0.000000e+00 : f32
    %49 = vector.broadcast %cst_16 : f32 to vector<8x512xf32>
    %50 = arith.select %48, %44, %49 : vector<8x512xi1>, vector<8x512xf32>
    %c497_i32 = arith.constant 497 : i32
    %51 = tpu.dynamic_rotate %8 by %c497_i32 dim 1 : vector<8x512xf32>, i32 -> vector<8x512xf32>
    %c1_i32_17 = arith.constant 1 : i32
    %52 = vector.broadcast %c1_i32_17 : i32 to vector<1x512xi32>
    %53 = arith.cmpi sge, %2, %52 : vector<1x512xi32>
    %c15_i32_18 = arith.constant 15 : i32
    %54 = vector.broadcast %c15_i32_18 : i32 to vector<1x512xi32>
    %55 = arith.cmpi slt, %6, %54 : vector<1x512xi32>
    %56 = arith.andi %53, %55 : vector<1x512xi1>
    %57 = vector.shape_cast %56 : vector<1x512xi1> to vector<1x512xi1>
    %58 = vector.broadcast %57 : vector<1x512xi1> to vector<8x512xi1>
    %cst_19 = arith.constant 0.000000e+00 : f32
    %59 = vector.broadcast %cst_19 : f32 to vector<8x512xf32>
    %60 = arith.select %58, %51, %59 : vector<8x512xi1>, vector<8x512xf32>
    %c496_i32 = arith.constant 496 : i32
    %61 = tpu.dynamic_rotate %8 by %c496_i32 dim 1 : vector<8x512xf32>, i32 -> vector<8x512xf32>
    %c15_i32_20 = arith.constant 15 : i32
    %62 = vector.broadcast %c15_i32_20 : i32 to vector<1x512xi32>
    %63 = arith.cmpi slt, %6, %62 : vector<1x512xi32>
    %64 = vector.shape_cast %63 : vector<1x512xi1> to vector<1x512xi1>
    %65 = vector.broadcast %64 : vector<1x512xi1> to vector<8x512xi1>
    %cst_21 = arith.constant 0.000000e+00 : f32
    %66 = vector.broadcast %cst_21 : f32 to vector<8x512xf32>
    %67 = arith.select %65, %61, %66 : vector<8x512xi1>, vector<8x512xf32>
    %c495_i32 = arith.constant 495 : i32
    %68 = tpu.dynamic_rotate %8 by %c495_i32 dim 1 : vector<8x512xf32>, i32 -> vector<8x512xf32>
    %c15_i32_22 = arith.constant 15 : i32
    %69 = vector.broadcast %c15_i32_22 : i32 to vector<1x512xi32>
    %70 = arith.cmpi slt, %2, %69 : vector<1x512xi32>
    %c15_i32_23 = arith.constant 15 : i32
    %71 = vector.broadcast %c15_i32_23 : i32 to vector<1x512xi32>
    %72 = arith.cmpi slt, %6, %71 : vector<1x512xi32>
    %73 = arith.andi %70, %72 : vector<1x512xi1>
    %74 = vector.shape_cast %73 : vector<1x512xi1> to vector<1x512xi1>
    %75 = vector.broadcast %74 : vector<1x512xi1> to vector<8x512xi1>
    %cst_24 = arith.constant 0.000000e+00 : f32
    %76 = vector.broadcast %cst_24 : f32 to vector<8x512xf32>
    %77 = arith.select %75, %68, %76 : vector<8x512xi1>, vector<8x512xf32>
    %78 = tpu.concatenate %19, %26, %36, %43, %8, %50, %60, %67, %77 in 0 : vector<8x512xf32>, vector<8x512xf32>, vector<8x512xf32>, vector<8x512xf32>, vector<8x512xf32>, vector<8x512xf32>, vector<8x512xf32>, vector<8x512xf32>, vector<8x512xf32> -> vector<72x512xf32>
    %cst_25 = arith.constant dense<0.000000e+00> : vector<32x512xf32>
    %79 = tpu.matmul %9, %78, %cst_25 {dimension_numbers = #tpu.dot_dimension_numbers<[1], [0], [0], [1], [0, 0, 1, 1], [], []>} : vector<32x72xf32>, vector<72x512xf32>, vector<32x512xf32> -> vector<32x512xf32>
    %c0_26 = arith.constant 0 : index
    %c0_27 = arith.constant 0 : index
    %80 = vector.load %arg3[%c0_26, %c0_27] : memref<32x1xf32, #tpu.memory_space<vmem>>, vector<32x1xf32>
    %81 = vector.broadcast %80 : vector<32x1xf32> to vector<32x512xf32>
    %82 = arith.addf %79, %81 : vector<32x512xf32>
    %cst_28 = arith.constant 0.000000e+00 : f32
    %83 = vector.broadcast %cst_28 : f32 to vector<32x512xf32>
    %84 = arith.maximumf %82, %83 : vector<32x512xf32>
    %85 = vector.extract_strided_slice %84 {offsets = [0, 0], sizes = [8, 512], strides = [1, 1]} : vector<32x512xf32> to vector<8x512xf32>
    %c1_i32_29 = arith.constant 1 : i32
    %86 = tpu.dynamic_rotate %85 by %c1_i32_29 dim 1 : vector<8x512xf32>, i32 -> vector<8x512xf32>
    %cst_30 = arith.constant -1.000000e+30 : f32
    %87 = vector.broadcast %cst_30 : f32 to vector<8x512xf32>
    %88 = arith.select %41, %86, %87 : vector<8x512xi1>, vector<8x512xf32>
    %89 = arith.maximumf %85, %88 : vector<8x512xf32>
    %c2_i32 = arith.constant 2 : i32
    %90 = tpu.dynamic_rotate %89 by %c2_i32 dim 1 : vector<8x512xf32>, i32 -> vector<8x512xf32>
    %c2_i32_31 = arith.constant 2 : i32
    %91 = vector.broadcast %c2_i32_31 : i32 to vector<1x512xi32>
    %92 = arith.cmpi sge, %2, %91 : vector<1x512xi32>
    %93 = vector.shape_cast %92 : vector<1x512xi1> to vector<1x512xi1>
    %94 = vector.broadcast %93 : vector<1x512xi1> to vector<8x512xi1>
    %cst_32 = arith.constant -1.000000e+30 : f32
    %95 = vector.broadcast %cst_32 : f32 to vector<8x512xf32>
    %96 = arith.select %94, %90, %95 : vector<8x512xi1>, vector<8x512xf32>
    %97 = arith.maximumf %89, %96 : vector<8x512xf32>
    %c4_i32_33 = arith.constant 4 : i32
    %98 = tpu.dynamic_rotate %97 by %c4_i32_33 dim 1 : vector<8x512xf32>, i32 -> vector<8x512xf32>
    %c4_i32_34 = arith.constant 4 : i32
    %99 = vector.broadcast %c4_i32_34 : i32 to vector<1x512xi32>
    %100 = arith.cmpi sge, %2, %99 : vector<1x512xi32>
    %101 = vector.shape_cast %100 : vector<1x512xi1> to vector<1x512xi1>
    %102 = vector.broadcast %101 : vector<1x512xi1> to vector<8x512xi1>
    %cst_35 = arith.constant -1.000000e+30 : f32
    %103 = vector.broadcast %cst_35 : f32 to vector<8x512xf32>
    %104 = arith.select %102, %98, %103 : vector<8x512xi1>, vector<8x512xf32>
    %105 = arith.maximumf %97, %104 : vector<8x512xf32>
    %c8_i32 = arith.constant 8 : i32
    %106 = tpu.dynamic_rotate %105 by %c8_i32 dim 1 : vector<8x512xf32>, i32 -> vector<8x512xf32>
    %c8_i32_36 = arith.constant 8 : i32
    %107 = vector.broadcast %c8_i32_36 : i32 to vector<1x512xi32>
    %108 = arith.cmpi sge, %2, %107 : vector<1x512xi32>
    %109 = vector.shape_cast %108 : vector<1x512xi1> to vector<1x512xi1>
    %110 = vector.broadcast %109 : vector<1x512xi1> to vector<8x512xi1>
    %cst_37 = arith.constant -1.000000e+30 : f32
    %111 = vector.broadcast %cst_37 : f32 to vector<8x512xf32>
    %112 = arith.select %110, %106, %111 : vector<8x512xi1>, vector<8x512xf32>
    %113 = arith.maximumf %105, %112 : vector<8x512xf32>
    %c511_i32_38 = arith.constant 511 : i32
    %114 = tpu.dynamic_rotate %85 by %c511_i32_38 dim 1 : vector<8x512xf32>, i32 -> vector<8x512xf32>
    %cst_39 = arith.constant -1.000000e+30 : f32
    %115 = vector.broadcast %cst_39 : f32 to vector<8x512xf32>
    %116 = arith.select %48, %114, %115 : vector<8x512xi1>, vector<8x512xf32>
    %117 = arith.maximumf %85, %116 : vector<8x512xf32>
    %c510_i32 = arith.constant 510 : i32
    %118 = tpu.dynamic_rotate %117 by %c510_i32 dim 1 : vector<8x512xf32>, i32 -> vector<8x512xf32>
    %c14_i32 = arith.constant 14 : i32
    %119 = vector.broadcast %c14_i32 : i32 to vector<1x512xi32>
    %120 = arith.cmpi slt, %2, %119 : vector<1x512xi32>
    %121 = vector.shape_cast %120 : vector<1x512xi1> to vector<1x512xi1>
    %122 = vector.broadcast %121 : vector<1x512xi1> to vector<8x512xi1>
    %cst_40 = arith.constant -1.000000e+30 : f32
    %123 = vector.broadcast %cst_40 : f32 to vector<8x512xf32>
    %124 = arith.select %122, %118, %123 : vector<8x512xi1>, vector<8x512xf32>
    %125 = arith.maximumf %117, %124 : vector<8x512xf32>
    %c508_i32 = arith.constant 508 : i32
    %126 = tpu.dynamic_rotate %125 by %c508_i32 dim 1 : vector<8x512xf32>, i32 -> vector<8x512xf32>
    %c12_i32 = arith.constant 12 : i32
    %127 = vector.broadcast %c12_i32 : i32 to vector<1x512xi32>
    %128 = arith.cmpi slt, %2, %127 : vector<1x512xi32>
    %129 = vector.shape_cast %128 : vector<1x512xi1> to vector<1x512xi1>
    %130 = vector.broadcast %129 : vector<1x512xi1> to vector<8x512xi1>
    %cst_41 = arith.constant -1.000000e+30 : f32
    %131 = vector.broadcast %cst_41 : f32 to vector<8x512xf32>
    %132 = arith.select %130, %126, %131 : vector<8x512xi1>, vector<8x512xf32>
    %133 = arith.maximumf %125, %132 : vector<8x512xf32>
    %c504_i32 = arith.constant 504 : i32
    %134 = tpu.dynamic_rotate %133 by %c504_i32 dim 1 : vector<8x512xf32>, i32 -> vector<8x512xf32>
    %c8_i32_42 = arith.constant 8 : i32
    %135 = vector.broadcast %c8_i32_42 : i32 to vector<1x512xi32>
    %136 = arith.cmpi slt, %2, %135 : vector<1x512xi32>
    %137 = vector.shape_cast %136 : vector<1x512xi1> to vector<1x512xi1>
    %138 = vector.broadcast %137 : vector<1x512xi1> to vector<8x512xi1>
    %cst_43 = arith.constant -1.000000e+30 : f32
    %139 = vector.broadcast %cst_43 : f32 to vector<8x512xf32>
    %140 = arith.select %138, %134, %139 : vector<8x512xi1>, vector<8x512xf32>
    %141 = arith.maximumf %133, %140 : vector<8x512xf32>
    %142 = arith.maximumf %113, %141 : vector<8x512xf32>
    %143 = vector.extract_strided_slice %84 {offsets = [8, 0], sizes = [8, 512], strides = [1, 1]} : vector<32x512xf32> to vector<8x512xf32>
    %c16_i32_44 = arith.constant 16 : i32
    %144 = tpu.dynamic_rotate %143 by %c16_i32_44 dim 1 : vector<8x512xf32>, i32 -> vector<8x512xf32>
    %cst_45 = arith.constant -1.000000e+30 : f32
    %145 = vector.broadcast %cst_45 : f32 to vector<8x512xf32>
    %146 = arith.select %24, %144, %145 : vector<8x512xi1>, vector<8x512xf32>
    %147 = arith.maximumf %143, %146 : vector<8x512xf32>
    %c32_i32 = arith.constant 32 : i32
    %148 = tpu.dynamic_rotate %147 by %c32_i32 dim 1 : vector<8x512xf32>, i32 -> vector<8x512xf32>
    %c2_i32_46 = arith.constant 2 : i32
    %149 = vector.broadcast %c2_i32_46 : i32 to vector<1x512xi32>
    %150 = arith.cmpi sge, %6, %149 : vector<1x512xi32>
    %151 = vector.shape_cast %150 : vector<1x512xi1> to vector<1x512xi1>
    %152 = vector.broadcast %151 : vector<1x512xi1> to vector<8x512xi1>
    %cst_47 = arith.constant -1.000000e+30 : f32
    %153 = vector.broadcast %cst_47 : f32 to vector<8x512xf32>
    %154 = arith.select %152, %148, %153 : vector<8x512xi1>, vector<8x512xf32>
    %155 = arith.maximumf %147, %154 : vector<8x512xf32>
    %c64_i32 = arith.constant 64 : i32
    %156 = tpu.dynamic_rotate %155 by %c64_i32 dim 1 : vector<8x512xf32>, i32 -> vector<8x512xf32>
    %c4_i32_48 = arith.constant 4 : i32
    %157 = vector.broadcast %c4_i32_48 : i32 to vector<1x512xi32>
    %158 = arith.cmpi sge, %6, %157 : vector<1x512xi32>
    %159 = vector.shape_cast %158 : vector<1x512xi1> to vector<1x512xi1>
    %160 = vector.broadcast %159 : vector<1x512xi1> to vector<8x512xi1>
    %cst_49 = arith.constant -1.000000e+30 : f32
    %161 = vector.broadcast %cst_49 : f32 to vector<8x512xf32>
    %162 = arith.select %160, %156, %161 : vector<8x512xi1>, vector<8x512xf32>
    %163 = arith.maximumf %155, %162 : vector<8x512xf32>
    %c128_i32 = arith.constant 128 : i32
    %164 = tpu.dynamic_rotate %163 by %c128_i32 dim 1 : vector<8x512xf32>, i32 -> vector<8x512xf32>
    %c8_i32_50 = arith.constant 8 : i32
    %165 = vector.broadcast %c8_i32_50 : i32 to vector<1x512xi32>
    %166 = arith.cmpi sge, %6, %165 : vector<1x512xi32>
    %167 = vector.shape_cast %166 : vector<1x512xi1> to vector<1x512xi1>
    %168 = vector.broadcast %167 : vector<1x512xi1> to vector<8x512xi1>
    %cst_51 = arith.constant -1.000000e+30 : f32
    %169 = vector.broadcast %cst_51 : f32 to vector<8x512xf32>
    %170 = arith.select %168, %164, %169 : vector<8x512xi1>, vector<8x512xf32>
    %171 = arith.maximumf %163, %170 : vector<8x512xf32>
    %c496_i32_52 = arith.constant 496 : i32
    %172 = tpu.dynamic_rotate %143 by %c496_i32_52 dim 1 : vector<8x512xf32>, i32 -> vector<8x512xf32>
    %cst_53 = arith.constant -1.000000e+30 : f32
    %173 = vector.broadcast %cst_53 : f32 to vector<8x512xf32>
    %174 = arith.select %65, %172, %173 : vector<8x512xi1>, vector<8x512xf32>
    %175 = arith.maximumf %143, %174 : vector<8x512xf32>
    %c480_i32 = arith.constant 480 : i32
    %176 = tpu.dynamic_rotate %175 by %c480_i32 dim 1 : vector<8x512xf32>, i32 -> vector<8x512xf32>
    %c14_i32_54 = arith.constant 14 : i32
    %177 = vector.broadcast %c14_i32_54 : i32 to vector<1x512xi32>
    %178 = arith.cmpi slt, %6, %177 : vector<1x512xi32>
    %179 = vector.shape_cast %178 : vector<1x512xi1> to vector<1x512xi1>
    %180 = vector.broadcast %179 : vector<1x512xi1> to vector<8x512xi1>
    %cst_55 = arith.constant -1.000000e+30 : f32
    %181 = vector.broadcast %cst_55 : f32 to vector<8x512xf32>
    %182 = arith.select %180, %176, %181 : vector<8x512xi1>, vector<8x512xf32>
    %183 = arith.maximumf %175, %182 : vector<8x512xf32>
    %c448_i32 = arith.constant 448 : i32
    %184 = tpu.dynamic_rotate %183 by %c448_i32 dim 1 : vector<8x512xf32>, i32 -> vector<8x512xf32>
    %c12_i32_56 = arith.constant 12 : i32
    %185 = vector.broadcast %c12_i32_56 : i32 to vector<1x512xi32>
    %186 = arith.cmpi slt, %6, %185 : vector<1x512xi32>
    %187 = vector.shape_cast %186 : vector<1x512xi1> to vector<1x512xi1>
    %188 = vector.broadcast %187 : vector<1x512xi1> to vector<8x512xi1>
    %cst_57 = arith.constant -1.000000e+30 : f32
    %189 = vector.broadcast %cst_57 : f32 to vector<8x512xf32>
    %190 = arith.select %188, %184, %189 : vector<8x512xi1>, vector<8x512xf32>
    %191 = arith.maximumf %183, %190 : vector<8x512xf32>
    %c384_i32 = arith.constant 384 : i32
    %192 = tpu.dynamic_rotate %191 by %c384_i32 dim 1 : vector<8x512xf32>, i32 -> vector<8x512xf32>
    %c8_i32_58 = arith.constant 8 : i32
    %193 = vector.broadcast %c8_i32_58 : i32 to vector<1x512xi32>
    %194 = arith.cmpi slt, %6, %193 : vector<1x512xi32>
    %195 = vector.shape_cast %194 : vector<1x512xi1> to vector<1x512xi1>
    %196 = vector.broadcast %195 : vector<1x512xi1> to vector<8x512xi1>
    %cst_59 = arith.constant -1.000000e+30 : f32
    %197 = vector.broadcast %cst_59 : f32 to vector<8x512xf32>
    %198 = arith.select %196, %192, %197 : vector<8x512xi1>, vector<8x512xf32>
    %199 = arith.maximumf %191, %198 : vector<8x512xf32>
    %200 = arith.maximumf %171, %199 : vector<8x512xf32>
    %201 = vector.extract_strided_slice %84 {offsets = [16, 0], sizes = [8, 512], strides = [1, 1]} : vector<32x512xf32> to vector<8x512xf32>
    %c17_i32_60 = arith.constant 17 : i32
    %202 = tpu.dynamic_rotate %201 by %c17_i32_60 dim 1 : vector<8x512xf32>, i32 -> vector<8x512xf32>
    %cst_61 = arith.constant -1.000000e+30 : f32
    %203 = vector.broadcast %cst_61 : f32 to vector<8x512xf32>
    %204 = arith.select %17, %202, %203 : vector<8x512xi1>, vector<8x512xf32>
    %205 = arith.maximumf %201, %204 : vector<8x512xf32>
    %c34_i32 = arith.constant 34 : i32
    %206 = tpu.dynamic_rotate %205 by %c34_i32 dim 1 : vector<8x512xf32>, i32 -> vector<8x512xf32>
    %c2_i32_62 = arith.constant 2 : i32
    %207 = vector.broadcast %c2_i32_62 : i32 to vector<1x512xi32>
    %208 = arith.cmpi sge, %2, %207 : vector<1x512xi32>
    %c2_i32_63 = arith.constant 2 : i32
    %209 = vector.broadcast %c2_i32_63 : i32 to vector<1x512xi32>
    %210 = arith.cmpi sge, %6, %209 : vector<1x512xi32>
    %211 = arith.andi %208, %210 : vector<1x512xi1>
    %212 = vector.shape_cast %211 : vector<1x512xi1> to vector<1x512xi1>
    %213 = vector.broadcast %212 : vector<1x512xi1> to vector<8x512xi1>
    %cst_64 = arith.constant -1.000000e+30 : f32
    %214 = vector.broadcast %cst_64 : f32 to vector<8x512xf32>
    %215 = arith.select %213, %206, %214 : vector<8x512xi1>, vector<8x512xf32>
    %216 = arith.maximumf %205, %215 : vector<8x512xf32>
    %c68_i32 = arith.constant 68 : i32
    %217 = tpu.dynamic_rotate %216 by %c68_i32 dim 1 : vector<8x512xf32>, i32 -> vector<8x512xf32>
    %c4_i32_65 = arith.constant 4 : i32
    %218 = vector.broadcast %c4_i32_65 : i32 to vector<1x512xi32>
    %219 = arith.cmpi sge, %2, %218 : vector<1x512xi32>
    %c4_i32_66 = arith.constant 4 : i32
    %220 = vector.broadcast %c4_i32_66 : i32 to vector<1x512xi32>
    %221 = arith.cmpi sge, %6, %220 : vector<1x512xi32>
    %222 = arith.andi %219, %221 : vector<1x512xi1>
    %223 = vector.shape_cast %222 : vector<1x512xi1> to vector<1x512xi1>
    %224 = vector.broadcast %223 : vector<1x512xi1> to vector<8x512xi1>
    %cst_67 = arith.constant -1.000000e+30 : f32
    %225 = vector.broadcast %cst_67 : f32 to vector<8x512xf32>
    %226 = arith.select %224, %217, %225 : vector<8x512xi1>, vector<8x512xf32>
    %227 = arith.maximumf %216, %226 : vector<8x512xf32>
    %c136_i32 = arith.constant 136 : i32
    %228 = tpu.dynamic_rotate %227 by %c136_i32 dim 1 : vector<8x512xf32>, i32 -> vector<8x512xf32>
    %c8_i32_68 = arith.constant 8 : i32
    %229 = vector.broadcast %c8_i32_68 : i32 to vector<1x512xi32>
    %230 = arith.cmpi sge, %2, %229 : vector<1x512xi32>
    %c8_i32_69 = arith.constant 8 : i32
    %231 = vector.broadcast %c8_i32_69 : i32 to vector<1x512xi32>
    %232 = arith.cmpi sge, %6, %231 : vector<1x512xi32>
    %233 = arith.andi %230, %232 : vector<1x512xi1>
    %234 = vector.shape_cast %233 : vector<1x512xi1> to vector<1x512xi1>
    %235 = vector.broadcast %234 : vector<1x512xi1> to vector<8x512xi1>
    %cst_70 = arith.constant -1.000000e+30 : f32
    %236 = vector.broadcast %cst_70 : f32 to vector<8x512xf32>
    %237 = arith.select %235, %228, %236 : vector<8x512xi1>, vector<8x512xf32>
    %238 = arith.maximumf %227, %237 : vector<8x512xf32>
    %c495_i32_71 = arith.constant 495 : i32
    %239 = tpu.dynamic_rotate %201 by %c495_i32_71 dim 1 : vector<8x512xf32>, i32 -> vector<8x512xf32>
    %cst_72 = arith.constant -1.000000e+30 : f32
    %240 = vector.broadcast %cst_72 : f32 to vector<8x512xf32>
    %241 = arith.select %75, %239, %240 : vector<8x512xi1>, vector<8x512xf32>
    %242 = arith.maximumf %201, %241 : vector<8x512xf32>
    %c478_i32 = arith.constant 478 : i32
    %243 = tpu.dynamic_rotate %242 by %c478_i32 dim 1 : vector<8x512xf32>, i32 -> vector<8x512xf32>
    %c14_i32_73 = arith.constant 14 : i32
    %244 = vector.broadcast %c14_i32_73 : i32 to vector<1x512xi32>
    %245 = arith.cmpi slt, %2, %244 : vector<1x512xi32>
    %c14_i32_74 = arith.constant 14 : i32
    %246 = vector.broadcast %c14_i32_74 : i32 to vector<1x512xi32>
    %247 = arith.cmpi slt, %6, %246 : vector<1x512xi32>
    %248 = arith.andi %245, %247 : vector<1x512xi1>
    %249 = vector.shape_cast %248 : vector<1x512xi1> to vector<1x512xi1>
    %250 = vector.broadcast %249 : vector<1x512xi1> to vector<8x512xi1>
    %cst_75 = arith.constant -1.000000e+30 : f32
    %251 = vector.broadcast %cst_75 : f32 to vector<8x512xf32>
    %252 = arith.select %250, %243, %251 : vector<8x512xi1>, vector<8x512xf32>
    %253 = arith.maximumf %242, %252 : vector<8x512xf32>
    %c444_i32 = arith.constant 444 : i32
    %254 = tpu.dynamic_rotate %253 by %c444_i32 dim 1 : vector<8x512xf32>, i32 -> vector<8x512xf32>
    %c12_i32_76 = arith.constant 12 : i32
    %255 = vector.broadcast %c12_i32_76 : i32 to vector<1x512xi32>
    %256 = arith.cmpi slt, %2, %255 : vector<1x512xi32>
    %c12_i32_77 = arith.constant 12 : i32
    %257 = vector.broadcast %c12_i32_77 : i32 to vector<1x512xi32>
    %258 = arith.cmpi slt, %6, %257 : vector<1x512xi32>
    %259 = arith.andi %256, %258 : vector<1x512xi1>
    %260 = vector.shape_cast %259 : vector<1x512xi1> to vector<1x512xi1>
    %261 = vector.broadcast %260 : vector<1x512xi1> to vector<8x512xi1>
    %cst_78 = arith.constant -1.000000e+30 : f32
    %262 = vector.broadcast %cst_78 : f32 to vector<8x512xf32>
    %263 = arith.select %261, %254, %262 : vector<8x512xi1>, vector<8x512xf32>
    %264 = arith.maximumf %253, %263 : vector<8x512xf32>
    %c376_i32 = arith.constant 376 : i32
    %265 = tpu.dynamic_rotate %264 by %c376_i32 dim 1 : vector<8x512xf32>, i32 -> vector<8x512xf32>
    %c8_i32_79 = arith.constant 8 : i32
    %266 = vector.broadcast %c8_i32_79 : i32 to vector<1x512xi32>
    %267 = arith.cmpi slt, %2, %266 : vector<1x512xi32>
    %c8_i32_80 = arith.constant 8 : i32
    %268 = vector.broadcast %c8_i32_80 : i32 to vector<1x512xi32>
    %269 = arith.cmpi slt, %6, %268 : vector<1x512xi32>
    %270 = arith.andi %267, %269 : vector<1x512xi1>
    %271 = vector.shape_cast %270 : vector<1x512xi1> to vector<1x512xi1>
    %272 = vector.broadcast %271 : vector<1x512xi1> to vector<8x512xi1>
    %cst_81 = arith.constant -1.000000e+30 : f32
    %273 = vector.broadcast %cst_81 : f32 to vector<8x512xf32>
    %274 = arith.select %272, %265, %273 : vector<8x512xi1>, vector<8x512xf32>
    %275 = arith.maximumf %264, %274 : vector<8x512xf32>
    %276 = arith.maximumf %238, %275 : vector<8x512xf32>
    %277 = vector.extract_strided_slice %84 {offsets = [24, 0], sizes = [8, 512], strides = [1, 1]} : vector<32x512xf32> to vector<8x512xf32>
    %c15_i32_82 = arith.constant 15 : i32
    %278 = tpu.dynamic_rotate %277 by %c15_i32_82 dim 1 : vector<8x512xf32>, i32 -> vector<8x512xf32>
    %cst_83 = arith.constant -1.000000e+30 : f32
    %279 = vector.broadcast %cst_83 : f32 to vector<8x512xf32>
    %280 = arith.select %34, %278, %279 : vector<8x512xi1>, vector<8x512xf32>
    %281 = arith.maximumf %277, %280 : vector<8x512xf32>
    %c30_i32 = arith.constant 30 : i32
    %282 = tpu.dynamic_rotate %281 by %c30_i32 dim 1 : vector<8x512xf32>, i32 -> vector<8x512xf32>
    %c14_i32_84 = arith.constant 14 : i32
    %283 = vector.broadcast %c14_i32_84 : i32 to vector<1x512xi32>
    %284 = arith.cmpi slt, %2, %283 : vector<1x512xi32>
    %c2_i32_85 = arith.constant 2 : i32
    %285 = vector.broadcast %c2_i32_85 : i32 to vector<1x512xi32>
    %286 = arith.cmpi sge, %6, %285 : vector<1x512xi32>
    %287 = arith.andi %284, %286 : vector<1x512xi1>
    %288 = vector.shape_cast %287 : vector<1x512xi1> to vector<1x512xi1>
    %289 = vector.broadcast %288 : vector<1x512xi1> to vector<8x512xi1>
    %cst_86 = arith.constant -1.000000e+30 : f32
    %290 = vector.broadcast %cst_86 : f32 to vector<8x512xf32>
    %291 = arith.select %289, %282, %290 : vector<8x512xi1>, vector<8x512xf32>
    %292 = arith.maximumf %281, %291 : vector<8x512xf32>
    %c60_i32 = arith.constant 60 : i32
    %293 = tpu.dynamic_rotate %292 by %c60_i32 dim 1 : vector<8x512xf32>, i32 -> vector<8x512xf32>
    %c12_i32_87 = arith.constant 12 : i32
    %294 = vector.broadcast %c12_i32_87 : i32 to vector<1x512xi32>
    %295 = arith.cmpi slt, %2, %294 : vector<1x512xi32>
    %c4_i32_88 = arith.constant 4 : i32
    %296 = vector.broadcast %c4_i32_88 : i32 to vector<1x512xi32>
    %297 = arith.cmpi sge, %6, %296 : vector<1x512xi32>
    %298 = arith.andi %295, %297 : vector<1x512xi1>
    %299 = vector.shape_cast %298 : vector<1x512xi1> to vector<1x512xi1>
    %300 = vector.broadcast %299 : vector<1x512xi1> to vector<8x512xi1>
    %cst_89 = arith.constant -1.000000e+30 : f32
    %301 = vector.broadcast %cst_89 : f32 to vector<8x512xf32>
    %302 = arith.select %300, %293, %301 : vector<8x512xi1>, vector<8x512xf32>
    %303 = arith.maximumf %292, %302 : vector<8x512xf32>
    %c120_i32 = arith.constant 120 : i32
    %304 = tpu.dynamic_rotate %303 by %c120_i32 dim 1 : vector<8x512xf32>, i32 -> vector<8x512xf32>
    %c8_i32_90 = arith.constant 8 : i32
    %305 = vector.broadcast %c8_i32_90 : i32 to vector<1x512xi32>
    %306 = arith.cmpi slt, %2, %305 : vector<1x512xi32>
    %c8_i32_91 = arith.constant 8 : i32
    %307 = vector.broadcast %c8_i32_91 : i32 to vector<1x512xi32>
    %308 = arith.cmpi sge, %6, %307 : vector<1x512xi32>
    %309 = arith.andi %306, %308 : vector<1x512xi1>
    %310 = vector.shape_cast %309 : vector<1x512xi1> to vector<1x512xi1>
    %311 = vector.broadcast %310 : vector<1x512xi1> to vector<8x512xi1>
    %cst_92 = arith.constant -1.000000e+30 : f32
    %312 = vector.broadcast %cst_92 : f32 to vector<8x512xf32>
    %313 = arith.select %311, %304, %312 : vector<8x512xi1>, vector<8x512xf32>
    %314 = arith.maximumf %303, %313 : vector<8x512xf32>
    %c497_i32_93 = arith.constant 497 : i32
    %315 = tpu.dynamic_rotate %277 by %c497_i32_93 dim 1 : vector<8x512xf32>, i32 -> vector<8x512xf32>
    %cst_94 = arith.constant -1.000000e+30 : f32
    %316 = vector.broadcast %cst_94 : f32 to vector<8x512xf32>
    %317 = arith.select %58, %315, %316 : vector<8x512xi1>, vector<8x512xf32>
    %318 = arith.maximumf %277, %317 : vector<8x512xf32>
    %c482_i32 = arith.constant 482 : i32
    %319 = tpu.dynamic_rotate %318 by %c482_i32 dim 1 : vector<8x512xf32>, i32 -> vector<8x512xf32>
    %c2_i32_95 = arith.constant 2 : i32
    %320 = vector.broadcast %c2_i32_95 : i32 to vector<1x512xi32>
    %321 = arith.cmpi sge, %2, %320 : vector<1x512xi32>
    %c14_i32_96 = arith.constant 14 : i32
    %322 = vector.broadcast %c14_i32_96 : i32 to vector<1x512xi32>
    %323 = arith.cmpi slt, %6, %322 : vector<1x512xi32>
    %324 = arith.andi %321, %323 : vector<1x512xi1>
    %325 = vector.shape_cast %324 : vector<1x512xi1> to vector<1x512xi1>
    %326 = vector.broadcast %325 : vector<1x512xi1> to vector<8x512xi1>
    %cst_97 = arith.constant -1.000000e+30 : f32
    %327 = vector.broadcast %cst_97 : f32 to vector<8x512xf32>
    %328 = arith.select %326, %319, %327 : vector<8x512xi1>, vector<8x512xf32>
    %329 = arith.maximumf %318, %328 : vector<8x512xf32>
    %c452_i32 = arith.constant 452 : i32
    %330 = tpu.dynamic_rotate %329 by %c452_i32 dim 1 : vector<8x512xf32>, i32 -> vector<8x512xf32>
    %c4_i32_98 = arith.constant 4 : i32
    %331 = vector.broadcast %c4_i32_98 : i32 to vector<1x512xi32>
    %332 = arith.cmpi sge, %2, %331 : vector<1x512xi32>
    %c12_i32_99 = arith.constant 12 : i32
    %333 = vector.broadcast %c12_i32_99 : i32 to vector<1x512xi32>
    %334 = arith.cmpi slt, %6, %333 : vector<1x512xi32>
    %335 = arith.andi %332, %334 : vector<1x512xi1>
    %336 = vector.shape_cast %335 : vector<1x512xi1> to vector<1x512xi1>
    %337 = vector.broadcast %336 : vector<1x512xi1> to vector<8x512xi1>
    %cst_100 = arith.constant -1.000000e+30 : f32
    %338 = vector.broadcast %cst_100 : f32 to vector<8x512xf32>
    %339 = arith.select %337, %330, %338 : vector<8x512xi1>, vector<8x512xf32>
    %340 = arith.maximumf %329, %339 : vector<8x512xf32>
    %c392_i32 = arith.constant 392 : i32
    %341 = tpu.dynamic_rotate %340 by %c392_i32 dim 1 : vector<8x512xf32>, i32 -> vector<8x512xf32>
    %c8_i32_101 = arith.constant 8 : i32
    %342 = vector.broadcast %c8_i32_101 : i32 to vector<1x512xi32>
    %343 = arith.cmpi sge, %2, %342 : vector<1x512xi32>
    %c8_i32_102 = arith.constant 8 : i32
    %344 = vector.broadcast %c8_i32_102 : i32 to vector<1x512xi32>
    %345 = arith.cmpi slt, %6, %344 : vector<1x512xi32>
    %346 = arith.andi %343, %345 : vector<1x512xi1>
    %347 = vector.shape_cast %346 : vector<1x512xi1> to vector<1x512xi1>
    %348 = vector.broadcast %347 : vector<1x512xi1> to vector<8x512xi1>
    %cst_103 = arith.constant -1.000000e+30 : f32
    %349 = vector.broadcast %cst_103 : f32 to vector<8x512xf32>
    %350 = arith.select %348, %341, %349 : vector<8x512xi1>, vector<8x512xf32>
    %351 = arith.maximumf %340, %350 : vector<8x512xf32>
    %352 = arith.maximumf %314, %351 : vector<8x512xf32>
    %353 = tpu.concatenate %142, %200, %276, %352 in 0 : vector<8x512xf32>, vector<8x512xf32>, vector<8x512xf32>, vector<8x512xf32> -> vector<32x512xf32>
    %c17_i32_104 = arith.constant 17 : i32
    %354 = tpu.dynamic_rotate %353 by %c17_i32_104 dim 1 : vector<32x512xf32>, i32 -> vector<32x512xf32>
    %355 = vector.shape_cast %15 : vector<1x512xi1> to vector<1x512xi1>
    %356 = vector.broadcast %355 : vector<1x512xi1> to vector<32x512xi1>
    %cst_105 = arith.constant 0.000000e+00 : f32
    %357 = vector.broadcast %cst_105 : f32 to vector<32x512xf32>
    %358 = arith.select %356, %354, %357 : vector<32x512xi1>, vector<32x512xf32>
    %c16_i32_106 = arith.constant 16 : i32
    %359 = tpu.dynamic_rotate %353 by %c16_i32_106 dim 1 : vector<32x512xf32>, i32 -> vector<32x512xf32>
    %360 = vector.shape_cast %22 : vector<1x512xi1> to vector<1x512xi1>
    %361 = vector.broadcast %360 : vector<1x512xi1> to vector<32x512xi1>
    %cst_107 = arith.constant 0.000000e+00 : f32
    %362 = vector.broadcast %cst_107 : f32 to vector<32x512xf32>
    %363 = arith.select %361, %359, %362 : vector<32x512xi1>, vector<32x512xf32>
    %c15_i32_108 = arith.constant 15 : i32
    %364 = tpu.dynamic_rotate %353 by %c15_i32_108 dim 1 : vector<32x512xf32>, i32 -> vector<32x512xf32>
    %365 = vector.shape_cast %32 : vector<1x512xi1> to vector<1x512xi1>
    %366 = vector.broadcast %365 : vector<1x512xi1> to vector<32x512xi1>
    %cst_109 = arith.constant 0.000000e+00 : f32
    %367 = vector.broadcast %cst_109 : f32 to vector<32x512xf32>
    %368 = arith.select %366, %364, %367 : vector<32x512xi1>, vector<32x512xf32>
    %c1_i32_110 = arith.constant 1 : i32
    %369 = tpu.dynamic_rotate %353 by %c1_i32_110 dim 1 : vector<32x512xf32>, i32 -> vector<32x512xf32>
    %370 = vector.shape_cast %39 : vector<1x512xi1> to vector<1x512xi1>
    %371 = vector.broadcast %370 : vector<1x512xi1> to vector<32x512xi1>
    %cst_111 = arith.constant 0.000000e+00 : f32
    %372 = vector.broadcast %cst_111 : f32 to vector<32x512xf32>
    %373 = arith.select %371, %369, %372 : vector<32x512xi1>, vector<32x512xf32>
    %c511_i32_112 = arith.constant 511 : i32
    %374 = tpu.dynamic_rotate %353 by %c511_i32_112 dim 1 : vector<32x512xf32>, i32 -> vector<32x512xf32>
    %375 = vector.shape_cast %46 : vector<1x512xi1> to vector<1x512xi1>
    %376 = vector.broadcast %375 : vector<1x512xi1> to vector<32x512xi1>
    %cst_113 = arith.constant 0.000000e+00 : f32
    %377 = vector.broadcast %cst_113 : f32 to vector<32x512xf32>
    %378 = arith.select %376, %374, %377 : vector<32x512xi1>, vector<32x512xf32>
    %c497_i32_114 = arith.constant 497 : i32
    %379 = tpu.dynamic_rotate %353 by %c497_i32_114 dim 1 : vector<32x512xf32>, i32 -> vector<32x512xf32>
    %380 = vector.shape_cast %56 : vector<1x512xi1> to vector<1x512xi1>
    %381 = vector.broadcast %380 : vector<1x512xi1> to vector<32x512xi1>
    %cst_115 = arith.constant 0.000000e+00 : f32
    %382 = vector.broadcast %cst_115 : f32 to vector<32x512xf32>
    %383 = arith.select %381, %379, %382 : vector<32x512xi1>, vector<32x512xf32>
    %c496_i32_116 = arith.constant 496 : i32
    %384 = tpu.dynamic_rotate %353 by %c496_i32_116 dim 1 : vector<32x512xf32>, i32 -> vector<32x512xf32>
    %385 = vector.shape_cast %63 : vector<1x512xi1> to vector<1x512xi1>
    %386 = vector.broadcast %385 : vector<1x512xi1> to vector<32x512xi1>
    %cst_117 = arith.constant 0.000000e+00 : f32
    %387 = vector.broadcast %cst_117 : f32 to vector<32x512xf32>
    %388 = arith.select %386, %384, %387 : vector<32x512xi1>, vector<32x512xf32>
    %c495_i32_118 = arith.constant 495 : i32
    %389 = tpu.dynamic_rotate %353 by %c495_i32_118 dim 1 : vector<32x512xf32>, i32 -> vector<32x512xf32>
    %390 = vector.shape_cast %73 : vector<1x512xi1> to vector<1x512xi1>
    %391 = vector.broadcast %390 : vector<1x512xi1> to vector<32x512xi1>
    %cst_119 = arith.constant 0.000000e+00 : f32
    %392 = vector.broadcast %cst_119 : f32 to vector<32x512xf32>
    %393 = arith.select %391, %389, %392 : vector<32x512xi1>, vector<32x512xf32>
    %394 = tpu.concatenate %358, %363, %368, %373, %353, %378, %383, %388, %393 in 0 : vector<32x512xf32>, vector<32x512xf32>, vector<32x512xf32>, vector<32x512xf32>, vector<32x512xf32>, vector<32x512xf32>, vector<32x512xf32>, vector<32x512xf32>, vector<32x512xf32> -> vector<288x512xf32>
    %395 = tpu.concatenate %394, %8 in 0 : vector<288x512xf32>, vector<8x512xf32> -> vector<296x512xf32>
    %c0_120 = arith.constant 0 : index
    %c0_121 = arith.constant 0 : index
    %396 = vector.load %arg4[%c0_120, %c0_121] : memref<8x296xf32, #tpu.memory_space<vmem>>, vector<8x296xf32>
    %cst_122 = arith.constant dense<0.000000e+00> : vector<8x512xf32>
    %397 = tpu.matmul %396, %395, %cst_122 {dimension_numbers = #tpu.dot_dimension_numbers<[1], [0], [0], [1], [0, 0, 1, 1], [], []>} : vector<8x296xf32>, vector<296x512xf32>, vector<8x512xf32> -> vector<8x512xf32>
    %c0_123 = arith.constant 0 : index
    %c0_124 = arith.constant 0 : index
    %398 = vector.load %arg5[%c0_123, %c0_124] : memref<8x1xf32, #tpu.memory_space<vmem>>, vector<8x1xf32>
    %399 = vector.broadcast %398 : vector<8x1xf32> to vector<8x512xf32>
    %400 = arith.addf %397, %399 : vector<8x512xf32>
    %cst_125 = arith.constant 0.000000e+00 : f32
    %401 = vector.broadcast %cst_125 : f32 to vector<8x512xf32>
    %402 = arith.maximumf %400, %401 : vector<8x512xf32>
    %c0_126 = arith.constant 0 : index
    %c0_127 = arith.constant 0 : index
    %403 = vector.load %arg6[%c0_126, %c0_127] : memref<8x72xf32, #tpu.memory_space<vmem>>, vector<8x72xf32>
    %c17_i32_128 = arith.constant 17 : i32
    %404 = tpu.dynamic_rotate %402 by %c17_i32_128 dim 1 : vector<8x512xf32>, i32 -> vector<8x512xf32>
    %cst_129 = arith.constant 0.000000e+00 : f32
    %405 = vector.broadcast %cst_129 : f32 to vector<8x512xf32>
    %406 = arith.select %17, %404, %405 : vector<8x512xi1>, vector<8x512xf32>
    %c16_i32_130 = arith.constant 16 : i32
    %407 = tpu.dynamic_rotate %402 by %c16_i32_130 dim 1 : vector<8x512xf32>, i32 -> vector<8x512xf32>
    %cst_131 = arith.constant 0.000000e+00 : f32
    %408 = vector.broadcast %cst_131 : f32 to vector<8x512xf32>
    %409 = arith.select %24, %407, %408 : vector<8x512xi1>, vector<8x512xf32>
    %c15_i32_132 = arith.constant 15 : i32
    %410 = tpu.dynamic_rotate %402 by %c15_i32_132 dim 1 : vector<8x512xf32>, i32 -> vector<8x512xf32>
    %cst_133 = arith.constant 0.000000e+00 : f32
    %411 = vector.broadcast %cst_133 : f32 to vector<8x512xf32>
    %412 = arith.select %34, %410, %411 : vector<8x512xi1>, vector<8x512xf32>
    %c1_i32_134 = arith.constant 1 : i32
    %413 = tpu.dynamic_rotate %402 by %c1_i32_134 dim 1 : vector<8x512xf32>, i32 -> vector<8x512xf32>
    %cst_135 = arith.constant 0.000000e+00 : f32
    %414 = vector.broadcast %cst_135 : f32 to vector<8x512xf32>
    %415 = arith.select %41, %413, %414 : vector<8x512xi1>, vector<8x512xf32>
    %c511_i32_136 = arith.constant 511 : i32
    %416 = tpu.dynamic_rotate %402 by %c511_i32_136 dim 1 : vector<8x512xf32>, i32 -> vector<8x512xf32>
    %cst_137 = arith.constant 0.000000e+00 : f32
    %417 = vector.broadcast %cst_137 : f32 to vector<8x512xf32>
    %418 = arith.select %48, %416, %417 : vector<8x512xi1>, vector<8x512xf32>
    %c497_i32_138 = arith.constant 497 : i32
    %419 = tpu.dynamic_rotate %402 by %c497_i32_138 dim 1 : vector<8x512xf32>, i32 -> vector<8x512xf32>
    %cst_139 = arith.constant 0.000000e+00 : f32
    %420 = vector.broadcast %cst_139 : f32 to vector<8x512xf32>
    %421 = arith.select %58, %419, %420 : vector<8x512xi1>, vector<8x512xf32>
    %c496_i32_140 = arith.constant 496 : i32
    %422 = tpu.dynamic_rotate %402 by %c496_i32_140 dim 1 : vector<8x512xf32>, i32 -> vector<8x512xf32>
    %cst_141 = arith.constant 0.000000e+00 : f32
    %423 = vector.broadcast %cst_141 : f32 to vector<8x512xf32>
    %424 = arith.select %65, %422, %423 : vector<8x512xi1>, vector<8x512xf32>
    %c495_i32_142 = arith.constant 495 : i32
    %425 = tpu.dynamic_rotate %402 by %c495_i32_142 dim 1 : vector<8x512xf32>, i32 -> vector<8x512xf32>
    %cst_143 = arith.constant 0.000000e+00 : f32
    %426 = vector.broadcast %cst_143 : f32 to vector<8x512xf32>
    %427 = arith.select %75, %425, %426 : vector<8x512xi1>, vector<8x512xf32>
    %428 = tpu.concatenate %406, %409, %412, %415, %402, %418, %421, %424, %427 in 0 : vector<8x512xf32>, vector<8x512xf32>, vector<8x512xf32>, vector<8x512xf32>, vector<8x512xf32>, vector<8x512xf32>, vector<8x512xf32>, vector<8x512xf32>, vector<8x512xf32> -> vector<72x512xf32>
    %cst_144 = arith.constant dense<0.000000e+00> : vector<8x512xf32>
    %429 = tpu.matmul %403, %428, %cst_144 {dimension_numbers = #tpu.dot_dimension_numbers<[1], [0], [0], [1], [0, 0, 1, 1], [], []>} : vector<8x72xf32>, vector<72x512xf32>, vector<8x512xf32> -> vector<8x512xf32>
    %c0_145 = arith.constant 0 : index
    %c0_146 = arith.constant 0 : index
    %430 = vector.load %arg7[%c0_145, %c0_146] : memref<8x1xf32, #tpu.memory_space<vmem>>, vector<8x1xf32>
    %431 = vector.broadcast %430 : vector<8x1xf32> to vector<8x512xf32>
    %432 = arith.addf %429, %431 : vector<8x512xf32>
    %cst_147 = arith.constant 0.000000e+00 : f32
    %433 = vector.broadcast %cst_147 : f32 to vector<8x512xf32>
    %434 = arith.maximumf %432, %433 : vector<8x512xf32>
    %c0_148 = arith.constant 0 : index
    %c0_149 = arith.constant 0 : index
    %c0_150 = arith.constant 0 : index
    %435 = vector.load %arg8[%c0_148, %c0_149, %c0_150] : memref<1x8x512xf32, #tpu.memory_space<vmem>>, vector<1x8x512xf32>
    %436 = vector.shape_cast %435 : vector<1x8x512xf32> to vector<8x512xf32>
    %437 = vector.shape_cast %434 : vector<8x512xf32> to vector<1x8x512xf32>
    tpu.vector_store %arg8[%c0_148, %c0_149, %c0_150], %437 {strides = array<i32>} : memref<1x8x512xf32, #tpu.memory_space<vmem>>, vector<1x8x512xf32>,
    return
  }
  func.func @transform_0(%arg0: i32) -> (i32, i32, i32) {
    %c0_i32 = arith.constant 0 : i32
    %c0_i32_0 = arith.constant 0 : i32
    %c0_i32_1 = arith.constant 0 : i32
    return %arg0, %c0_i32, %c0_i32_0 : i32, i32, i32
  }
  func.func @transform_1(%arg0: i32) -> (i32, i32) {
    %c0_i32 = arith.constant 0 : i32
    %c0_i32_0 = arith.constant 0 : i32
    %c0_i32_1 = arith.constant 0 : i32
    return %c0_i32, %c0_i32_0 : i32, i32
  }
  func.func @transform_2(%arg0: i32) -> (i32, i32) {
    %c0_i32 = arith.constant 0 : i32
    %c0_i32_0 = arith.constant 0 : i32
    %c0_i32_1 = arith.constant 0 : i32
    return %c0_i32, %c0_i32_0 : i32, i32
  }
  func.func @transform_3(%arg0: i32) -> (i32, i32) {
    %c0_i32 = arith.constant 0 : i32
    %c0_i32_0 = arith.constant 0 : i32
    %c0_i32_1 = arith.constant 0 : i32
    return %c0_i32, %c0_i32_0 : i32, i32
  }
  func.func @transform_4(%arg0: i32) -> (i32, i32) {
    %c0_i32 = arith.constant 0 : i32
    %c0_i32_0 = arith.constant 0 : i32
    %c0_i32_1 = arith.constant 0 : i32
    return %c0_i32, %c0_i32_0 : i32, i32
  }
  func.func @transform_5(%arg0: i32) -> (i32, i32) {
    %c0_i32 = arith.constant 0 : i32
    %c0_i32_0 = arith.constant 0 : i32
    %c0_i32_1 = arith.constant 0 : i32
    return %c0_i32, %c0_i32_0 : i32, i32
  }
  func.func @transform_6(%arg0: i32) -> (i32, i32) {
    %c0_i32 = arith.constant 0 : i32
    %c0_i32_0 = arith.constant 0 : i32
    %c0_i32_1 = arith.constant 0 : i32
    return %c0_i32, %c0_i32_0 : i32, i32
  }
  func.func @transform_7(%arg0: i32) -> (i32, i32, i32) {
    %c0_i32 = arith.constant 0 : i32
    %c0_i32_0 = arith.constant 0 : i32
    %c0_i32_1 = arith.constant 0 : i32
    return %arg0, %c0_i32, %c0_i32_0 : i32, i32, i32
  }
}

</mosaic_0001>

<llo_original>
// kernel: landmark_p4x_forward.1
$region0: #{landmark_p4x_forward.1}
  #allocation0 [shape = 'u32[]', space=smem, size = 0x4, offset = 0x4, fixed_abs, tag = 'smem constant byte address 0x4 - core index']
  #allocation1 [shape = 'u32[144,128]{1,0:T(1,128)}', space=vmem, size = 0x12000, scoped, tag = 'internal scratch']
  %s0 = inlined_call_operand.vmem [shape: f32[2,8,512], index: 0, kind: input, shape index: {}]
  %s1 = inlined_call_operand.vmem [shape: f32[32,72], index: 1, kind: input, shape index: {}]
  %s2 = inlined_call_operand.vmem [shape: f32[32,1], index: 2, kind: input, shape index: {}]
  %s3 = inlined_call_operand.vmem [shape: f32[8,296], index: 3, kind: input, shape index: {}]
  %s4 = inlined_call_operand.vmem [shape: f32[8,1], index: 4, kind: input, shape index: {}]
  %s5 = inlined_call_operand.vmem [shape: f32[8,72], index: 5, kind: input, shape index: {}]
  %s6 = inlined_call_operand.vmem [shape: f32[8,1], index: 6, kind: input, shape index: {}]
  %s7 = inlined_call_operand.vmem [shape: f32[2,8,512], index: 7, kind: output, shape index: {}]
  %s8 = sld [smem:[#allocation0]]
  $region61: #{landmark_p4x_forward.1} parent=0
    _
  %s10 = ssub.s32 1, %s8
  %s11 = scalar_select 0, %s10, %s8
  loop: start=0, step=1, limit=4
  $region2: #{landmark_p4x_forward.1} parent=0 // loop_pre_header
    _
  $region3: #{landmark_p4x_forward.1} parent=0 // loop_header
    %s13 = sphi 0, %s17
    %p14 = scmp.ge.s32.totalorder %s13, 4
    %s23 = sphi 0, %s25
    %s26 = sphi 0, %s23
    %s27 = sphi 0, %s26
    %s43 = sphi 0, %s27
    %s47 = sphi 0, %s47
    %s49 = sphi 0, %s47
    %s50 = sphi 0, %s49
    %s64 = sphi 0, %s50
    %s68 = sphi 0, %s68
    %s70 = sphi 0, %s68
    %s71 = sphi 0, %s70
    %s85 = sphi 0, %s71
    %s89 = sphi 0, %s89
    %s91 = sphi 0, %s89
    %s92 = sphi 0, %s91
    %s106 = sphi 0, %s92
    %s110 = sphi 0, %s110
    %s112 = sphi 0, %s110
    %s113 = sphi 0, %s112
    %s127 = sphi 0, %s113
    %s131 = sphi 0, %s131
    %s133 = sphi 0, %s131
    %s134 = sphi 0, %s133
    %s148 = sphi 0, %s134
    %s152 = sphi 0, %s152
    %s154 = sphi 0, %s152
    %s155 = sphi 0, %s154
    %s169 = sphi 0, %s155
    %s175 = sphi 0, %s177
    %s178 = sphi 0, %s175
    %s179 = sphi 0, %s178
    %s195 = sphi 0, %s179
  $region4: #{landmark_p4x_forward.1} parent=0 // loop_header_branch
    %16 = sbr.rel (%p14) target = $region8
  $region5: #{landmark_p4x_forward.1} parent=0 // loop_body
    %s18 = ssub.s32 %s13, 1
    %s19 = ssub.s32 %s13, 2
    %s20 = sadd.s32 %s13, 1
    %s21 = ssub.s32 %s13, %s20
    %p22 = scmp.eq.s32.totalorder %s21, 0
    %s24 = sadd.s32 %s23, 1
    %s25 = scalar_select %p22, %s23, %s24
    %p28 = pneg %p22
    %p29 = scmp.eq.s32.totalorder %s13, 1
    %p30 = por %p28, %p29
    %p31 = scmp.ne.s32.totalorder %s23, %s26
    %p32 = scmp.eq.s32.totalorder %s13, 0
    %p33 = por %p31, %p32
    %p34 = scmp.ne.s32.totalorder %s23, %s26
    %p35 = scmp.eq.s32.totalorder %s18, 1
    %p36 = por %p34, %p35
    %p37 = scmp.ne.s32.totalorder %s26, %s27
    %p38 = scmp.eq.s32.totalorder %s18, 0
    %p39 = por %p37, %p38
    %p40 = scmp.ne.s32.totalorder %s26, %s27
    %p41 = scmp.eq.s32.totalorder %s19, 1
    %p42 = por %p40, %p41
    %p44 = scmp.ne.s32.totalorder %s27, %s43
    %p45 = scmp.eq.s32.totalorder %s19, 0
    %p46 = por %p44, %p45
    %s48 = sadd.s32 %s47, 1
    %p51 = scmp.eq.s32.totalorder %s13, 1
    %p52 = scmp.ne.s32.totalorder %s47, %s49
    %p53 = scmp.eq.s32.totalorder %s13, 0
    %p54 = por %p52, %p53
    %p55 = scmp.ne.s32.totalorder %s47, %s49
    %p56 = scmp.eq.s32.totalorder %s18, 1
    %p57 = por %p55, %p56
    %p58 = scmp.ne.s32.totalorder %s49, %s50
    %p59 = scmp.eq.s32.totalorder %s18, 0
    %p60 = por %p58, %p59
    %p61 = scmp.ne.s32.totalorder %s49, %s50
    %p62 = scmp.eq.s32.totalorder %s19, 1
    %p63 = por %p61, %p62
    %p65 = scmp.ne.s32.totalorder %s50, %s64
    %p66 = scmp.eq.s32.totalorder %s19, 0
    %p67 = por %p65, %p66
    %s69 = sadd.s32 %s68, 1
    %p72 = scmp.eq.s32.totalorder %s13, 1
    %p73 = scmp.ne.s32.totalorder %s68, %s70
    %p74 = scmp.eq.s32.totalorder %s13, 0
    %p75 = por %p73, %p74
    %p76 = scmp.ne.s32.totalorder %s68, %s70
    %p77 = scmp.eq.s32.totalorder %s18, 1
    %p78 = por %p76, %p77
    %p79 = scmp.ne.s32.totalorder %s70, %s71
    %p80 = scmp.eq.s32.totalorder %s18, 0
    %p81 = por %p79, %p80
    %p82 = scmp.ne.s32.totalorder %s70, %s71
    %p83 = scmp.eq.s32.totalorder %s19, 1
    %p84 = por %p82, %p83
    %p86 = scmp.ne.s32.totalorder %s71, %s85
    %p87 = scmp.eq.s32.totalorder %s19, 0
    %p88 = por %p86, %p87
    %s90 = sadd.s32 %s89, 1
    %p93 = scmp.eq.s32.totalorder %s13, 1
    %p94 = scmp.ne.s32.totalorder %s89, %s91
    %p95 = scmp.eq.s32.totalorder %s13, 0
    %p96 = por %p94, %p95
    %p97 = scmp.ne.s32.totalorder %s89, %s91
    %p98 = scmp.eq.s32.totalorder %s18, 1
    %p99 = por %p97, %p98
    %p100 = scmp.ne.s32.totalorder %s91, %s92
    %p101 = scmp.eq.s32.totalorder %s18, 0
    %p102 = por %p100, %p101
    %p103 = scmp.ne.s32.totalorder %s91, %s92
    %p104 = scmp.eq.s32.totalorder %s19, 1
    %p105 = por %p103, %p104
    %p107 = scmp.ne.s32.totalorder %s92, %s106
    %p108 = scmp.eq.s32.totalorder %s19, 0
    %p109 = por %p107, %p108
    %s111 = sadd.s32 %s110, 1
    %p114 = scmp.eq.s32.totalorder %s13, 1
    %p115 = scmp.ne.s32.totalorder %s110, %s112
    %p116 = scmp.eq.s32.totalorder %s13, 0
    %p117 = por %p115, %p116
    %p118 = scmp.ne.s32.totalorder %s110, %s112
    %p119 = scmp.eq.s32.totalorder %s18, 1
    %p120 = por %p118, %p119
    %p121 = scmp.ne.s32.totalorder %s112, %s113
    %p122 = scmp.eq.s32.totalorder %s18, 0
    %p123 = por %p121, %p122
    %p124 = scmp.ne.s32.totalorder %s112, %s113
    %p125 = scmp.eq.s32.totalorder %s19, 1
    %p126 = por %p124, %p125
    %p128 = scmp.ne.s32.totalorder %s113, %s127
    %p129 = scmp.eq.s32.totalorder %s19, 0
    %p130 = por %p128, %p129
    %s132 = sadd.s32 %s131, 1
    %p135 = scmp.eq.s32.totalorder %s13, 1
    %p136 = scmp.ne.s32.totalorder %s131, %s133
    %p137 = scmp.eq.s32.totalorder %s13, 0
    %p138 = por %p136, %p137
    %p139 = scmp.ne.s32.totalorder %s131, %s133
    %p140 = scmp.eq.s32.totalorder %s18, 1
    %p141 = por %p139, %p140
    %p142 = scmp.ne.s32.totalorder %s133, %s134
    %p143 = scmp.eq.s32.totalorder %s18, 0
    %p144 = por %p142, %p143
    %p145 = scmp.ne.s32.totalorder %s133, %s134
    %p146 = scmp.eq.s32.totalorder %s19, 1
    %p147 = por %p145, %p146
    %p149 = scmp.ne.s32.totalorder %s134, %s148
    %p150 = scmp.eq.s32.totalorder %s19, 0
    %p151 = por %p149, %p150
    %s153 = sadd.s32 %s152, 1
    %p156 = scmp.eq.s32.totalorder %s13, 1
    %p157 = scmp.ne.s32.totalorder %s152, %s154
    %p158 = scmp.eq.s32.totalorder %s13, 0
    %p159 = por %p157, %p158
    %p160 = scmp.ne.s32.totalorder %s152, %s154
    %p161 = scmp.eq.s32.totalorder %s18, 1
    %p162 = por %p160, %p161
    %p163 = scmp.ne.s32.totalorder %s154, %s155
    %p164 = scmp.eq.s32.totalorder %s18, 0
    %p165 = por %p163, %p164
    %p166 = scmp.ne.s32.totalorder %s154, %s155
    %p167 = scmp.eq.s32.totalorder %s19, 1
    %p168 = por %p166, %p167
    %p170 = scmp.ne.s32.totalorder %s155, %s169
    %p171 = scmp.eq.s32.totalorder %s19, 0
    %p172 = por %p170, %p171
    %s173 = ssub.s32 %s13, %s20
    %p174 = scmp.eq.s32.totalorder %s173, 0
    %s176 = sadd.s32 %s175, 1
    %s177 = scalar_select %p174, %s175, %s176
    %p180 = pneg %p174
    %p181 = scmp.eq.s32.totalorder %s13, 1
    %p182 = por %p180, %p181
    %p183 = scmp.ne.s32.totalorder %s175, %s178
    %p184 = scmp.eq.s32.totalorder %s13, 0
    %p185 = por %p183, %p184
    %p186 = scmp.ne.s32.totalorder %s175, %s178
    %p187 = scmp.eq.s32.totalorder %s18, 1
    %p188 = por %p186, %p187
    %p189 = scmp.ne.s32.totalorder %s178, %s179
    %p190 = scmp.eq.s32.totalorder %s18, 0
    %p191 = por %p189, %p190
    %p192 = scmp.ne.s32.totalorder %s178, %s179
    %p193 = scmp.eq.s32.totalorder %s19, 1
    %p194 = por %p192, %p193
    %p196 = scmp.ne.s32.totalorder %s179, %s195
    %p197 = scmp.eq.s32.totalorder %s19, 0
    %p198 = por %p196, %p197
    %p199 = scmp.le.s32.totalorder 1, %s13
    %p200 = scmp.lt.s32.totalorder %s13, 3
    %p201 = pnand %p199, %p200
    %p202 = pneg %p201
    // Predicated region
    $region9: #{landmark_p4x_forward.1} parent=5 // pred_check
      _
    $region10: #{landmark_p4x_forward.1} parent=5 // pred_check_branch
      %204 = sbr.rel (%p201) target = $region12
    $region11: #{landmark_p4x_forward.1} parent=5 // pred_region
      %s205 = ssub.s32 %s13, 1
      // Predicated region
      $region13: #{landmark_p4x_forward.1} parent=11 // pred_check
        %p206 = pneg %p60
      $region14: #{landmark_p4x_forward.1} parent=11 // pred_check_branch
        %208 = sbr.rel (%p206) target = $region16
      $region15: #{landmark_p4x_forward.1} parent=11 // pred_region
        _
      $region16: #{landmark_p4x_forward.1} parent=11 // pred_fallthru
        _
      // Predicated region
      $region17: #{landmark_p4x_forward.1} parent=11 // pred_check
        %p209 = pneg %p81
      $region18: #{landmark_p4x_forward.1} parent=11 // pred_check_branch
        %211 = sbr.rel (%p209) target = $region20
      $region19: #{landmark_p4x_forward.1} parent=11 // pred_region
        _
      $region20: #{landmark_p4x_forward.1} parent=11 // pred_fallthru
        _
      // Predicated region
      $region21: #{landmark_p4x_forward.1} parent=11 // pred_check
        %p212 = pneg %p102
      $region22: #{landmark_p4x_forward.1} parent=11 // pred_check_branch
        %214 = sbr.rel (%p212) target = $region24
      $region23: #{landmark_p4x_forward.1} parent=11 // pred_region
        _
      $region24: #{landmark_p4x_forward.1} parent=11 // pred_fallthru
        _
      // Predicated region
      $region25: #{landmark_p4x_forward.1} parent=11 // pred_check
        %p215 = pneg %p123
      $region26: #{landmark_p4x_forward.1} parent=11 // pred_check_branch
        %217 = sbr.rel (%p215) target = $region28
      $region27: #{landmark_p4x_forward.1} parent=11 // pred_region
        _
      $region28: #{landmark_p4x_forward.1} parent=11 // pred_fallthru
        _
      // Predicated region
      $region29: #{landmark_p4x_forward.1} parent=11 // pred_check
        %p218 = pneg %p144
      $region30: #{landmark_p4x_forward.1} parent=11 // pred_check_branch
        %220 = sbr.rel (%p218) target = $region32
      $region31: #{landmark_p4x_forward.1} parent=11 // pred_region
        _
      $region32: #{landmark_p4x_forward.1} parent=11 // pred_fallthru
        _
      // Predicated region
      $region33: #{landmark_p4x_forward.1} parent=11 // pred_check
        %p221 = pneg %p165
      $region34: #{landmark_p4x_forward.1} parent=11 // pred_check_branch
        %223 = sbr.rel (%p221) target = $region36
      $region35: #{landmark_p4x_forward.1} parent=11 // pred_region
        _
      $region36: #{landmark_p4x_forward.1} parent=11 // pred_fallthru
        _
    $region12: #{landmark_p4x_forward.1} parent=5 // pred_fallthru
      _
    %p224 = scmp.lt.s32.totalorder %s13, 2
    // Predicated region
    $region37: #{landmark_p4x_forward.1} parent=5 // pred_check
      %p225 = pneg %p224
    $region38: #{landmark_p4x_forward.1} parent=5 // pred_check_branch
      %227 = sbr.rel (%p225) target = $region40
    $region39: #{landmark_p4x_forward.1} parent=5 // pred_region
      // Predicated region
      $region41: #{landmark_p4x_forward.1} parent=39 // pred_check
        %p228 = pneg %p33
      $region42: #{landmark_p4x_forward.1} parent=39 // pred_check_branch
        %230 = sbr.rel (%p228) target = $region44
      $region43: #{landmark_p4x_forward.1} parent=39 // pred_region
        %p231 = scmp.lt.s32.totalorder %s13, 1
        %s232 = scalar_select %p231, %s13, 1
        %s233 = smul.addr %s232, 4
        %s234 = smul.addr %s233, 8
        %s235 = scalar_lea.vmem %s0, %s234
      $region44: #{landmark_p4x_forward.1} parent=39 // pred_fallthru
        _
    $region40: #{landmark_p4x_forward.1} parent=5 // pred_fallthru
      _
    %p236 = scmp.le.s32.totalorder 1, %s13
    %p237 = scmp.lt.s32.totalorder %s13, 3
    %p238 = pnand %p236, %p237
    %p239 = pneg %p238
    // Predicated region
    $region45: #{landmark_p4x_forward.1} parent=5 // pred_check
      _
    $region46: #{landmark_p4x_forward.1} parent=5 // pred_check_branch
      %241 = sbr.rel (%p238) target = $region48
    $region47: #{landmark_p4x_forward.1} parent=5 // pred_region
      %s242 = ssub.s32 %s13, 1
      %p243 = scmp.lt.s32.totalorder %s18, 1
      %s244 = scalar_select %p243, %s18, 1
      %s245 = smul.addr %s244, 4
      %s246 = smul.addr %s245, 8
      %s247 = scalar_lea.vmem %s0, %s246
      %p248 = pneg %p39
      %p249 = pneg %p36
      %p250 = pneg %p60
      %p251 = pneg %p57
      %p252 = pneg %p81
      %p253 = pneg %p78
      %p254 = pneg %p102
      %p255 = pneg %p99
      %p256 = pneg %p123
      %p257 = pneg %p120
      %p258 = pneg %p144
      %p259 = pneg %p141
      %p260 = pneg %p165
      %p261 = pneg %p162
      %p262 = pneg %p191
      %p263 = pneg %p188
      %p264 = scmp.lt.s32.totalorder %s18, 1
      %s265 = scalar_select %p264, %s18, 1
      %s266 = smul.addr %s265, 4
      %s267 = smul.addr %s266, 8
      %s268 = scalar_lea.vmem %s7, %s267
      %p269 = scmp.lt.s32.totalorder %s18, 1
      %s270 = scalar_select %p269, %s18, 1
      %s271 = smul.addr %s270, 4
      %s272 = smul.addr %s271, 8
      %s273 = scalar_lea.vmem %s0, %s272
      %p274 = scmp.lt.s32.totalorder %s18, 1
      %s275 = scalar_select %p274, %s18, 1
      %s276 = smul.addr %s275, 4
      %s277 = smul.addr %s276, 8
      %s278 = scalar_lea.vmem %s7, %s277
      %v279 = vlaneseq
      %v280 = vand.u32 %v279, 127
      %v281 = vadd.s32 %v280, 128
      %v282 = vadd.s32 %v280, 256
      %v283 = vadd.s32 %v280, 384
      %v284 = vand.u32 %v280, 15
      %v285 = vand.u32 %v281, 15
      %v286 = vand.u32 %v282, 15
      %v287 = vand.u32 %v283, 15
      %v288 = vshra.s32 %v280, 4
      %v289 = vshra.s32 %v281, 4
      %v290 = vshra.s32 %v282, 4
      %v291 = vshra.s32 %v283, 4
      %v292 = vand.u32 %v288, 15
      %v293 = vand.u32 %v289, 15
      %v294 = vand.u32 %v290, 15
      %v295 = vand.u32 %v291, 15
      %v296 = vld [vmem:[%s273] sm:$0xff]
      %v297 = vld [vmem:[%s273 + $0x8] sm:$0xff]
      %v298 = vld [vmem:[%s273 + $0x10] sm:$0xff]
      %v299 = vld [vmem:[%s273 + $0x18] sm:$0xff]
      %v300 = vld [vmem:[%s1] sm:$0xff]
      %v301 = vld [vmem:[%s1 + $0x8] sm:$0xff]
      %v302 = vld [vmem:[%s1 + $0x10] sm:$0xff]
      %v303 = vld [vmem:[%s1 + $0x18] sm:$0xff]
      %304 = vrot.lane.b32.xlu0 %v296, 17
      %v305 = vpop.permute.xlu0 %304
      %306 = vrot.lane.b32.xlu0 %v297, 17
      %v307 = vpop.permute.xlu0 %306
      %308 = vrot.lane.b32.xlu0 %v298, 17
      %v309 = vpop.permute.xlu0 %308
      %310 = vrot.lane.b32.xlu0 %v299, 17
      %v311 = vpop.permute.xlu0 %310
      %vm312 = vcmp.lt.s32.totalorder %v280, 17
      %v313 = vsel %vm312, %v309, %v311
      %v314 = vsel %vm312, %v307, %v309
      %v315 = vsel %vm312, %v305, %v307
      %v316 = vsel %vm312, %v311, %v305
      %vm317 = vcmp.ge.s32.totalorder %v284, 1
      %vm318 = vcmp.ge.s32.totalorder %v285, 1
      %vm319 = vcmp.ge.s32.totalorder %v286, 1
      %vm320 = vcmp.ge.s32.totalorder %v287, 1
      %vm321 = vcmp.ge.s32.totalorder %v292, 1
      %vm322 = vcmp.ge.s32.totalorder %v293, 1
      %vm323 = vcmp.ge.s32.totalorder %v294, 1
      %vm324 = vcmp.ge.s32.totalorder %v295, 1
      %vm325 = vmand %vm317, %vm321
      %vm326 = vmand %vm318, %vm322
      %vm327 = vmand %vm319, %vm323
      %vm328 = vmand %vm320, %vm324
      %v329 = vsel %vm325, 1, 0
      %v330 = vsel %vm326, 1, 0
      %v331 = vsel %vm327, 1, 0
      %v332 = vsel %vm328, 1, 0
      %vm333 = vcmp.eq.s32.totalorder %v329, 1
      %vm334 = vcmp.eq.s32.totalorder %v330, 1
      %vm335 = vcmp.eq.s32.totalorder %v331, 1
      %vm336 = vcmp.eq.s32.totalorder %v332, 1
      %v337 = vsel %vm333, %v316, 0.0
      %v338 = vsel %vm334, %v315, 0.0
      %v339 = vsel %vm335, %v314, 0.0
      %v340 = vsel %vm336, %v313, 0.0
      %341 = vrot.lane.b32.xlu0 %v296, 16
      %v342 = vpop.permute.xlu0 %341
      %343 = vrot.lane.b32.xlu0 %v297, 16
      %v344 = vpop.permute.xlu0 %343
      %345 = vrot.lane.b32.xlu0 %v298, 16
      %v346 = vpop.permute.xlu0 %345
      %347 = vrot.lane.b32.xlu0 %v299, 16
      %v348 = vpop.permute.xlu0 %347
      %vm349 = vcmp.lt.s32.totalorder %v280, 16
      %v350 = vsel %vm349, %v346, %v348
      %v351 = vsel %vm349, %v344, %v346
      %v352 = vsel %vm349, %v342, %v344
      %v353 = vsel %vm349, %v348, %v342
      %v354 = vsel %vm321, 1, 0
      %v355 = vsel %vm322, 1, 0
      %v356 = vsel %vm323, 1, 0
      %v357 = vsel %vm324, 1, 0
      %vm358 = vcmp.eq.s32.totalorder %v354, 1
      %vm359 = vcmp.eq.s32.totalorder %v355, 1
      %vm360 = vcmp.eq.s32.totalorder %v356, 1
      %vm361 = vcmp.eq.s32.totalorder %v357, 1
      %v362 = vsel %vm358, %v353, 0.0
      %v363 = vsel %vm359, %v352, 0.0
      %v364 = vsel %vm360, %v351, 0.0
      %v365 = vsel %vm361, %v350, 0.0
      %366 = vrot.lane.b32.xlu0 %v296, 15
      %v367 = vpop.permute.xlu0 %366
      %368 = vrot.lane.b32.xlu0 %v297, 15
      %v369 = vpop.permute.xlu0 %368
      %370 = vrot.lane.b32.xlu0 %v298, 15
      %v371 = vpop.permute.xlu0 %370
      %372 = vrot.lane.b32.xlu0 %v299, 15
      %v373 = vpop.permute.xlu0 %372
      %vm374 = vcmp.lt.s32.totalorder %v280, 15
      %v375 = vsel %vm374, %v371, %v373
      %v376 = vsel %vm374, %v369, %v371
      %v377 = vsel %vm374, %v367, %v369
      %v378 = vsel %vm374, %v373, %v367
      %vm379 = vcmp.lt.s32.totalorder %v284, 15
      %vm380 = vcmp.lt.s32.totalorder %v285, 15
      %vm381 = vcmp.lt.s32.totalorder %v286, 15
      %vm382 = vcmp.lt.s32.totalorder %v287, 15
      %vm383 = vmand %vm379, %vm321
      %vm384 = vmand %vm380, %vm322
      %vm385 = vmand %vm381, %vm323
      %vm386 = vmand %vm382, %vm324
      %v387 = vsel %vm383, 1, 0
      %v388 = vsel %vm384, 1, 0
      %v389 = vsel %vm385, 1, 0
      %v390 = vsel %vm386, 1, 0
      %vm391 = vcmp.eq.s32.totalorder %v387, 1
      %vm392 = vcmp.eq.s32.totalorder %v388, 1
      %vm393 = vcmp.eq.s32.totalorder %v389, 1
      %vm394 = vcmp.eq.s32.totalorder %v390, 1
      %v395 = vsel %vm391, %v378, 0.0
      %v396 = vsel %vm392, %v377, 0.0
      %v397 = vsel %vm393, %v376, 0.0
      %v398 = vsel %vm394, %v375, 0.0
      %399 = vrot.lane.b32.xlu0 %v296, 1
      %v400 = vpop.permute.xlu0 %399
      %401 = vrot.lane.b32.xlu0 %v297, 1
      %v402 = vpop.permute.xlu0 %401
      %403 = vrot.lane.b32.xlu0 %v298, 1
      %v404 = vpop.permute.xlu0 %403
      %405 = vrot.lane.b32.xlu0 %v299, 1
      %v406 = vpop.permute.xlu0 %405
      %vm407 = vcmp.lt.s32.totalorder %v280, 1
      %v408 = vsel %vm407, %v404, %v406
      %v409 = vsel %vm407, %v402, %v404
      %v410 = vsel %vm407, %v400, %v402
      %v411 = vsel %vm407, %v406, %v400
      %v412 = vsel %vm317, 1, 0
      %v413 = vsel %vm318, 1, 0
      %v414 = vsel %vm319, 1, 0
      %v415 = vsel %vm320, 1, 0
      %vm416 = vcmp.eq.s32.totalorder %v412, 1
      %vm417 = vcmp.eq.s32.totalorder %v413, 1
      %vm418 = vcmp.eq.s32.totalorder %v414, 1
      %vm419 = vcmp.eq.s32.totalorder %v415, 1
      %v420 = vsel %vm416, %v411, 0.0
      %v421 = vsel %vm417, %v410, 0.0
      %v422 = vsel %vm418, %v409, 0.0
      %v423 = vsel %vm419, %v408, 0.0
      %424 = vrot.lane.b32.xlu0 %v296, 127
      %v425 = vpop.permute.xlu0 %424
      %426 = vrot.lane.b32.xlu0 %v297, 127
      %v427 = vpop.permute.xlu0 %426
      %428 = vrot.lane.b32.xlu0 %v298, 127
      %v429 = vpop.permute.xlu0 %428
      %430 = vrot.lane.b32.xlu0 %v299, 127
      %v431 = vpop.permute.xlu0 %430
      %vm432 = vcmp.lt.s32.totalorder %v280, 127
      %v433 = vsel %vm432, %v429, %v431
      %v434 = vsel %vm432, %v427, %v429
      %v435 = vsel %vm432, %v425, %v427
      %v436 = vsel %vm432, %v431, %v425
      %v437 = vsel %vm379, 1, 0
      %v438 = vsel %vm380, 1, 0
      %v439 = vsel %vm381, 1, 0
      %v440 = vsel %vm382, 1, 0
      %vm441 = vcmp.eq.s32.totalorder %v437, 1
      %vm442 = vcmp.eq.s32.totalorder %v438, 1
      %vm443 = vcmp.eq.s32.totalorder %v439, 1
      %vm444 = vcmp.eq.s32.totalorder %v440, 1
      %v445 = vsel %vm441, %v435, 0.0
      %v446 = vsel %vm442, %v434, 0.0
      %v447 = vsel %vm443, %v433, 0.0
      %v448 = vsel %vm444, %v436, 0.0
      %449 = vrot.lane.b32.xlu0 %v296, 113
      %v450 = vpop.permute.xlu0 %449
      %451 = vrot.lane.b32.xlu0 %v297, 113
      %v452 = vpop.permute.xlu0 %451
      %453 = vrot.lane.b32.xlu0 %v298, 113
      %v454 = vpop.permute.xlu0 %453
      %455 = vrot.lane.b32.xlu0 %v299, 113
      %v456 = vpop.permute.xlu0 %455
      %vm457 = vcmp.lt.s32.totalorder %v280, 113
      %v458 = vsel %vm457, %v454, %v456
      %v459 = vsel %vm457, %v452, %v454
      %v460 = vsel %vm457, %v450, %v452
      %v461 = vsel %vm457, %v456, %v450
      %vm462 = vcmp.lt.s32.totalorder %v292, 15
      %vm463 = vcmp.lt.s32.totalorder %v293, 15
      %vm464 = vcmp.lt.s32.totalorder %v294, 15
      %vm465 = vcmp.lt.s32.totalorder %v295, 15
      %vm466 = vmand %vm317, %vm462
      %vm467 = vmand %vm318, %vm463
      %vm468 = vmand %vm319, %vm464
      %vm469 = vmand %vm320, %vm465
      %v470 = vsel %vm466, 1, 0
      %v471 = vsel %vm467, 1, 0
      %v472 = vsel %vm468, 1, 0
      %v473 = vsel %vm469, 1, 0
      %vm474 = vcmp.eq.s32.totalorder %v470, 1
      %vm475 = vcmp.eq.s32.totalorder %v471, 1
      %vm476 = vcmp.eq.s32.totalorder %v472, 1
      %vm477 = vcmp.eq.s32.totalorder %v473, 1
      %v478 = vsel %vm474, %v460, 0.0
      %v479 = vsel %vm475, %v459, 0.0
      %v480 = vsel %vm476, %v458, 0.0
      %v481 = vsel %vm477, %v461, 0.0
      %482 = vrot.lane.b32.xlu0 %v296, 112
      %v483 = vpop.permute.xlu0 %482
      %484 = vrot.lane.b32.xlu0 %v297, 112
      %v485 = vpop.permute.xlu0 %484
      %486 = vrot.lane.b32.xlu0 %v298, 112
      %v487 = vpop.permute.xlu0 %486
      %488 = vrot.lane.b32.xlu0 %v299, 112
      %v489 = vpop.permute.xlu0 %488
      %vm490 = vcmp.lt.s32.totalorder %v280, 112
      %v491 = vsel %vm490, %v487, %v489
      %v492 = vsel %vm490, %v485, %v487
      %v493 = vsel %vm490, %v483, %v485
      %v494 = vsel %vm490, %v489, %v483
      %v495 = vsel %vm462, 1, 0
      %v496 = vsel %vm463, 1, 0
      %v497 = vsel %vm464, 1, 0
      %v498 = vsel %vm465, 1, 0
      %vm499 = vcmp.eq.s32.totalorder %v495, 1
      %vm500 = vcmp.eq.s32.totalorder %v496, 1
      %vm501 = vcmp.eq.s32.totalorder %v497, 1
      %vm502 = vcmp.eq.s32.totalorder %v498, 1
      %v503 = vsel %vm499, %v493, 0.0
      %v504 = vsel %vm500, %v492, 0.0
      %v505 = vsel %vm501, %v491, 0.0
      %v506 = vsel %vm502, %v494, 0.0
      %507 = vrot.lane.b32.xlu0 %v296, 111
      %v508 = vpop.permute.xlu0 %507
      %509 = vrot.lane.b32.xlu0 %v297, 111
      %v510 = vpop.permute.xlu0 %509
      %511 = vrot.lane.b32.xlu0 %v298, 111
      %v512 = vpop.permute.xlu0 %511
      %513 = vrot.lane.b32.xlu0 %v299, 111
      %v514 = vpop.permute.xlu0 %513
      %vm515 = vcmp.lt.s32.totalorder %v280, 111
      %v516 = vsel %vm515, %v512, %v514
      %v517 = vsel %vm515, %v510, %v512
      %v518 = vsel %vm515, %v508, %v510
      %v519 = vsel %vm515, %v514, %v508
      %vm520 = vmand %vm379, %vm462
      %vm521 = vmand %vm380, %vm463
      %vm522 = vmand %vm381, %vm464
      %vm523 = vmand %vm382, %vm465
      %v524 = vsel %vm520, 1, 0
      %v525 = vsel %vm521, 1, 0
      %v526 = vsel %vm522, 1, 0
      %v527 = vsel %vm523, 1, 0
      %vm528 = vcmp.eq.s32.totalorder %v524, 1
      %vm529 = vcmp.eq.s32.totalorder %v525, 1
      %vm530 = vcmp.eq.s32.totalorder %v526, 1
      %vm531 = vcmp.eq.s32.totalorder %v527, 1
      %v532 = vsel %vm528, %v518, 0.0
      %v533 = vsel %vm529, %v517, 0.0
      %v534 = vsel %vm530, %v516, 0.0
      %v535 = vsel %vm531, %v519, 0.0
      %v536 = vld [vmem:[%s2] sm:$0xff]
      %v537 = vld [vmem:[%s2 + $0x8] sm:$0xff]
      %v538 = vld [vmem:[%s2 + $0x10] sm:$0xff]
      %v539 = vld [vmem:[%s2 + $0x18] sm:$0xff]
      %541 = vset.pattern.permute.xlu0 0
      %542 = vperm.xlu0 %541, %v536
      %v543 = vpop.permute.xlu0 %542
      %546 = vset.pattern.permute.xlu0 0
      %547 = vperm.xlu0 %546, %v537
      %v548 = vpop.permute.xlu0 %547
      %551 = vset.pattern.permute.xlu0 0
      %552 = vperm.xlu0 %551, %v538
      %v553 = vpop.permute.xlu0 %552
      %556 = vset.pattern.permute.xlu0 0
      %557 = vperm.xlu0 %556, %v539
      %v558 = vpop.permute.xlu0 %557
      %vm560 = vcmask 588800
      %v562 = vsel %vm560, %v300, 0
      %v565 = vsel %vm560, %v301, 0
      %v568 = vsel %vm560, %v302, 0
      %v571 = vsel %vm560, %v303, 0
      %573 = vmatprep.subr.mxu0 %v338
      %574 = vmatpush1.msra.mxu0 %v337
      %575 = vmatprep.subr.mxu0 %v363
      %576 = vmatpush1.msra.mxu0 %v362
      %577 = vmatprep.subr.mxu0 %v396
      %578 = vmatpush1.msra.mxu0 %v395
      %579 = vmatprep.subr.mxu0 %v421
      %580 = vmatpush1.msra.mxu0 %v420
      %581 = vmatprep.subr.mxu0 %v297
      %582 = vmatpush1.msra.mxu0 %v296
      %583 = vmatprep.subr.mxu0 %v446
      %584 = vmatpush1.msra.mxu0 %v445
      %585 = vmatprep.subr.mxu0 %v479
      %586 = vmatpush1.msra.mxu0 %v478
      %587 = vmatprep.subr.mxu0 %v504
      %588 = vmatpush1.msra.mxu0 %v503
      %589 = vmatprep.subr.mxu0 %v533
      %590 = vmatpush1.msra.mxu0 %v532
      %591 = vmatprep.subr.mxu0 0.0
      %592 = vmatpush1.msra.mxu0 0.0
      %593 = vmatprep.subr.mxu0 0.0
      %594 = vmatpush1.msra.mxu0 0.0
      %595 = vmatprep.subr.mxu0 0.0
      %596 = vmatpush1.msra.mxu0 0.0
      %597 = vmatprep.subr.mxu0 0.0
      %598 = vmatpush1.msra.mxu0 0.0
      %599 = vmatprep.subr.mxu0 0.0
      %600 = vmatpush1.msra.mxu0 0.0
      %601 = vmatprep.subr.mxu0 0.0
      %602 = vmatpush1.msra.mxu0 0.0
      %603 = vmatprep.subr.mxu0 0.0
      %604 = vmatpush1.msra.mxu0 0.0
      %605 = vmatprep.subr.mxu0 0.0
      %606 = vmatpush1.msra.mxu0 0.0
      %607 = vmatprep.subr.mxu0 0.0
      %608 = vmatpush1.msra.mxu0 0.0
      %609 = vmatprep.subr.mxu0 0.0
      %610 = vmatpush1.msra.mxu0 0.0
      %611 = vmatprep.subr.mxu0 0.0
      %612 = vmatpush1.msra.mxu0 0.0
      %613 = vmatprep.subr.mxu0 0.0
      %614 = vmatpush1.msra.mxu0 0.0
      %615 = vmatprep.subr.mxu0 0.0
      %616 = vmatpush1.msra.mxu0 0.0
      %617 = vmatprep.subr.mxu0 0.0
      %618 = vmatpush1.msra.mxu0 0.0
      %619 = vmatprep.subr.mxu0 0.0
      %620 = vmatpush1.msra.mxu0 0.0
      %621 = vmatprep.subr.mxu0 0.0
      %622 = vmatpush1.msra.mxu0 0.0
      %623 = vmatprep.subr.mxu0 0.0
      %624 = vmatpush1.msra.mxu0 0.0
      %625 = vmatprep.subr.mxu0 0.0
      %626 = vmatpush1.msra.mxu0 0.0
      %627 = vmatprep.subr.mxu0 0.0
      %628 = vmatpush1.msra.mxu0 0.0
      %629 = vmatprep.subr.mxu0 0.0
      %630 = vmatpush1.msra.mxu0 0.0
      %631 = vmatprep.subr.mxu0 0.0
      %632 = vmatpush1.msra.mxu0 0.0
      %633 = vmatprep.subr.mxu0 0.0
      %634 = vmatpush1.msra.mxu0 0.0
      %635 = vmatprep.subr.mxu0 0.0
      %636 = vmatpush1.msra.mxu0 0.0
      %637 = vmatprep.mubr.f32.mxu0 0.0
      %638 = vmatmul.mubr.f32.gmra.mrb[0].mxu0 %v562
      %v639 = vpop.f32.mrb[0].mxu0
      %v640 = vadd.f32 %v543, %v639
      %v641 = vpop.f32.mrb[0].mxu0
      %v642 = vadd.f32 %v543, %v641
      %643 = vmatprep.mubr.f32.mxu0 0.0
      %644 = vmatmul.mubr.f32.gmra.mrb[0].mxu0 %v565
      %v645 = vpop.f32.mrb[0].mxu0
      %v646 = vadd.f32 %v548, %v645
      %v647 = vpop.f32.mrb[0].mxu0
      %v648 = vadd.f32 %v548, %v647
      %649 = vmatprep.mubr.f32.mxu0 0.0
      %650 = vmatmul.mubr.f32.gmra.mrb[0].mxu0 %v568
      %v651 = vpop.f32.mrb[0].mxu0
      %v652 = vadd.f32 %v553, %v651
      %v653 = vpop.f32.mrb[0].mxu0
      %v654 = vadd.f32 %v553, %v653
      %655 = vmatprep.mubr.f32.mxu0 0.0
      %656 = vmatmul.mubr.f32.gmra.mrb[0].mxu0 %v571
      %v657 = vpop.f32.mrb[0].mxu0
      %v658 = vadd.f32 %v558, %v657
      %v659 = vpop.f32.mrb[0].mxu0
      %v660 = vadd.f32 %v558, %v659
      %661 = vdwg.mxu0
      %662 = vmatprep.subr.mxu0 %v340
      %663 = vmatpush1.msra.mxu0 %v339
      %664 = vmatprep.subr.mxu0 %v365
      %665 = vmatpush1.msra.mxu0 %v364
      %666 = vmatprep.subr.mxu0 %v398
      %667 = vmatpush1.msra.mxu0 %v397
      %668 = vmatprep.subr.mxu0 %v423
      %669 = vmatpush1.msra.mxu0 %v422
      %670 = vmatprep.subr.mxu0 %v299
      %671 = vmatpush1.msra.mxu0 %v298
      %672 = vmatprep.subr.mxu0 %v448
      %673 = vmatpush1.msra.mxu0 %v447
      %674 = vmatprep.subr.mxu0 %v481
      %675 = vmatpush1.msra.mxu0 %v480
      %676 = vmatprep.subr.mxu0 %v506
      %677 = vmatpush1.msra.mxu0 %v505
      %678 = vmatprep.subr.mxu0 %v535
      %679 = vmatpush1.msra.mxu0 %v534
      %680 = vmatprep.subr.mxu0 0.0
      %681 = vmatpush1.msra.mxu0 0.0
      %682 = vmatprep.subr.mxu0 0.0
      %683 = vmatpush1.msra.mxu0 0.0
      %684 = vmatprep.subr.mxu0 0.0
      %685 = vmatpush1.msra.mxu0 0.0
      %686 = vmatprep.subr.mxu0 0.0
      %687 = vmatpush1.msra.mxu0 0.0
      %688 = vmatprep.subr.mxu0 0.0
      %689 = vmatpush1.msra.mxu0 0.0
      %690 = vmatprep.subr.mxu0 0.0
      %691 = vmatpush1.msra.mxu0 0.0
      %692 = vmatprep.subr.mxu0 0.0
      %693 = vmatpush1.msra.mxu0 0.0
      %694 = vmatprep.subr.mxu0 0.0
      %695 = vmatpush1.msra.mxu0 0.0
      %696 = vmatprep.subr.mxu0 0.0
      %697 = vmatpush1.msra.mxu0 0.0
      %698 = vmatprep.subr.mxu0 0.0
      %699 = vmatpush1.msra.mxu0 0.0
      %700 = vmatprep.subr.mxu0 0.0
      %701 = vmatpush1.msra.mxu0 0.0
      %702 = vmatprep.subr.mxu0 0.0
      %703 = vmatpush1.msra.mxu0 0.0
      %704 = vmatprep.subr.mxu0 0.0
      %705 = vmatpush1.msra.mxu0 0.0
      %706 = vmatprep.subr.mxu0 0.0
      %707 = vmatpush1.msra.mxu0 0.0
      %708 = vmatprep.subr.mxu0 0.0
      %709 = vmatpush1.msra.mxu0 0.0
      %710 = vmatprep.subr.mxu0 0.0
      %711 = vmatpush1.msra.mxu0 0.0
      %712 = vmatprep.subr.mxu0 0.0
      %713 = vmatpush1.msra.mxu0 0.0
      %714 = vmatprep.subr.mxu0 0.0
      %715 = vmatpush1.msra.mxu0 0.0
      %716 = vmatprep.subr.mxu0 0.0
      %717 = vmatpush1.msra.mxu0 0.0
      %718 = vmatprep.subr.mxu0 0.0
      %719 = vmatpush1.msra.mxu0 0.0
      %720 = vmatprep.subr.mxu0 0.0
      %721 = vmatpush1.msra.mxu0 0.0
      %722 = vmatprep.subr.mxu0 0.0
      %723 = vmatpush1.msra.mxu0 0.0
      %724 = vmatprep.subr.mxu0 0.0
      %725 = vmatpush1.msra.mxu0 0.0
      %726 = vmatprep.mubr.f32.mxu0 0.0
      %727 = vmatmul.mubr.f32.gmra.mrb[0].mxu0 %v562
      %v728 = vpop.f32.mrb[0].mxu0
      %v729 = vadd.f32 %v543, %v728
      %v730 = vpop.f32.mrb[0].mxu0
      %v731 = vadd.f32 %v543, %v730
      %732 = vmatprep.mubr.f32.mxu0 0.0
      %733 = vmatmul.mubr.f32.gmra.mrb[0].mxu0 %v565
      %v734 = vpop.f32.mrb[0].mxu0
      %v735 = vadd.f32 %v548, %v734
      %v736 = vpop.f32.mrb[0].mxu0
      %v737 = vadd.f32 %v548, %v736
      %738 = vmatprep.mubr.f32.mxu0 0.0
      %739 = vmatmul.mubr.f32.gmra.mrb[0].mxu0 %v568
      %v740 = vpop.f32.mrb[0].mxu0
      %v741 = vadd.f32 %v553, %v740
      %v742 = vpop.f32.mrb[0].mxu0
      %v743 = vadd.f32 %v553, %v742
      %744 = vmatprep.mubr.f32.mxu0 0.0
      %745 = vmatmul.mubr.f32.gmra.mrb[0].mxu0 %v571
      %v746 = vpop.f32.mrb[0].mxu0
      %v747 = vadd.f32 %v558, %v746
      %v748 = vpop.f32.mrb[0].mxu0
      %v749 = vadd.f32 %v558, %v748
      %750 = vdwg.mxu0
      %v751 = vmax.f32 %v640, 0.0
      %v752 = vmax.f32 %v642, 0.0
      %v753 = vmax.f32 %v729, 0.0
      %v754 = vmax.f32 %v731, 0.0
      %v755 = vmax.f32 %v646, 0.0
      %v756 = vmax.f32 %v648, 0.0
      %v757 = vmax.f32 %v735, 0.0
      %v758 = vmax.f32 %v737, 0.0
      %v759 = vmax.f32 %v652, 0.0
      %v760 = vmax.f32 %v654, 0.0
      %v761 = vmax.f32 %v741, 0.0
      %v762 = vmax.f32 %v743, 0.0
      %v763 = vmax.f32 %v658, 0.0
      %v764 = vmax.f32 %v660, 0.0
      %v765 = vmax.f32 %v747, 0.0
      %v766 = vmax.f32 %v749, 0.0
      %767 = vrot.lane.b32.xlu0 %v751, 1
      %v768 = vpop.permute.xlu0 %767
      %769 = vrot.lane.b32.xlu0 %v752, 1
      %v770 = vpop.permute.xlu0 %769
      %771 = vrot.lane.b32.xlu0 %v753, 1
      %v772 = vpop.permute.xlu0 %771
      %773 = vrot.lane.b32.xlu0 %v754, 1
      %v774 = vpop.permute.xlu0 %773
      %v775 = vsel %vm407, %v772, %v774
      %v776 = vsel %vm407, %v770, %v772
      %v777 = vsel %vm407, %v768, %v770
      %v778 = vsel %vm407, %v774, %v768
      %v779 = vsel %vm416, %v778, -1e+30
      %v780 = vsel %vm417, %v777, -1e+30
      %v781 = vsel %vm418, %v776, -1e+30
      %v782 = vsel %vm419, %v775, -1e+30
      %v783 = vmax.f32 %v751, %v779
      %v784 = vmax.f32 %v752, %v780
      %v785 = vmax.f32 %v753, %v781
      %v786 = vmax.f32 %v754, %v782
      %787 = vrot.lane.b32.xlu0 %v783, 2
      %v788 = vpop.permute.xlu0 %787
      %789 = vrot.lane.b32.xlu0 %v784, 2
      %v790 = vpop.permute.xlu0 %789
      %791 = vrot.lane.b32.xlu0 %v785, 2
      %v792 = vpop.permute.xlu0 %791
      %793 = vrot.lane.b32.xlu0 %v786, 2
      %v794 = vpop.permute.xlu0 %793
      %vm795 = vcmp.lt.s32.totalorder %v280, 2
      %v796 = vsel %vm795, %v792, %v794
      %v797 = vsel %vm795, %v790, %v792
      %v798 = vsel %vm795, %v788, %v790
      %v799 = vsel %vm795, %v794, %v788
      %vm800 = vcmp.ge.s32.totalorder %v284, 2
      %vm801 = vcmp.ge.s32.totalorder %v285, 2
      %vm802 = vcmp.ge.s32.totalorder %v286, 2
      %vm803 = vcmp.ge.s32.totalorder %v287, 2
      %v804 = vsel %vm800, 1, 0
      %v805 = vsel %vm801, 1, 0
      %v806 = vsel %vm802, 1, 0
      %v807 = vsel %vm803, 1, 0
      %vm808 = vcmp.eq.s32.totalorder %v804, 1
      %vm809 = vcmp.eq.s32.totalorder %v805, 1
      %vm810 = vcmp.eq.s32.totalorder %v806, 1
      %vm811 = vcmp.eq.s32.totalorder %v807, 1
      %v812 = vsel %vm808, %v799, -1e+30
      %v813 = vsel %vm809, %v798, -1e+30
      %v814 = vsel %vm810, %v797, -1e+30
      %v815 = vsel %vm811, %v796, -1e+30
      %v816 = vmax.f32 %v783, %v812
      %v817 = vmax.f32 %v784, %v813
      %v818 = vmax.f32 %v785, %v814
      %v819 = vmax.f32 %v786, %v815
      %820 = vrot.lane.b32.xlu0 %v816, 4
      %v821 = vpop.permute.xlu0 %820
      %822 = vrot.lane.b32.xlu0 %v817, 4
      %v823 = vpop.permute.xlu0 %822
      %824 = vrot.lane.b32.xlu0 %v818, 4
      %v825 = vpop.permute.xlu0 %824
      %826 = vrot.lane.b32.xlu0 %v819, 4
      %v827 = vpop.permute.xlu0 %826
      %vm828 = vcmp.lt.s32.totalorder %v280, 4
      %v829 = vsel %vm828, %v825, %v827
      %v830 = vsel %vm828, %v823, %v825
      %v831 = vsel %vm828, %v821, %v823
      %v832 = vsel %vm828, %v827, %v821
      %vm833 = vcmp.ge.s32.totalorder %v284, 4
      %vm834 = vcmp.ge.s32.totalorder %v285, 4
      %vm835 = vcmp.ge.s32.totalorder %v286, 4
      %vm836 = vcmp.ge.s32.totalorder %v287, 4
      %v837 = vsel %vm833, 1, 0
      %v838 = vsel %vm834, 1, 0
      %v839 = vsel %vm835, 1, 0
      %v840 = vsel %vm836, 1, 0
      %vm841 = vcmp.eq.s32.totalorder %v837, 1
      %vm842 = vcmp.eq.s32.totalorder %v838, 1
      %vm843 = vcmp.eq.s32.totalorder %v839, 1
      %vm844 = vcmp.eq.s32.totalorder %v840, 1
      %v845 = vsel %vm841, %v832, -1e+30
      %v846 = vsel %vm842, %v831, -1e+30
      %v847 = vsel %vm843, %v830, -1e+30
      %v848 = vsel %vm844, %v829, -1e+30
      %v849 = vmax.f32 %v816, %v845
      %v850 = vmax.f32 %v817, %v846
      %v851 = vmax.f32 %v818, %v847
      %v852 = vmax.f32 %v819, %v848
      %853 = vrot.lane.b32.xlu0 %v849, 8
      %v854 = vpop.permute.xlu0 %853
      %855 = vrot.lane.b32.xlu0 %v850, 8
      %v856 = vpop.permute.xlu0 %855
      %857 = vrot.lane.b32.xlu0 %v851, 8
      %v858 = vpop.permute.xlu0 %857
      %859 = vrot.lane.b32.xlu0 %v852, 8
      %v860 = vpop.permute.xlu0 %859
      %vm861 = vcmp.lt.s32.totalorder %v280, 8
      %v862 = vsel %vm861, %v858, %v860
      %v863 = vsel %vm861, %v856, %v858
      %v864 = vsel %vm861, %v854, %v856
      %v865 = vsel %vm861, %v860, %v854
      %vm866 = vcmp.ge.s32.totalorder %v284, 8
      %vm867 = vcmp.ge.s32.totalorder %v285, 8
      %vm868 = vcmp.ge.s32.totalorder %v286, 8
      %vm869 = vcmp.ge.s32.totalorder %v287, 8
      %v870 = vsel %vm866, 1, 0
      %v871 = vsel %vm867, 1, 0
      %v872 = vsel %vm868, 1, 0
      %v873 = vsel %vm869, 1, 0
      %vm874 = vcmp.eq.s32.totalorder %v870, 1
      %vm875 = vcmp.eq.s32.totalorder %v871, 1
      %vm876 = vcmp.eq.s32.totalorder %v872, 1
      %vm877 = vcmp.eq.s32.totalorder %v873, 1
      %v878 = vsel %vm874, %v865, -1e+30
      %v879 = vsel %vm875, %v864, -1e+30
      %v880 = vsel %vm876, %v863, -1e+30
      %v881 = vsel %vm877, %v862, -1e+30
      %v882 = vmax.f32 %v849, %v878
      %v883 = vmax.f32 %v850, %v879
      %v884 = vmax.f32 %v851, %v880
      %v885 = vmax.f32 %v852, %v881
      %886 = vrot.lane.b32.xlu0 %v751, 127
      %v887 = vpop.permute.xlu0 %886
      %888 = vrot.lane.b32.xlu0 %v752, 127
      %v889 = vpop.permute.xlu0 %888
      %890 = vrot.lane.b32.xlu0 %v753, 127
      %v891 = vpop.permute.xlu0 %890
      %892 = vrot.lane.b32.xlu0 %v754, 127
      %v893 = vpop.permute.xlu0 %892
      %v894 = vsel %vm432, %v891, %v893
      %v895 = vsel %vm432, %v889, %v891
      %v896 = vsel %vm432, %v887, %v889
      %v897 = vsel %vm432, %v893, %v887
      %v898 = vsel %vm441, %v896, -1e+30
      %v899 = vsel %vm442, %v895, -1e+30
      %v900 = vsel %vm443, %v894, -1e+30
      %v901 = vsel %vm444, %v897, -1e+30
      %v902 = vmax.f32 %v751, %v898
      %v903 = vmax.f32 %v752, %v899
      %v904 = vmax.f32 %v753, %v900
      %v905 = vmax.f32 %v754, %v901
      %906 = vrot.lane.b32.xlu0 %v902, 126
      %v907 = vpop.permute.xlu0 %906
      %908 = vrot.lane.b32.xlu0 %v903, 126
      %v909 = vpop.permute.xlu0 %908
      %910 = vrot.lane.b32.xlu0 %v904, 126
      %v911 = vpop.permute.xlu0 %910
      %912 = vrot.lane.b32.xlu0 %v905, 126
      %v913 = vpop.permute.xlu0 %912
      %vm914 = vcmp.lt.s32.totalorder %v280, 126
      %v915 = vsel %vm914, %v911, %v913
      %v916 = vsel %vm914, %v909, %v911
      %v917 = vsel %vm914, %v907, %v909
      %v918 = vsel %vm914, %v913, %v907
      %vm919 = vcmp.lt.s32.totalorder %v284, 14
      %vm920 = vcmp.lt.s32.totalorder %v285, 14
      %vm921 = vcmp.lt.s32.totalorder %v286, 14
      %vm922 = vcmp.lt.s32.totalorder %v287, 14
      %v923 = vsel %vm919, 1, 0
      %v924 = vsel %vm920, 1, 0
      %v925 = vsel %vm921, 1, 0
      %v926 = vsel %vm922, 1, 0
      %vm927 = vcmp.eq.s32.totalorder %v923, 1
      %vm928 = vcmp.eq.s32.totalorder %v924, 1
      %vm929 = vcmp.eq.s32.totalorder %v925, 1
      %vm930 = vcmp.eq.s32.totalorder %v926, 1
      %v931 = vsel %vm927, %v917, -1e+30
      %v932 = vsel %vm928, %v916, -1e+30
      %v933 = vsel %vm929, %v915, -1e+30
      %v934 = vsel %vm930, %v918, -1e+30
      %v935 = vmax.f32 %v902, %v931
      %v936 = vmax.f32 %v903, %v932
      %v937 = vmax.f32 %v904, %v933
      %v938 = vmax.f32 %v905, %v934
      %939 = vrot.lane.b32.xlu0 %v935, 124
      %v940 = vpop.permute.xlu0 %939
      %941 = vrot.lane.b32.xlu0 %v936, 124
      %v942 = vpop.permute.xlu0 %941
      %943 = vrot.lane.b32.xlu0 %v937, 124
      %v944 = vpop.permute.xlu0 %943
      %945 = vrot.lane.b32.xlu0 %v938, 124
      %v946 = vpop.permute.xlu0 %945
      %vm947 = vcmp.lt.s32.totalorder %v280, 124
      %v948 = vsel %vm947, %v944, %v946
      %v949 = vsel %vm947, %v942, %v944
      %v950 = vsel %vm947, %v940, %v942
      %v951 = vsel %vm947, %v946, %v940
      %vm952 = vcmp.lt.s32.totalorder %v284, 12
      %vm953 = vcmp.lt.s32.totalorder %v285, 12
      %vm954 = vcmp.lt.s32.totalorder %v286, 12
      %vm955 = vcmp.lt.s32.totalorder %v287, 12
      %v956 = vsel %vm952, 1, 0
      %v957 = vsel %vm953, 1, 0
      %v958 = vsel %vm954, 1, 0
      %v959 = vsel %vm955, 1, 0
      %vm960 = vcmp.eq.s32.totalorder %v956, 1
      %vm961 = vcmp.eq.s32.totalorder %v957, 1
      %vm962 = vcmp.eq.s32.totalorder %v958, 1
      %vm963 = vcmp.eq.s32.totalorder %v959, 1
      %v964 = vsel %vm960, %v950, -1e+30
      %v965 = vsel %vm961, %v949, -1e+30
      %v966 = vsel %vm962, %v948, -1e+30
      %v967 = vsel %vm963, %v951, -1e+30
      %v968 = vmax.f32 %v935, %v964
      %v969 = vmax.f32 %v936, %v965
      %v970 = vmax.f32 %v937, %v966
      %v971 = vmax.f32 %v938, %v967
      %972 = vrot.lane.b32.xlu0 %v968, 120
      %v973 = vpop.permute.xlu0 %972
      %974 = vrot.lane.b32.xlu0 %v969, 120
      %v975 = vpop.permute.xlu0 %974
      %976 = vrot.lane.b32.xlu0 %v970, 120
      %v977 = vpop.permute.xlu0 %976
      %978 = vrot.lane.b32.xlu0 %v971, 120
      %v979 = vpop.permute.xlu0 %978
      %vm980 = vcmp.lt.s32.totalorder %v280, 120
      %v981 = vsel %vm980, %v977, %v979
      %v982 = vsel %vm980, %v975, %v977
      %v983 = vsel %vm980, %v973, %v975
      %v984 = vsel %vm980, %v979, %v973
      %vm985 = vcmp.lt.s32.totalorder %v284, 8
      %vm986 = vcmp.lt.s32.totalorder %v285, 8
      %vm987 = vcmp.lt.s32.totalorder %v286, 8
      %vm988 = vcmp.lt.s32.totalorder %v287, 8
      %v989 = vsel %vm985, 1, 0
      %v990 = vsel %vm986, 1, 0
      %v991 = vsel %vm987, 1, 0
      %v992 = vsel %vm988, 1, 0
      %vm993 = vcmp.eq.s32.totalorder %v989, 1
      %vm994 = vcmp.eq.s32.totalorder %v990, 1
      %vm995 = vcmp.eq.s32.totalorder %v991, 1
      %vm996 = vcmp.eq.s32.totalorder %v992, 1
      %v997 = vsel %vm993, %v983, -1e+30
      %v998 = vsel %vm994, %v982, -1e+30
      %v999 = vsel %vm995, %v981, -1e+30
      %v1000 = vsel %vm996, %v984, -1e+30
      %v1001 = vmax.f32 %v968, %v997
      %v1002 = vmax.f32 %v969, %v998
      %v1003 = vmax.f32 %v970, %v999
      %v1004 = vmax.f32 %v971, %v1000
      %v1005 = vmax.f32 %v882, %v1001
      %v1006 = vmax.f32 %v883, %v1002
      %v1007 = vmax.f32 %v884, %v1003
      %v1008 = vmax.f32 %v885, %v1004
      %1009 = vrot.lane.b32.xlu0 %v755, 16
      %v1010 = vpop.permute.xlu0 %1009
      %1011 = vrot.lane.b32.xlu0 %v756, 16
      %v1012 = vpop.permute.xlu0 %1011
      %1013 = vrot.lane.b32.xlu0 %v757, 16
      %v1014 = vpop.permute.xlu0 %1013
      %1015 = vrot.lane.b32.xlu0 %v758, 16
      %v1016 = vpop.permute.xlu0 %1015
      %v1017 = vsel %vm349, %v1014, %v1016
      %v1018 = vsel %vm349, %v1012, %v1014
      %v1019 = vsel %vm349, %v1010, %v1012
      %v1020 = vsel %vm349, %v1016, %v1010
      %v1021 = vsel %vm358, %v1020, -1e+30
      %v1022 = vsel %vm359, %v1019, -1e+30
      %v1023 = vsel %vm360, %v1018, -1e+30
      %v1024 = vsel %vm361, %v1017, -1e+30
      %v1025 = vmax.f32 %v755, %v1021
      %v1026 = vmax.f32 %v756, %v1022
      %v1027 = vmax.f32 %v757, %v1023
      %v1028 = vmax.f32 %v758, %v1024
      %1029 = vrot.lane.b32.xlu0 %v1025, 32
      %v1030 = vpop.permute.xlu0 %1029
      %1031 = vrot.lane.b32.xlu0 %v1026, 32
      %v1032 = vpop.permute.xlu0 %1031
      %1033 = vrot.lane.b32.xlu0 %v1027, 32
      %v1034 = vpop.permute.xlu0 %1033
      %1035 = vrot.lane.b32.xlu0 %v1028, 32
      %v1036 = vpop.permute.xlu0 %1035
      %vm1037 = vcmp.lt.s32.totalorder %v280, 32
      %v1038 = vsel %vm1037, %v1034, %v1036
      %v1039 = vsel %vm1037, %v1032, %v1034
      %v1040 = vsel %vm1037, %v1030, %v1032
      %v1041 = vsel %vm1037, %v1036, %v1030
      %vm1042 = vcmp.ge.s32.totalorder %v292, 2
      %vm1043 = vcmp.ge.s32.totalorder %v293, 2
      %vm1044 = vcmp.ge.s32.totalorder %v294, 2
      %vm1045 = vcmp.ge.s32.totalorder %v295, 2
      %v1046 = vsel %vm1042, 1, 0
      %v1047 = vsel %vm1043, 1, 0
      %v1048 = vsel %vm1044, 1, 0
      %v1049 = vsel %vm1045, 1, 0
      %vm1050 = vcmp.eq.s32.totalorder %v1046, 1
      %vm1051 = vcmp.eq.s32.totalorder %v1047, 1
      %vm1052 = vcmp.eq.s32.totalorder %v1048, 1
      %vm1053 = vcmp.eq.s32.totalorder %v1049, 1
      %v1054 = vsel %vm1050, %v1041, -1e+30
      %v1055 = vsel %vm1051, %v1040, -1e+30
      %v1056 = vsel %vm1052, %v1039, -1e+30
      %v1057 = vsel %vm1053, %v1038, -1e+30
      %v1058 = vmax.f32 %v1025, %v1054
      %v1059 = vmax.f32 %v1026, %v1055
      %v1060 = vmax.f32 %v1027, %v1056
      %v1061 = vmax.f32 %v1028, %v1057
      %1062 = vrot.lane.b32.xlu0 %v1058, 64
      %v1063 = vpop.permute.xlu0 %1062
      %1064 = vrot.lane.b32.xlu0 %v1059, 64
      %v1065 = vpop.permute.xlu0 %1064
      %1066 = vrot.lane.b32.xlu0 %v1060, 64
      %v1067 = vpop.permute.xlu0 %1066
      %1068 = vrot.lane.b32.xlu0 %v1061, 64
      %v1069 = vpop.permute.xlu0 %1068
      %vm1070 = vcmp.lt.s32.totalorder %v280, 64
      %v1071 = vsel %vm1070, %v1067, %v1069
      %v1072 = vsel %vm1070, %v1065, %v1067
      %v1073 = vsel %vm1070, %v1063, %v1065
      %v1074 = vsel %vm1070, %v1069, %v1063
      %vm1075 = vcmp.ge.s32.totalorder %v292, 4
      %vm1076 = vcmp.ge.s32.totalorder %v293, 4
      %vm1077 = vcmp.ge.s32.totalorder %v294, 4
      %vm1078 = vcmp.ge.s32.totalorder %v295, 4
      %v1079 = vsel %vm1075, 1, 0
      %v1080 = vsel %vm1076, 1, 0
      %v1081 = vsel %vm1077, 1, 0
      %v1082 = vsel %vm1078, 1, 0
      %vm1083 = vcmp.eq.s32.totalorder %v1079, 1
      %vm1084 = vcmp.eq.s32.totalorder %v1080, 1
      %vm1085 = vcmp.eq.s32.totalorder %v1081, 1
      %vm1086 = vcmp.eq.s32.totalorder %v1082, 1
      %v1087 = vsel %vm1083, %v1074, -1e+30
      %v1088 = vsel %vm1084, %v1073, -1e+30
      %v1089 = vsel %vm1085, %v1072, -1e+30
      %v1090 = vsel %vm1086, %v1071, -1e+30
      %v1091 = vmax.f32 %v1058, %v1087
      %v1092 = vmax.f32 %v1059, %v1088
      %v1093 = vmax.f32 %v1060, %v1089
      %v1094 = vmax.f32 %v1061, %v1090
      %vm1095 = vcmp.ge.s32.totalorder %v292, 8
      %vm1096 = vcmp.ge.s32.totalorder %v293, 8
      %vm1097 = vcmp.ge.s32.totalorder %v294, 8
      %vm1098 = vcmp.ge.s32.totalorder %v295, 8
      %v1099 = vsel %vm1095, 1, 0
      %v1100 = vsel %vm1096, 1, 0
      %v1101 = vsel %vm1097, 1, 0
      %v1102 = vsel %vm1098, 1, 0
      %vm1103 = vcmp.eq.s32.totalorder %v1099, 1
      %vm1104 = vcmp.eq.s32.totalorder %v1100, 1
      %vm1105 = vcmp.eq.s32.totalorder %v1101, 1
      %vm1106 = vcmp.eq.s32.totalorder %v1102, 1
      %v1107 = vsel %vm1103, %v1094, -1e+30
      %v1108 = vsel %vm1104, %v1091, -1e+30
      %v1109 = vsel %vm1105, %v1092, -1e+30
      %v1110 = vsel %vm1106, %v1093, -1e+30
      %v1111 = vmax.f32 %v1091, %v1107
      %v1112 = vmax.f32 %v1092, %v1108
      %v1113 = vmax.f32 %v1093, %v1109
      %v1114 = vmax.f32 %v1094, %v1110
      %1115 = vrot.lane.b32.xlu0 %v755, 112
      %v1116 = vpop.permute.xlu0 %1115
      %1117 = vrot.lane.b32.xlu0 %v756, 112
      %v1118 = vpop.permute.xlu0 %1117
      %1119 = vrot.lane.b32.xlu0 %v757, 112
      %v1120 = vpop.permute.xlu0 %1119
      %1121 = vrot.lane.b32.xlu0 %v758, 112
      %v1122 = vpop.permute.xlu0 %1121
      %v1123 = vsel %vm490, %v1120, %v1122
      %v1124 = vsel %vm490, %v1118, %v1120
      %v1125 = vsel %vm490, %v1116, %v1118
      %v1126 = vsel %vm490, %v1122, %v1116
      %v1127 = vsel %vm499, %v1125, -1e+30
      %v1128 = vsel %vm500, %v1124, -1e+30
      %v1129 = vsel %vm501, %v1123, -1e+30
      %v1130 = vsel %vm502, %v1126, -1e+30
      %v1131 = vmax.f32 %v755, %v1127
      %v1132 = vmax.f32 %v756, %v1128
      %v1133 = vmax.f32 %v757, %v1129
      %v1134 = vmax.f32 %v758, %v1130
      %1135 = vrot.lane.b32.xlu0 %v1131, 96
      %v1136 = vpop.permute.xlu0 %1135
      %1137 = vrot.lane.b32.xlu0 %v1132, 96
      %v1138 = vpop.permute.xlu0 %1137
      %1139 = vrot.lane.b32.xlu0 %v1133, 96
      %v1140 = vpop.permute.xlu0 %1139
      %1141 = vrot.lane.b32.xlu0 %v1134, 96
      %v1142 = vpop.permute.xlu0 %1141
      %vm1143 = vcmp.lt.s32.totalorder %v280, 96
      %v1144 = vsel %vm1143, %v1140, %v1142
      %v1145 = vsel %vm1143, %v1138, %v1140
      %v1146 = vsel %vm1143, %v1136, %v1138
      %v1147 = vsel %vm1143, %v1142, %v1136
      %vm1148 = vcmp.lt.s32.totalorder %v292, 14
      %vm1149 = vcmp.lt.s32.totalorder %v293, 14
      %vm1150 = vcmp.lt.s32.totalorder %v294, 14
      %vm1151 = vcmp.lt.s32.totalorder %v295, 14
      %v1152 = vsel %vm1148, 1, 0
      %v1153 = vsel %vm1149, 1, 0
      %v1154 = vsel %vm1150, 1, 0
      %v1155 = vsel %vm1151, 1, 0
      %vm1156 = vcmp.eq.s32.totalorder %v1152, 1
      %vm1157 = vcmp.eq.s32.totalorder %v1153, 1
      %vm1158 = vcmp.eq.s32.totalorder %v1154, 1
      %vm1159 = vcmp.eq.s32.totalorder %v1155, 1
      %v1160 = vsel %vm1156, %v1146, -1e+30
      %v1161 = vsel %vm1157, %v1145, -1e+30
      %v1162 = vsel %vm1158, %v1144, -1e+30
      %v1163 = vsel %vm1159, %v1147, -1e+30
      %v1164 = vmax.f32 %v1131, %v1160
      %v1165 = vmax.f32 %v1132, %v1161
      %v1166 = vmax.f32 %v1133, %v1162
      %v1167 = vmax.f32 %v1134, %v1163
      %1168 = vrot.lane.b32.xlu0 %v1164, 64
      %v1169 = vpop.permute.xlu0 %1168
      %1170 = vrot.lane.b32.xlu0 %v1165, 64
      %v1171 = vpop.permute.xlu0 %1170
      %1172 = vrot.lane.b32.xlu0 %v1166, 64
      %v1173 = vpop.permute.xlu0 %1172
      %1174 = vrot.lane.b32.xlu0 %v1167, 64
      %v1175 = vpop.permute.xlu0 %1174
      %v1176 = vsel %vm1070, %v1173, %v1175
      %v1177 = vsel %vm1070, %v1171, %v1173
      %v1178 = vsel %vm1070, %v1169, %v1171
      %v1179 = vsel %vm1070, %v1175, %v1169
      %vm1180 = vcmp.lt.s32.totalorder %v292, 12
      %vm1181 = vcmp.lt.s32.totalorder %v293, 12
      %vm1182 = vcmp.lt.s32.totalorder %v294, 12
      %vm1183 = vcmp.lt.s32.totalorder %v295, 12
      %v1184 = vsel %vm1180, 1, 0
      %v1185 = vsel %vm1181, 1, 0
      %v1186 = vsel %vm1182, 1, 0
      %v1187 = vsel %vm1183, 1, 0
      %vm1188 = vcmp.eq.s32.totalorder %v1184, 1
      %vm1189 = vcmp.eq.s32.totalorder %v1185, 1
      %vm1190 = vcmp.eq.s32.totalorder %v1186, 1
      %vm1191 = vcmp.eq.s32.totalorder %v1187, 1
      %v1192 = vsel %vm1188, %v1178, -1e+30
      %v1193 = vsel %vm1189, %v1177, -1e+30
      %v1194 = vsel %vm1190, %v1176, -1e+30
      %v1195 = vsel %vm1191, %v1179, -1e+30
      %v1196 = vmax.f32 %v1164, %v1192
      %v1197 = vmax.f32 %v1165, %v1193
      %v1198 = vmax.f32 %v1166, %v1194
      %v1199 = vmax.f32 %v1167, %v1195
      %vm1200 = vcmp.lt.s32.totalorder %v292, 8
      %vm1201 = vcmp.lt.s32.totalorder %v293, 8
      %vm1202 = vcmp.lt.s32.totalorder %v294, 8
      %vm1203 = vcmp.lt.s32.totalorder %v295, 8
      %v1204 = vsel %vm1200, 1, 0
      %v1205 = vsel %vm1201, 1, 0
      %v1206 = vsel %vm1202, 1, 0
      %v1207 = vsel %vm1203, 1, 0
      %vm1208 = vcmp.eq.s32.totalorder %v1204, 1
      %vm1209 = vcmp.eq.s32.totalorder %v1205, 1
      %vm1210 = vcmp.eq.s32.totalorder %v1206, 1
      %vm1211 = vcmp.eq.s32.totalorder %v1207, 1
      %v1212 = vsel %vm1208, %v1197, -1e+30
      %v1213 = vsel %vm1209, %v1198, -1e+30
      %v1214 = vsel %vm1210, %v1199, -1e+30
      %v1215 = vsel %vm1211, %v1196, -1e+30
      %v1216 = vmax.f32 %v1196, %v1212
      %v1217 = vmax.f32 %v1197, %v1213
      %v1218 = vmax.f32 %v1198, %v1214
      %v1219 = vmax.f32 %v1199, %v1215
      %v1220 = vmax.f32 %v1111, %v1216
      %v1221 = vmax.f32 %v1112, %v1217
      %v1222 = vmax.f32 %v1113, %v1218
      %v1223 = vmax.f32 %v1114, %v1219
      %1224 = vrot.lane.b32.xlu0 %v759, 17
      %v1225 = vpop.permute.xlu0 %1224
      %1226 = vrot.lane.b32.xlu0 %v760, 17
      %v1227 = vpop.permute.xlu0 %1226
      %1228 = vrot.lane.b32.xlu0 %v761, 17
      %v1229 = vpop.permute.xlu0 %1228
      %1230 = vrot.lane.b32.xlu0 %v762, 17
      %v1231 = vpop.permute.xlu0 %1230
      %v1232 = vsel %vm312, %v1229, %v1231
      %v1233 = vsel %vm312, %v1227, %v1229
      %v1234 = vsel %vm312, %v1225, %v1227
      %v1235 = vsel %vm312, %v1231, %v1225
      %v1236 = vsel %vm333, %v1235, -1e+30
      %v1237 = vsel %vm334, %v1234, -1e+30
      %v1238 = vsel %vm335, %v1233, -1e+30
      %v1239 = vsel %vm336, %v1232, -1e+30
      %v1240 = vmax.f32 %v759, %v1236
      %v1241 = vmax.f32 %v760, %v1237
      %v1242 = vmax.f32 %v761, %v1238
      %v1243 = vmax.f32 %v762, %v1239
      %1244 = vrot.lane.b32.xlu0 %v1240, 34
      %v1245 = vpop.permute.xlu0 %1244
      %1246 = vrot.lane.b32.xlu0 %v1241, 34
      %v1247 = vpop.permute.xlu0 %1246
      %1248 = vrot.lane.b32.xlu0 %v1242, 34
      %v1249 = vpop.permute.xlu0 %1248
      %1250 = vrot.lane.b32.xlu0 %v1243, 34
      %v1251 = vpop.permute.xlu0 %1250
      %vm1252 = vcmp.lt.s32.totalorder %v280, 34
      %v1253 = vsel %vm1252, %v1249, %v1251
      %v1254 = vsel %vm1252, %v1247, %v1249
      %v1255 = vsel %vm1252, %v1245, %v1247
      %v1256 = vsel %vm1252, %v1251, %v1245
      %vm1257 = vmand %vm800, %vm1042
      %vm1258 = vmand %vm801, %vm1043
      %vm1259 = vmand %vm802, %vm1044
      %vm1260 = vmand %vm803, %vm1045
      %v1261 = vsel %vm1257, 1, 0
      %v1262 = vsel %vm1258, 1, 0
      %v1263 = vsel %vm1259, 1, 0
      %v1264 = vsel %vm1260, 1, 0
      %vm1265 = vcmp.eq.s32.totalorder %v1261, 1
      %vm1266 = vcmp.eq.s32.totalorder %v1262, 1
      %vm1267 = vcmp.eq.s32.totalorder %v1263, 1
      %vm1268 = vcmp.eq.s32.totalorder %v1264, 1
      %v1269 = vsel %vm1265, %v1256, -1e+30
      %v1270 = vsel %vm1266, %v1255, -1e+30
      %v1271 = vsel %vm1267, %v1254, -1e+30
      %v1272 = vsel %vm1268, %v1253, -1e+30
      %v1273 = vmax.f32 %v1240, %v1269
      %v1274 = vmax.f32 %v1241, %v1270
      %v1275 = vmax.f32 %v1242, %v1271
      %v1276 = vmax.f32 %v1243, %v1272
      %1277 = vrot.lane.b32.xlu0 %v1273, 68
      %v1278 = vpop.permute.xlu0 %1277
      %1279 = vrot.lane.b32.xlu0 %v1274, 68
      %v1280 = vpop.permute.xlu0 %1279
      %1281 = vrot.lane.b32.xlu0 %v1275, 68
      %v1282 = vpop.permute.xlu0 %1281
      %1283 = vrot.lane.b32.xlu0 %v1276, 68
      %v1284 = vpop.permute.xlu0 %1283
      %vm1285 = vcmp.lt.s32.totalorder %v280, 68
      %v1286 = vsel %vm1285, %v1282, %v1284
      %v1287 = vsel %vm1285, %v1280, %v1282
      %v1288 = vsel %vm1285, %v1278, %v1280
      %v1289 = vsel %vm1285, %v1284, %v1278
      %vm1290 = vmand %vm833, %vm1075
      %vm1291 = vmand %vm834, %vm1076
      %vm1292 = vmand %vm835, %vm1077
      %vm1293 = vmand %vm836, %vm1078
      %v1294 = vsel %vm1290, 1, 0
      %v1295 = vsel %vm1291, 1, 0
      %v1296 = vsel %vm1292, 1, 0
      %v1297 = vsel %vm1293, 1, 0
      %vm1298 = vcmp.eq.s32.totalorder %v1294, 1
      %vm1299 = vcmp.eq.s32.totalorder %v1295, 1
      %vm1300 = vcmp.eq.s32.totalorder %v1296, 1
      %vm1301 = vcmp.eq.s32.totalorder %v1297, 1
      %v1302 = vsel %vm1298, %v1289, -1e+30
      %v1303 = vsel %vm1299, %v1288, -1e+30
      %v1304 = vsel %vm1300, %v1287, -1e+30
      %v1305 = vsel %vm1301, %v1286, -1e+30
      %v1306 = vmax.f32 %v1273, %v1302
      %v1307 = vmax.f32 %v1274, %v1303
      %v1308 = vmax.f32 %v1275, %v1304
      %v1309 = vmax.f32 %v1276, %v1305
      %1310 = vrot.lane.b32.xlu0 %v1306, 8
      %v1311 = vpop.permute.xlu0 %1310
      %1312 = vrot.lane.b32.xlu0 %v1307, 8
      %v1313 = vpop.permute.xlu0 %1312
      %1314 = vrot.lane.b32.xlu0 %v1308, 8
      %v1315 = vpop.permute.xlu0 %1314
      %1316 = vrot.lane.b32.xlu0 %v1309, 8
      %v1317 = vpop.permute.xlu0 %1316
      %v1318 = vsel %vm861, %v1315, %v1317
      %v1319 = vsel %vm861, %v1313, %v1315
      %v1320 = vsel %vm861, %v1311, %v1313
      %v1321 = vsel %vm861, %v1317, %v1311
      %vm1322 = vmand %vm866, %vm1095
      %vm1323 = vmand %vm867, %vm1096
      %vm1324 = vmand %vm868, %vm1097
      %vm1325 = vmand %vm869, %vm1098
      %v1326 = vsel %vm1322, 1, 0
      %v1327 = vsel %vm1323, 1, 0
      %v1328 = vsel %vm1324, 1, 0
      %v1329 = vsel %vm1325, 1, 0
      %vm1330 = vcmp.eq.s32.totalorder %v1326, 1
      %vm1331 = vcmp.eq.s32.totalorder %v1327, 1
      %vm1332 = vcmp.eq.s32.totalorder %v1328, 1
      %vm1333 = vcmp.eq.s32.totalorder %v1329, 1
      %v1334 = vsel %vm1330, %v1318, -1e+30
      %v1335 = vsel %vm1331, %v1321, -1e+30
      %v1336 = vsel %vm1332, %v1320, -1e+30
      %v1337 = vsel %vm1333, %v1319, -1e+30
      %v1338 = vmax.f32 %v1306, %v1334
      %v1339 = vmax.f32 %v1307, %v1335
      %v1340 = vmax.f32 %v1308, %v1336
      %v1341 = vmax.f32 %v1309, %v1337
      %1342 = vrot.lane.b32.xlu0 %v759, 111
      %v1343 = vpop.permute.xlu0 %1342
      %1344 = vrot.lane.b32.xlu0 %v760, 111
      %v1345 = vpop.permute.xlu0 %1344
      %1346 = vrot.lane.b32.xlu0 %v761, 111
      %v1347 = vpop.permute.xlu0 %1346
      %1348 = vrot.lane.b32.xlu0 %v762, 111
      %v1349 = vpop.permute.xlu0 %1348
      %v1350 = vsel %vm515, %v1347, %v1349
      %v1351 = vsel %vm515, %v1345, %v1347
      %v1352 = vsel %vm515, %v1343, %v1345
      %v1353 = vsel %vm515, %v1349, %v1343
      %v1354 = vsel %vm528, %v1352, -1e+30
      %v1355 = vsel %vm529, %v1351, -1e+30
      %v1356 = vsel %vm530, %v1350, -1e+30
      %v1357 = vsel %vm531, %v1353, -1e+30
      %v1358 = vmax.f32 %v759, %v1354
      %v1359 = vmax.f32 %v760, %v1355
      %v1360 = vmax.f32 %v761, %v1356
      %v1361 = vmax.f32 %v762, %v1357
      %1362 = vrot.lane.b32.xlu0 %v1358, 94
      %v1363 = vpop.permute.xlu0 %1362
      %1364 = vrot.lane.b32.xlu0 %v1359, 94
      %v1365 = vpop.permute.xlu0 %1364
      %1366 = vrot.lane.b32.xlu0 %v1360, 94
      %v1367 = vpop.permute.xlu0 %1366
      %1368 = vrot.lane.b32.xlu0 %v1361, 94
      %v1369 = vpop.permute.xlu0 %1368
      %vm1370 = vcmp.lt.s32.totalorder %v280, 94
      %v1371 = vsel %vm1370, %v1367, %v1369
      %v1372 = vsel %vm1370, %v1365, %v1367
      %v1373 = vsel %vm1370, %v1363, %v1365
      %v1374 = vsel %vm1370, %v1369, %v1363
      %vm1375 = vmand %vm919, %vm1148
      %vm1376 = vmand %vm920, %vm1149
      %vm1377 = vmand %vm921, %vm1150
      %vm1378 = vmand %vm922, %vm1151
      %v1379 = vsel %vm1375, 1, 0
      %v1380 = vsel %vm1376, 1, 0
      %v1381 = vsel %vm1377, 1, 0
      %v1382 = vsel %vm1378, 1, 0
      %vm1383 = vcmp.eq.s32.totalorder %v1379, 1
      %vm1384 = vcmp.eq.s32.totalorder %v1380, 1
      %vm1385 = vcmp.eq.s32.totalorder %v1381, 1
      %vm1386 = vcmp.eq.s32.totalorder %v1382, 1
      %v1387 = vsel %vm1383, %v1373, -1e+30
      %v1388 = vsel %vm1384, %v1372, -1e+30
      %v1389 = vsel %vm1385, %v1371, -1e+30
      %v1390 = vsel %vm1386, %v1374, -1e+30
      %v1391 = vmax.f32 %v1358, %v1387
      %v1392 = vmax.f32 %v1359, %v1388
      %v1393 = vmax.f32 %v1360, %v1389
      %v1394 = vmax.f32 %v1361, %v1390
      %1395 = vrot.lane.b32.xlu0 %v1391, 60
      %v1396 = vpop.permute.xlu0 %1395
      %1397 = vrot.lane.b32.xlu0 %v1392, 60
      %v1398 = vpop.permute.xlu0 %1397
      %1399 = vrot.lane.b32.xlu0 %v1393, 60
      %v1400 = vpop.permute.xlu0 %1399
      %1401 = vrot.lane.b32.xlu0 %v1394, 60
      %v1402 = vpop.permute.xlu0 %1401
      %vm1403 = vcmp.lt.s32.totalorder %v280, 60
      %v1404 = vsel %vm1403, %v1400, %v1402
      %v1405 = vsel %vm1403, %v1398, %v1400
      %v1406 = vsel %vm1403, %v1396, %v1398
      %v1407 = vsel %vm1403, %v1402, %v1396
      %vm1408 = vmand %vm952, %vm1180
      %vm1409 = vmand %vm953, %vm1181
      %vm1410 = vmand %vm954, %vm1182
      %vm1411 = vmand %vm955, %vm1183
      %v1412 = vsel %vm1408, 1, 0
      %v1413 = vsel %vm1409, 1, 0
      %v1414 = vsel %vm1410, 1, 0
      %v1415 = vsel %vm1411, 1, 0
      %vm1416 = vcmp.eq.s32.totalorder %v1412, 1
      %vm1417 = vcmp.eq.s32.totalorder %v1413, 1
      %vm1418 = vcmp.eq.s32.totalorder %v1414, 1
      %vm1419 = vcmp.eq.s32.totalorder %v1415, 1
      %v1420 = vsel %vm1416, %v1406, -1e+30
      %v1421 = vsel %vm1417, %v1405, -1e+30
      %v1422 = vsel %vm1418, %v1404, -1e+30
      %v1423 = vsel %vm1419, %v1407, -1e+30
      %v1424 = vmax.f32 %v1391, %v1420
      %v1425 = vmax.f32 %v1392, %v1421
      %v1426 = vmax.f32 %v1393, %v1422
      %v1427 = vmax.f32 %v1394, %v1423
      %1428 = vrot.lane.b32.xlu0 %v1424, 120
      %v1429 = vpop.permute.xlu0 %1428
      %1430 = vrot.lane.b32.xlu0 %v1425, 120
      %v1431 = vpop.permute.xlu0 %1430
      %1432 = vrot.lane.b32.xlu0 %v1426, 120
      %v1433 = vpop.permute.xlu0 %1432
      %1434 = vrot.lane.b32.xlu0 %v1427, 120
      %v1435 = vpop.permute.xlu0 %1434
      %v1436 = vsel %vm980, %v1433, %v1435
      %v1437 = vsel %vm980, %v1431, %v1433
      %v1438 = vsel %vm980, %v1429, %v1431
      %v1439 = vsel %vm980, %v1435, %v1429
      %vm1440 = vmand %vm985, %vm1200
      %vm1441 = vmand %vm986, %vm1201
      %vm1442 = vmand %vm987, %vm1202
      %vm1443 = vmand %vm988, %vm1203
      %v1444 = vsel %vm1440, 1, 0
      %v1445 = vsel %vm1441, 1, 0
      %v1446 = vsel %vm1442, 1, 0
      %v1447 = vsel %vm1443, 1, 0
      %vm1448 = vcmp.eq.s32.totalorder %v1444, 1
      %vm1449 = vcmp.eq.s32.totalorder %v1445, 1
      %vm1450 = vcmp.eq.s32.totalorder %v1446, 1
      %vm1451 = vcmp.eq.s32.totalorder %v1447, 1
      %v1452 = vsel %vm1448, %v1437, -1e+30
      %v1453 = vsel %vm1449, %v1436, -1e+30
      %v1454 = vsel %vm1450, %v1439, -1e+30
      %v1455 = vsel %vm1451, %v1438, -1e+30
      %v1456 = vmax.f32 %v1424, %v1452
      %v1457 = vmax.f32 %v1425, %v1453
      %v1458 = vmax.f32 %v1426, %v1454
      %v1459 = vmax.f32 %v1427, %v1455
      %v1460 = vmax.f32 %v1338, %v1456
      %v1461 = vmax.f32 %v1339, %v1457
      %v1462 = vmax.f32 %v1340, %v1458
      %v1463 = vmax.f32 %v1341, %v1459
      %1464 = vrot.lane.b32.xlu0 %v763, 15
      %v1465 = vpop.permute.xlu0 %1464
      %1466 = vrot.lane.b32.xlu0 %v764, 15
      %v1467 = vpop.permute.xlu0 %1466
      %1468 = vrot.lane.b32.xlu0 %v765, 15
      %v1469 = vpop.permute.xlu0 %1468
      %1470 = vrot.lane.b32.xlu0 %v766, 15
      %v1471 = vpop.permute.xlu0 %1470
      %v1472 = vsel %vm374, %v1469, %v1471
      %v1473 = vsel %vm374, %v1467, %v1469
      %v1474 = vsel %vm374, %v1465, %v1467
      %v1475 = vsel %vm374, %v1471, %v1465
      %v1476 = vsel %vm391, %v1475, -1e+30
      %v1477 = vsel %vm392, %v1474, -1e+30
      %v1478 = vsel %vm393, %v1473, -1e+30
      %v1479 = vsel %vm394, %v1472, -1e+30
      %v1480 = vmax.f32 %v763, %v1476
      %v1481 = vmax.f32 %v764, %v1477
      %v1482 = vmax.f32 %v765, %v1478
      %v1483 = vmax.f32 %v766, %v1479
      %1484 = vrot.lane.b32.xlu0 %v1480, 30
      %v1485 = vpop.permute.xlu0 %1484
      %1486 = vrot.lane.b32.xlu0 %v1481, 30
      %v1487 = vpop.permute.xlu0 %1486
      %1488 = vrot.lane.b32.xlu0 %v1482, 30
      %v1489 = vpop.permute.xlu0 %1488
      %1490 = vrot.lane.b32.xlu0 %v1483, 30
      %v1491 = vpop.permute.xlu0 %1490
      %vm1492 = vcmp.lt.s32.totalorder %v280, 30
      %v1493 = vsel %vm1492, %v1489, %v1491
      %v1494 = vsel %vm1492, %v1487, %v1489
      %v1495 = vsel %vm1492, %v1485, %v1487
      %v1496 = vsel %vm1492, %v1491, %v1485
      %vm1497 = vmand %vm919, %vm1042
      %vm1498 = vmand %vm920, %vm1043
      %vm1499 = vmand %vm921, %vm1044
      %vm1500 = vmand %vm922, %vm1045
      %v1501 = vsel %vm1497, 1, 0
      %v1502 = vsel %vm1498, 1, 0
      %v1503 = vsel %vm1499, 1, 0
      %v1504 = vsel %vm1500, 1, 0
      %vm1505 = vcmp.eq.s32.totalorder %v1501, 1
      %vm1506 = vcmp.eq.s32.totalorder %v1502, 1
      %vm1507 = vcmp.eq.s32.totalorder %v1503, 1
      %vm1508 = vcmp.eq.s32.totalorder %v1504, 1
      %v1509 = vsel %vm1505, %v1496, -1e+30
      %v1510 = vsel %vm1506, %v1495, -1e+30
      %v1511 = vsel %vm1507, %v1494, -1e+30
      %v1512 = vsel %vm1508, %v1493, -1e+30
      %v1513 = vmax.f32 %v1480, %v1509
      %v1514 = vmax.f32 %v1481, %v1510
      %v1515 = vmax.f32 %v1482, %v1511
      %v1516 = vmax.f32 %v1483, %v1512
      %1517 = vrot.lane.b32.xlu0 %v1513, 60
      %v1518 = vpop.permute.xlu0 %1517
      %1519 = vrot.lane.b32.xlu0 %v1514, 60
      %v1520 = vpop.permute.xlu0 %1519
      %1521 = vrot.lane.b32.xlu0 %v1515, 60
      %v1522 = vpop.permute.xlu0 %1521
      %1523 = vrot.lane.b32.xlu0 %v1516, 60
      %v1524 = vpop.permute.xlu0 %1523
      %v1525 = vsel %vm1403, %v1522, %v1524
      %v1526 = vsel %vm1403, %v1520, %v1522
      %v1527 = vsel %vm1403, %v1518, %v1520
      %v1528 = vsel %vm1403, %v1524, %v1518
      %vm1529 = vmand %vm952, %vm1075
      %vm1530 = vmand %vm953, %vm1076
      %vm1531 = vmand %vm954, %vm1077
      %vm1532 = vmand %vm955, %vm1078
      %v1533 = vsel %vm1529, 1, 0
      %v1534 = vsel %vm1530, 1, 0
      %v1535 = vsel %vm1531, 1, 0
      %v1536 = vsel %vm1532, 1, 0
      %vm1537 = vcmp.eq.s32.totalorder %v1533, 1
      %vm1538 = vcmp.eq.s32.totalorder %v1534, 1
      %vm1539 = vcmp.eq.s32.totalorder %v1535, 1
      %vm1540 = vcmp.eq.s32.totalorder %v1536, 1
      %v1541 = vsel %vm1537, %v1528, -1e+30
      %v1542 = vsel %vm1538, %v1527, -1e+30
      %v1543 = vsel %vm1539, %v1526, -1e+30
      %v1544 = vsel %vm1540, %v1525, -1e+30
      %v1545 = vmax.f32 %v1513, %v1541
      %v1546 = vmax.f32 %v1514, %v1542
      %v1547 = vmax.f32 %v1515, %v1543
      %v1548 = vmax.f32 %v1516, %v1544
      %1549 = vrot.lane.b32.xlu0 %v1545, 120
      %v1550 = vpop.permute.xlu0 %1549
      %1551 = vrot.lane.b32.xlu0 %v1546, 120
      %v1552 = vpop.permute.xlu0 %1551
      %1553 = vrot.lane.b32.xlu0 %v1547, 120
      %v1554 = vpop.permute.xlu0 %1553
      %1555 = vrot.lane.b32.xlu0 %v1548, 120
      %v1556 = vpop.permute.xlu0 %1555
      %v1557 = vsel %vm980, %v1554, %v1556
      %v1558 = vsel %vm980, %v1552, %v1554
      %v1559 = vsel %vm980, %v1550, %v1552
      %v1560 = vsel %vm980, %v1556, %v1550
      %vm1561 = vmand %vm985, %vm1095
      %vm1562 = vmand %vm986, %vm1096
      %vm1563 = vmand %vm987, %vm1097
      %vm1564 = vmand %vm988, %vm1098
      %v1565 = vsel %vm1561, 1, 0
      %v1566 = vsel %vm1562, 1, 0
      %v1567 = vsel %vm1563, 1, 0
      %v1568 = vsel %vm1564, 1, 0
      %vm1569 = vcmp.eq.s32.totalorder %v1565, 1
      %vm1570 = vcmp.eq.s32.totalorder %v1566, 1
      %vm1571 = vcmp.eq.s32.totalorder %v1567, 1
      %vm1572 = vcmp.eq.s32.totalorder %v1568, 1
      %v1573 = vsel %vm1569, %v1560, -1e+30
      %v1574 = vsel %vm1570, %v1559, -1e+30
      %v1575 = vsel %vm1571, %v1558, -1e+30
      %v1576 = vsel %vm1572, %v1557, -1e+30
      %v1577 = vmax.f32 %v1545, %v1573
      %v1578 = vmax.f32 %v1546, %v1574
      %v1579 = vmax.f32 %v1547, %v1575
      %v1580 = vmax.f32 %v1548, %v1576
      %1581 = vrot.lane.b32.xlu0 %v763, 113
      %v1582 = vpop.permute.xlu0 %1581
      %1583 = vrot.lane.b32.xlu0 %v764, 113
      %v1584 = vpop.permute.xlu0 %1583
      %1585 = vrot.lane.b32.xlu0 %v765, 113
      %v1586 = vpop.permute.xlu0 %1585
      %1587 = vrot.lane.b32.xlu0 %v766, 113
      %v1588 = vpop.permute.xlu0 %1587
      %v1589 = vsel %vm457, %v1586, %v1588
      %v1590 = vsel %vm457, %v1584, %v1586
      %v1591 = vsel %vm457, %v1582, %v1584
      %v1592 = vsel %vm457, %v1588, %v1582
      %v1593 = vsel %vm474, %v1591, -1e+30
      %v1594 = vsel %vm475, %v1590, -1e+30
      %v1595 = vsel %vm476, %v1589, -1e+30
      %v1596 = vsel %vm477, %v1592, -1e+30
      %v1597 = vmax.f32 %v763, %v1593
      %v1598 = vmax.f32 %v764, %v1594
      %v1599 = vmax.f32 %v765, %v1595
      %v1600 = vmax.f32 %v766, %v1596
      %1601 = vrot.lane.b32.xlu0 %v1597, 98
      %v1602 = vpop.permute.xlu0 %1601
      %1603 = vrot.lane.b32.xlu0 %v1598, 98
      %v1604 = vpop.permute.xlu0 %1603
      %1605 = vrot.lane.b32.xlu0 %v1599, 98
      %v1606 = vpop.permute.xlu0 %1605
      %1607 = vrot.lane.b32.xlu0 %v1600, 98
      %v1608 = vpop.permute.xlu0 %1607
      %vm1609 = vcmp.lt.s32.totalorder %v280, 98
      %v1610 = vsel %vm1609, %v1606, %v1608
      %v1611 = vsel %vm1609, %v1604, %v1606
      %v1612 = vsel %vm1609, %v1602, %v1604
      %v1613 = vsel %vm1609, %v1608, %v1602
      %vm1614 = vmand %vm800, %vm1148
      %vm1615 = vmand %vm801, %vm1149
      %vm1616 = vmand %vm802, %vm1150
      %vm1617 = vmand %vm803, %vm1151
      %v1618 = vsel %vm1614, 1, 0
      %v1619 = vsel %vm1615, 1, 0
      %v1620 = vsel %vm1616, 1, 0
      %v1621 = vsel %vm1617, 1, 0
      %vm1622 = vcmp.eq.s32.totalorder %v1618, 1
      %vm1623 = vcmp.eq.s32.totalorder %v1619, 1
      %vm1624 = vcmp.eq.s32.totalorder %v1620, 1
      %vm1625 = vcmp.eq.s32.totalorder %v1621, 1
      %v1626 = vsel %vm1622, %v1612, -1e+30
      %v1627 = vsel %vm1623, %v1611, -1e+30
      %v1628 = vsel %vm1624, %v1610, -1e+30
      %v1629 = vsel %vm1625, %v1613, -1e+30
      %v1630 = vmax.f32 %v1597, %v1626
      %v1631 = vmax.f32 %v1598, %v1627
      %v1632 = vmax.f32 %v1599, %v1628
      %v1633 = vmax.f32 %v1600, %v1629
      %1634 = vrot.lane.b32.xlu0 %v1630, 68
      %v1635 = vpop.permute.xlu0 %1634
      %1636 = vrot.lane.b32.xlu0 %v1631, 68
      %v1637 = vpop.permute.xlu0 %1636
      %1638 = vrot.lane.b32.xlu0 %v1632, 68
      %v1639 = vpop.permute.xlu0 %1638
      %1640 = vrot.lane.b32.xlu0 %v1633, 68
      %v1641 = vpop.permute.xlu0 %1640
      %v1642 = vsel %vm1285, %v1639, %v1641
      %v1643 = vsel %vm1285, %v1637, %v1639
      %v1644 = vsel %vm1285, %v1635, %v1637
      %v1645 = vsel %vm1285, %v1641, %v1635
      %vm1646 = vmand %vm833, %vm1180
      %vm1647 = vmand %vm834, %vm1181
      %vm1648 = vmand %vm835, %vm1182
      %vm1649 = vmand %vm836, %vm1183
      %v1650 = vsel %vm1646, 1, 0
      %v1651 = vsel %vm1647, 1, 0
      %v1652 = vsel %vm1648, 1, 0
      %v1653 = vsel %vm1649, 1, 0
      %vm1654 = vcmp.eq.s32.totalorder %v1650, 1
      %vm1655 = vcmp.eq.s32.totalorder %v1651, 1
      %vm1656 = vcmp.eq.s32.totalorder %v1652, 1
      %vm1657 = vcmp.eq.s32.totalorder %v1653, 1
      %v1658 = vsel %vm1654, %v1644, -1e+30
      %v1659 = vsel %vm1655, %v1643, -1e+30
      %v1660 = vsel %vm1656, %v1642, -1e+30
      %v1661 = vsel %vm1657, %v1645, -1e+30
      %v1662 = vmax.f32 %v1630, %v1658
      %v1663 = vmax.f32 %v1631, %v1659
      %v1664 = vmax.f32 %v1632, %v1660
      %v1665 = vmax.f32 %v1633, %v1661
      %1666 = vrot.lane.b32.xlu0 %v1662, 8
      %v1667 = vpop.permute.xlu0 %1666
      %1668 = vrot.lane.b32.xlu0 %v1663, 8
      %v1669 = vpop.permute.xlu0 %1668
      %1670 = vrot.lane.b32.xlu0 %v1664, 8
      %v1671 = vpop.permute.xlu0 %1670
      %1672 = vrot.lane.b32.xlu0 %v1665, 8
      %v1673 = vpop.permute.xlu0 %1672
      %v1674 = vsel %vm861, %v1671, %v1673
      %v1675 = vsel %vm861, %v1669, %v1671
      %v1676 = vsel %vm861, %v1667, %v1669
      %v1677 = vsel %vm861, %v1673, %v1667
      %vm1678 = vmand %vm866, %vm1200
      %vm1679 = vmand %vm867, %vm1201
      %vm1680 = vmand %vm868, %vm1202
      %vm1681 = vmand %vm869, %vm1203
      %v1682 = vsel %vm1678, 1, 0
      %v1683 = vsel %vm1679, 1, 0
      %v1684 = vsel %vm1680, 1, 0
      %v1685 = vsel %vm1681, 1, 0
      %vm1686 = vcmp.eq.s32.totalorder %v1682, 1
      %vm1687 = vcmp.eq.s32.totalorder %v1683, 1
      %vm1688 = vcmp.eq.s32.totalorder %v1684, 1
      %vm1689 = vcmp.eq.s32.totalorder %v1685, 1
      %v1690 = vsel %vm1686, %v1676, -1e+30
      %v1691 = vsel %vm1687, %v1675, -1e+30
      %v1692 = vsel %vm1688, %v1674, -1e+30
      %v1693 = vsel %vm1689, %v1677, -1e+30
      %v1694 = vmax.f32 %v1662, %v1690
      %v1695 = vmax.f32 %v1663, %v1691
      %v1696 = vmax.f32 %v1664, %v1692
      %v1697 = vmax.f32 %v1665, %v1693
      %v1698 = vmax.f32 %v1577, %v1694
      %v1699 = vmax.f32 %v1578, %v1695
      %v1700 = vmax.f32 %v1579, %v1696
      %v1701 = vmax.f32 %v1580, %v1697
      %1702 = vrot.lane.b32.xlu0 %v1005, 17
      %v1703 = vpop.permute.xlu0 %1702
      %1704 = vrot.lane.b32.xlu0 %v1220, 17
      %v1705 = vpop.permute.xlu0 %1704
      %1706 = vrot.lane.b32.xlu0 %v1460, 17
      %v1707 = vpop.permute.xlu0 %1706
      %1708 = vrot.lane.b32.xlu0 %v1698, 17
      %v1709 = vpop.permute.xlu0 %1708
      %1710 = vrot.lane.b32.xlu0 %v1006, 17
      %v1711 = vpop.permute.xlu0 %1710
      %1712 = vrot.lane.b32.xlu0 %v1221, 17
      %v1713 = vpop.permute.xlu0 %1712
      %1714 = vrot.lane.b32.xlu0 %v1461, 17
      %v1715 = vpop.permute.xlu0 %1714
      %1716 = vrot.lane.b32.xlu0 %v1699, 17
      %v1717 = vpop.permute.xlu0 %1716
      %1718 = vrot.lane.b32.xlu0 %v1007, 17
      %v1719 = vpop.permute.xlu0 %1718
      %1720 = vrot.lane.b32.xlu0 %v1222, 17
      %v1721 = vpop.permute.xlu0 %1720
      %1722 = vrot.lane.b32.xlu0 %v1462, 17
      %v1723 = vpop.permute.xlu0 %1722
      %1724 = vrot.lane.b32.xlu0 %v1700, 17
      %v1725 = vpop.permute.xlu0 %1724
      %1726 = vrot.lane.b32.xlu0 %v1008, 17
      %v1727 = vpop.permute.xlu0 %1726
      %1728 = vrot.lane.b32.xlu0 %v1223, 17
      %v1729 = vpop.permute.xlu0 %1728
      %1730 = vrot.lane.b32.xlu0 %v1463, 17
      %v1731 = vpop.permute.xlu0 %1730
      %1732 = vrot.lane.b32.xlu0 %v1701, 17
      %v1733 = vpop.permute.xlu0 %1732
      %v1734 = vsel %vm312, %v1719, %v1727
      %v1735 = vsel %vm312, %v1721, %v1729
      %v1736 = vsel %vm312, %v1723, %v1731
      %v1737 = vsel %vm312, %v1725, %v1733
      %v1738 = vsel %vm312, %v1711, %v1719
      %v1739 = vsel %vm312, %v1713, %v1721
      %v1740 = vsel %vm312, %v1715, %v1723
      %v1741 = vsel %vm312, %v1717, %v1725
      %v1742 = vsel %vm312, %v1703, %v1711
      %v1743 = vsel %vm312, %v1705, %v1713
      %v1744 = vsel %vm312, %v1707, %v1715
      %v1745 = vsel %vm312, %v1709, %v1717
      %v1746 = vsel %vm312, %v1727, %v1703
      %v1747 = vsel %vm312, %v1729, %v1705
      %v1748 = vsel %vm312, %v1731, %v1707
      %v1749 = vsel %vm312, %v1733, %v1709
      %v1750 = vsel %vm333, %v1746, 0.0
      %v1751 = vsel %vm334, %v1742, 0.0
      %v1752 = vsel %vm335, %v1738, 0.0
      %v1753 = vsel %vm336, %v1734, 0.0
      %v1754 = vsel %vm333, %v1747, 0.0
      %v1755 = vsel %vm334, %v1743, 0.0
      %v1756 = vsel %vm335, %v1739, 0.0
      %v1757 = vsel %vm336, %v1735, 0.0
      %v1758 = vsel %vm333, %v1748, 0.0
      %v1759 = vsel %vm334, %v1744, 0.0
      %v1760 = vsel %vm335, %v1740, 0.0
      %v1761 = vsel %vm336, %v1736, 0.0
      %v1762 = vsel %vm333, %v1749, 0.0
      %v1763 = vsel %vm334, %v1745, 0.0
      %v1764 = vsel %vm335, %v1741, 0.0
      %v1765 = vsel %vm336, %v1737, 0.0
      %1766 = vrot.lane.b32.xlu0 %v1005, 16
      %v1767 = vpop.permute.xlu0 %1766
      %1768 = vrot.lane.b32.xlu0 %v1220, 16
      %v1769 = vpop.permute.xlu0 %1768
      %1770 = vrot.lane.b32.xlu0 %v1460, 16
      %v1771 = vpop.permute.xlu0 %1770
      %1772 = vrot.lane.b32.xlu0 %v1698, 16
      %v1773 = vpop.permute.xlu0 %1772
      %1774 = vrot.lane.b32.xlu0 %v1006, 16
      %v1775 = vpop.permute.xlu0 %1774
      %1776 = vrot.lane.b32.xlu0 %v1221, 16
      %v1777 = vpop.permute.xlu0 %1776
      %1778 = vrot.lane.b32.xlu0 %v1461, 16
      %v1779 = vpop.permute.xlu0 %1778
      %1780 = vrot.lane.b32.xlu0 %v1699, 16
      %v1781 = vpop.permute.xlu0 %1780
      %1782 = vrot.lane.b32.xlu0 %v1007, 16
      %v1783 = vpop.permute.xlu0 %1782
      %1784 = vrot.lane.b32.xlu0 %v1222, 16
      %v1785 = vpop.permute.xlu0 %1784
      %1786 = vrot.lane.b32.xlu0 %v1462, 16
      %v1787 = vpop.permute.xlu0 %1786
      %1788 = vrot.lane.b32.xlu0 %v1700, 16
      %v1789 = vpop.permute.xlu0 %1788
      %1790 = vrot.lane.b32.xlu0 %v1008, 16
      %v1791 = vpop.permute.xlu0 %1790
      %1792 = vrot.lane.b32.xlu0 %v1223, 16
      %v1793 = vpop.permute.xlu0 %1792
      %1794 = vrot.lane.b32.xlu0 %v1463, 16
      %v1795 = vpop.permute.xlu0 %1794
      %1796 = vrot.lane.b32.xlu0 %v1701, 16
      %v1797 = vpop.permute.xlu0 %1796
      %v1798 = vsel %vm349, %v1783, %v1791
      %v1799 = vsel %vm349, %v1785, %v1793
      %v1800 = vsel %vm349, %v1787, %v1795
      %v1801 = vsel %vm349, %v1789, %v1797
      %v1802 = vsel %vm349, %v1775, %v1783
      %v1803 = vsel %vm349, %v1777, %v1785
      %v1804 = vsel %vm349, %v1779, %v1787
      %v1805 = vsel %vm349, %v1781, %v1789
      %v1806 = vsel %vm349, %v1767, %v1775
      %v1807 = vsel %vm349, %v1769, %v1777
      %v1808 = vsel %vm349, %v1771, %v1779
      %v1809 = vsel %vm349, %v1773, %v1781
      %v1810 = vsel %vm349, %v1791, %v1767
      %v1811 = vsel %vm349, %v1793, %v1769
      %v1812 = vsel %vm349, %v1795, %v1771
      %v1813 = vsel %vm349, %v1797, %v1773
      %v1814 = vsel %vm358, %v1810, 0.0
      %v1815 = vsel %vm359, %v1806, 0.0
      %v1816 = vsel %vm360, %v1802, 0.0
      %v1817 = vsel %vm361, %v1798, 0.0
      %v1818 = vsel %vm358, %v1811, 0.0
      %v1819 = vsel %vm359, %v1807, 0.0
      %v1820 = vsel %vm360, %v1803, 0.0
      %v1821 = vsel %vm361, %v1799, 0.0
      %v1822 = vsel %vm358, %v1812, 0.0
      %v1823 = vsel %vm359, %v1808, 0.0
      %v1824 = vsel %vm360, %v1804, 0.0
      %v1825 = vsel %vm361, %v1800, 0.0
      %v1826 = vsel %vm358, %v1813, 0.0
      %v1827 = vsel %vm359, %v1809, 0.0
      %v1828 = vsel %vm360, %v1805, 0.0
      %v1829 = vsel %vm361, %v1801, 0.0
      %1830 = vrot.lane.b32.xlu0 %v1005, 15
      %v1831 = vpop.permute.xlu0 %1830
      %1832 = vrot.lane.b32.xlu0 %v1220, 15
      %v1833 = vpop.permute.xlu0 %1832
      %1834 = vrot.lane.b32.xlu0 %v1460, 15
      %v1835 = vpop.permute.xlu0 %1834
      %1836 = vrot.lane.b32.xlu0 %v1698, 15
      %v1837 = vpop.permute.xlu0 %1836
      %1838 = vrot.lane.b32.xlu0 %v1006, 15
      %v1839 = vpop.permute.xlu0 %1838
      %1840 = vrot.lane.b32.xlu0 %v1221, 15
      %v1841 = vpop.permute.xlu0 %1840
      %1842 = vrot.lane.b32.xlu0 %v1461, 15
      %v1843 = vpop.permute.xlu0 %1842
      %1844 = vrot.lane.b32.xlu0 %v1699, 15
      %v1845 = vpop.permute.xlu0 %1844
      %1846 = vrot.lane.b32.xlu0 %v1007, 15
      %v1847 = vpop.permute.xlu0 %1846
      %1848 = vrot.lane.b32.xlu0 %v1222, 15
      %v1849 = vpop.permute.xlu0 %1848
      %1850 = vrot.lane.b32.xlu0 %v1462, 15
      %v1851 = vpop.permute.xlu0 %1850
      %1852 = vrot.lane.b32.xlu0 %v1700, 15
      %v1853 = vpop.permute.xlu0 %1852
      %1854 = vrot.lane.b32.xlu0 %v1008, 15
      %v1855 = vpop.permute.xlu0 %1854
      %1856 = vrot.lane.b32.xlu0 %v1223, 15
      %v1857 = vpop.permute.xlu0 %1856
      %1858 = vrot.lane.b32.xlu0 %v1463, 15
      %v1859 = vpop.permute.xlu0 %1858
      %1860 = vrot.lane.b32.xlu0 %v1701, 15
      %v1861 = vpop.permute.xlu0 %1860
      %v1862 = vsel %vm374, %v1847, %v1855
      %v1863 = vsel %vm374, %v1849, %v1857
      %v1864 = vsel %vm374, %v1851, %v1859
      %v1865 = vsel %vm374, %v1853, %v1861
      %v1866 = vsel %vm374, %v1839, %v1847
      %v1867 = vsel %vm374, %v1841, %v1849
      %v1868 = vsel %vm374, %v1843, %v1851
      %v1869 = vsel %vm374, %v1845, %v1853
      %v1870 = vsel %vm374, %v1831, %v1839
      %v1871 = vsel %vm374, %v1833, %v1841
      %v1872 = vsel %vm374, %v1835, %v1843
      %v1873 = vsel %vm374, %v1837, %v1845
      %v1874 = vsel %vm374, %v1855, %v1831
      %v1875 = vsel %vm374, %v1857, %v1833
      %v1876 = vsel %vm374, %v1859, %v1835
      %v1877 = vsel %vm374, %v1861, %v1837
      %v1878 = vsel %vm391, %v1874, 0.0
      %v1879 = vsel %vm392, %v1870, 0.0
      %v1880 = vsel %vm393, %v1866, 0.0
      %v1881 = vsel %vm394, %v1862, 0.0
      %v1882 = vsel %vm391, %v1875, 0.0
      %v1883 = vsel %vm392, %v1871, 0.0
      %v1884 = vsel %vm393, %v1867, 0.0
      %v1885 = vsel %vm394, %v1863, 0.0
      %v1886 = vsel %vm391, %v1876, 0.0
      %v1887 = vsel %vm392, %v1872, 0.0
      %v1888 = vsel %vm393, %v1868, 0.0
      %v1889 = vsel %vm394, %v1864, 0.0
      %v1890 = vsel %vm391, %v1877, 0.0
      %v1891 = vsel %vm392, %v1873, 0.0
      %v1892 = vsel %vm393, %v1869, 0.0
      %v1893 = vsel %vm394, %v1865, 0.0
      %1894 = vrot.lane.b32.xlu0 %v1005, 1
      %v1895 = vpop.permute.xlu0 %1894
      %1896 = vrot.lane.b32.xlu0 %v1220, 1
      %v1897 = vpop.permute.xlu0 %1896
      %1898 = vrot.lane.b32.xlu0 %v1460, 1
      %v1899 = vpop.permute.xlu0 %1898
      %1900 = vrot.lane.b32.xlu0 %v1698, 1
      %v1901 = vpop.permute.xlu0 %1900
      %1902 = vrot.lane.b32.xlu0 %v1006, 1
      %v1903 = vpop.permute.xlu0 %1902
      %1904 = vrot.lane.b32.xlu0 %v1221, 1
      %v1905 = vpop.permute.xlu0 %1904
      %1906 = vrot.lane.b32.xlu0 %v1461, 1
      %v1907 = vpop.permute.xlu0 %1906
      %1908 = vrot.lane.b32.xlu0 %v1699, 1
      %v1909 = vpop.permute.xlu0 %1908
      %1910 = vrot.lane.b32.xlu0 %v1007, 1
      %v1911 = vpop.permute.xlu0 %1910
      %1912 = vrot.lane.b32.xlu0 %v1222, 1
      %v1913 = vpop.permute.xlu0 %1912
      %1914 = vrot.lane.b32.xlu0 %v1462, 1
      %v1915 = vpop.permute.xlu0 %1914
      %1916 = vrot.lane.b32.xlu0 %v1700, 1
      %v1917 = vpop.permute.xlu0 %1916
      %1918 = vrot.lane.b32.xlu0 %v1008, 1
      %v1919 = vpop.permute.xlu0 %1918
      %1920 = vrot.lane.b32.xlu0 %v1223, 1
      %v1921 = vpop.permute.xlu0 %1920
      %1922 = vrot.lane.b32.xlu0 %v1463, 1
      %v1923 = vpop.permute.xlu0 %1922
      %1924 = vrot.lane.b32.xlu0 %v1701, 1
      %v1925 = vpop.permute.xlu0 %1924
      %v1926 = vsel %vm407, %v1911, %v1919
      %v1927 = vsel %vm407, %v1913, %v1921
      %v1928 = vsel %vm407, %v1915, %v1923
      %v1929 = vsel %vm407, %v1917, %v1925
      %v1930 = vsel %vm407, %v1903, %v1911
      %v1931 = vsel %vm407, %v1905, %v1913
      %v1932 = vsel %vm407, %v1907, %v1915
      %v1933 = vsel %vm407, %v1909, %v1917
      %v1934 = vsel %vm407, %v1895, %v1903
      %v1935 = vsel %vm407, %v1897, %v1905
      %v1936 = vsel %vm407, %v1899, %v1907
      %v1937 = vsel %vm407, %v1901, %v1909
      %v1938 = vsel %vm407, %v1919, %v1895
      %v1939 = vsel %vm407, %v1921, %v1897
      %v1940 = vsel %vm407, %v1923, %v1899
      %v1941 = vsel %vm407, %v1925, %v1901
      %v1942 = vsel %vm416, %v1938, 0.0
      %v1943 = vsel %vm417, %v1934, 0.0
      %v1944 = vsel %vm418, %v1930, 0.0
      %v1945 = vsel %vm419, %v1926, 0.0
      %v1946 = vsel %vm416, %v1939, 0.0
      %v1947 = vsel %vm417, %v1935, 0.0
      %v1948 = vsel %vm418, %v1931, 0.0
      %v1949 = vsel %vm419, %v1927, 0.0
      %v1950 = vsel %vm416, %v1940, 0.0
      %v1951 = vsel %vm417, %v1936, 0.0
      %v1952 = vsel %vm418, %v1932, 0.0
      %v1953 = vsel %vm419, %v1928, 0.0
      %v1954 = vsel %vm416, %v1941, 0.0
      %v1955 = vsel %vm417, %v1937, 0.0
      %v1956 = vsel %vm418, %v1933, 0.0
      %v1957 = vsel %vm419, %v1929, 0.0
      %1958 = vrot.lane.b32.xlu0 %v1005, 127
      %v1959 = vpop.permute.xlu0 %1958
      %1960 = vrot.lane.b32.xlu0 %v1220, 127
      %v1961 = vpop.permute.xlu0 %1960
      %1962 = vrot.lane.b32.xlu0 %v1460, 127
      %v1963 = vpop.permute.xlu0 %1962
      %1964 = vrot.lane.b32.xlu0 %v1698, 127
      %v1965 = vpop.permute.xlu0 %1964
      %1966 = vrot.lane.b32.xlu0 %v1006, 127
      %v1967 = vpop.permute.xlu0 %1966
      %1968 = vrot.lane.b32.xlu0 %v1221, 127
      %v1969 = vpop.permute.xlu0 %1968
      %1970 = vrot.lane.b32.xlu0 %v1461, 127
      %v1971 = vpop.permute.xlu0 %1970
      %1972 = vrot.lane.b32.xlu0 %v1699, 127
      %v1973 = vpop.permute.xlu0 %1972
      %1974 = vrot.lane.b32.xlu0 %v1007, 127
      %v1975 = vpop.permute.xlu0 %1974
      %1976 = vrot.lane.b32.xlu0 %v1222, 127
      %v1977 = vpop.permute.xlu0 %1976
      %1978 = vrot.lane.b32.xlu0 %v1462, 127
      %v1979 = vpop.permute.xlu0 %1978
      %1980 = vrot.lane.b32.xlu0 %v1700, 127
      %v1981 = vpop.permute.xlu0 %1980
      %1982 = vrot.lane.b32.xlu0 %v1008, 127
      %v1983 = vpop.permute.xlu0 %1982
      %1984 = vrot.lane.b32.xlu0 %v1223, 127
      %v1985 = vpop.permute.xlu0 %1984
      %1986 = vrot.lane.b32.xlu0 %v1463, 127
      %v1987 = vpop.permute.xlu0 %1986
      %1988 = vrot.lane.b32.xlu0 %v1701, 127
      %v1989 = vpop.permute.xlu0 %1988
      %v1990 = vsel %vm432, %v1975, %v1983
      %v1991 = vsel %vm432, %v1977, %v1985
      %v1992 = vsel %vm432, %v1979, %v1987
      %v1993 = vsel %vm432, %v1981, %v1989
      %v1994 = vsel %vm432, %v1967, %v1975
      %v1995 = vsel %vm432, %v1969, %v1977
      %v1996 = vsel %vm432, %v1971, %v1979
      %v1997 = vsel %vm432, %v1973, %v1981
      %v1998 = vsel %vm432, %v1959, %v1967
      %v1999 = vsel %vm432, %v1961, %v1969
      %v2000 = vsel %vm432, %v1963, %v1971
      %v2001 = vsel %vm432, %v1965, %v1973
      %v2002 = vsel %vm432, %v1983, %v1959
      %v2003 = vsel %vm432, %v1985, %v1961
      %v2004 = vsel %vm432, %v1987, %v1963
      %v2005 = vsel %vm432, %v1989, %v1965
      %v2006 = vsel %vm441, %v1998, 0.0
      %v2007 = vsel %vm442, %v1994, 0.0
      %v2008 = vsel %vm443, %v1990, 0.0
      %v2009 = vsel %vm444, %v2002, 0.0
      %v2010 = vsel %vm441, %v1999, 0.0
      %v2011 = vsel %vm442, %v1995, 0.0
      %v2012 = vsel %vm443, %v1991, 0.0
      %v2013 = vsel %vm444, %v2003, 0.0
      %v2014 = vsel %vm441, %v2000, 0.0
      %v2015 = vsel %vm442, %v1996, 0.0
      %v2016 = vsel %vm443, %v1992, 0.0
      %v2017 = vsel %vm444, %v2004, 0.0
      %v2018 = vsel %vm441, %v2001, 0.0
      %v2019 = vsel %vm442, %v1997, 0.0
      %v2020 = vsel %vm443, %v1993, 0.0
      %v2021 = vsel %vm444, %v2005, 0.0
      %2022 = vrot.lane.b32.xlu0 %v1005, 113
      %v2023 = vpop.permute.xlu0 %2022
      %2024 = vrot.lane.b32.xlu0 %v1220, 113
      %v2025 = vpop.permute.xlu0 %2024
      %2026 = vrot.lane.b32.xlu0 %v1460, 113
      %v2027 = vpop.permute.xlu0 %2026
      %2028 = vrot.lane.b32.xlu0 %v1698, 113
      %v2029 = vpop.permute.xlu0 %2028
      %2030 = vrot.lane.b32.xlu0 %v1006, 113
      %v2031 = vpop.permute.xlu0 %2030
      %2032 = vrot.lane.b32.xlu0 %v1221, 113
      %v2033 = vpop.permute.xlu0 %2032
      %2034 = vrot.lane.b32.xlu0 %v1461, 113
      %v2035 = vpop.permute.xlu0 %2034
      %2036 = vrot.lane.b32.xlu0 %v1699, 113
      %v2037 = vpop.permute.xlu0 %2036
      %2038 = vrot.lane.b32.xlu0 %v1007, 113
      %v2039 = vpop.permute.xlu0 %2038
      %2040 = vrot.lane.b32.xlu0 %v1222, 113
      %v2041 = vpop.permute.xlu0 %2040
      %2042 = vrot.lane.b32.xlu0 %v1462, 113
      %v2043 = vpop.permute.xlu0 %2042
      %2044 = vrot.lane.b32.xlu0 %v1700, 113
      %v2045 = vpop.permute.xlu0 %2044
      %2046 = vrot.lane.b32.xlu0 %v1008, 113
      %v2047 = vpop.permute.xlu0 %2046
      %2048 = vrot.lane.b32.xlu0 %v1223, 113
      %v2049 = vpop.permute.xlu0 %2048
      %2050 = vrot.lane.b32.xlu0 %v1463, 113
      %v2051 = vpop.permute.xlu0 %2050
      %2052 = vrot.lane.b32.xlu0 %v1701, 113
      %v2053 = vpop.permute.xlu0 %2052
      %v2054 = vsel %vm457, %v2039, %v2047
      %v2055 = vsel %vm457, %v2041, %v2049
      %v2056 = vsel %vm457, %v2043, %v2051
      %v2057 = vsel %vm457, %v2045, %v2053
      %v2058 = vsel %vm457, %v2031, %v2039
      %v2059 = vsel %vm457, %v2033, %v2041
      %v2060 = vsel %vm457, %v2035, %v2043
      %v2061 = vsel %vm457, %v2037, %v2045
      %v2062 = vsel %vm457, %v2023, %v2031
      %v2063 = vsel %vm457, %v2025, %v2033
      %v2064 = vsel %vm457, %v2027, %v2035
      %v2065 = vsel %vm457, %v2029, %v2037
      %v2066 = vsel %vm457, %v2047, %v2023
      %v2067 = vsel %vm457, %v2049, %v2025
      %v2068 = vsel %vm457, %v2051, %v2027
      %v2069 = vsel %vm457, %v2053, %v2029
      %v2070 = vsel %vm474, %v2062, 0.0
      %v2071 = vsel %vm475, %v2058, 0.0
      %v2072 = vsel %vm476, %v2054, 0.0
      %v2073 = vsel %vm477, %v2066, 0.0
      %v2074 = vsel %vm474, %v2063, 0.0
      %v2075 = vsel %vm475, %v2059, 0.0
      %v2076 = vsel %vm476, %v2055, 0.0
      %v2077 = vsel %vm477, %v2067, 0.0
      %v2078 = vsel %vm474, %v2064, 0.0
      %v2079 = vsel %vm475, %v2060, 0.0
      %v2080 = vsel %vm476, %v2056, 0.0
      %v2081 = vsel %vm477, %v2068, 0.0
      %v2082 = vsel %vm474, %v2065, 0.0
      %v2083 = vsel %vm475, %v2061, 0.0
      %v2084 = vsel %vm476, %v2057, 0.0
      %v2085 = vsel %vm477, %v2069, 0.0
      %2086 = vrot.lane.b32.xlu0 %v1005, 112
      %v2087 = vpop.permute.xlu0 %2086
      %2088 = vrot.lane.b32.xlu0 %v1220, 112
      %v2089 = vpop.permute.xlu0 %2088
      %2090 = vrot.lane.b32.xlu0 %v1460, 112
      %v2091 = vpop.permute.xlu0 %2090
      %2092 = vrot.lane.b32.xlu0 %v1698, 112
      %v2093 = vpop.permute.xlu0 %2092
      %2094 = vrot.lane.b32.xlu0 %v1006, 112
      %v2095 = vpop.permute.xlu0 %2094
      %2096 = vrot.lane.b32.xlu0 %v1221, 112
      %v2097 = vpop.permute.xlu0 %2096
      %2098 = vrot.lane.b32.xlu0 %v1461, 112
      %v2099 = vpop.permute.xlu0 %2098
      %2100 = vrot.lane.b32.xlu0 %v1699, 112
      %v2101 = vpop.permute.xlu0 %2100
      %2102 = vrot.lane.b32.xlu0 %v1007, 112
      %v2103 = vpop.permute.xlu0 %2102
      %2104 = vrot.lane.b32.xlu0 %v1222, 112
      %v2105 = vpop.permute.xlu0 %2104
      %2106 = vrot.lane.b32.xlu0 %v1462, 112
      %v2107 = vpop.permute.xlu0 %2106
      %2108 = vrot.lane.b32.xlu0 %v1700, 112
      %v2109 = vpop.permute.xlu0 %2108
      %2110 = vrot.lane.b32.xlu0 %v1008, 112
      %v2111 = vpop.permute.xlu0 %2110
      %2112 = vrot.lane.b32.xlu0 %v1223, 112
      %v2113 = vpop.permute.xlu0 %2112
      %2114 = vrot.lane.b32.xlu0 %v1463, 112
      %v2115 = vpop.permute.xlu0 %2114
      %2116 = vrot.lane.b32.xlu0 %v1701, 112
      %v2117 = vpop.permute.xlu0 %2116
      %v2118 = vsel %vm490, %v2103, %v2111
      %v2119 = vsel %vm490, %v2105, %v2113
      %v2120 = vsel %vm490, %v2107, %v2115
      %v2121 = vsel %vm490, %v2109, %v2117
      %v2122 = vsel %vm490, %v2095, %v2103
      %v2123 = vsel %vm490, %v2097, %v2105
      %v2124 = vsel %vm490, %v2099, %v2107
      %v2125 = vsel %vm490, %v2101, %v2109
      %v2126 = vsel %vm490, %v2087, %v2095
      %v2127 = vsel %vm490, %v2089, %v2097
      %v2128 = vsel %vm490, %v2091, %v2099
      %v2129 = vsel %vm490, %v2093, %v2101
      %v2130 = vsel %vm490, %v2111, %v2087
      %v2131 = vsel %vm490, %v2113, %v2089
      %v2132 = vsel %vm490, %v2115, %v2091
      %v2133 = vsel %vm490, %v2117, %v2093
      %v2134 = vsel %vm499, %v2126, 0.0
      %v2135 = vsel %vm500, %v2122, 0.0
      %v2136 = vsel %vm501, %v2118, 0.0
      %v2137 = vsel %vm502, %v2130, 0.0
      %v2138 = vsel %vm499, %v2127, 0.0
      %v2139 = vsel %vm500, %v2123, 0.0
      %v2140 = vsel %vm501, %v2119, 0.0
      %v2141 = vsel %vm502, %v2131, 0.0
      %v2142 = vsel %vm499, %v2128, 0.0
      %v2143 = vsel %vm500, %v2124, 0.0
      %v2144 = vsel %vm501, %v2120, 0.0
      %v2145 = vsel %vm502, %v2132, 0.0
      %v2146 = vsel %vm499, %v2129, 0.0
      %v2147 = vsel %vm500, %v2125, 0.0
      %v2148 = vsel %vm501, %v2121, 0.0
      %v2149 = vsel %vm502, %v2133, 0.0
      %2150 = vrot.lane.b32.xlu0 %v1005, 111
      %v2151 = vpop.permute.xlu0 %2150
      %2152 = vrot.lane.b32.xlu0 %v1220, 111
      %v2153 = vpop.permute.xlu0 %2152
      %2154 = vrot.lane.b32.xlu0 %v1460, 111
      %v2155 = vpop.permute.xlu0 %2154
      %2156 = vrot.lane.b32.xlu0 %v1698, 111
      %v2157 = vpop.permute.xlu0 %2156
      %2158 = vrot.lane.b32.xlu0 %v1006, 111
      %v2159 = vpop.permute.xlu0 %2158
      %2160 = vrot.lane.b32.xlu0 %v1221, 111
      %v2161 = vpop.permute.xlu0 %2160
      %2162 = vrot.lane.b32.xlu0 %v1461, 111
      %v2163 = vpop.permute.xlu0 %2162
      %2164 = vrot.lane.b32.xlu0 %v1699, 111
      %v2165 = vpop.permute.xlu0 %2164
      %2166 = vrot.lane.b32.xlu0 %v1007, 111
      %v2167 = vpop.permute.xlu0 %2166
      %2168 = vrot.lane.b32.xlu0 %v1222, 111
      %v2169 = vpop.permute.xlu0 %2168
      %2170 = vrot.lane.b32.xlu0 %v1462, 111
      %v2171 = vpop.permute.xlu0 %2170
      %2172 = vrot.lane.b32.xlu0 %v1700, 111
      %v2173 = vpop.permute.xlu0 %2172
      %2174 = vrot.lane.b32.xlu0 %v1008, 111
      %v2175 = vpop.permute.xlu0 %2174
      %2176 = vrot.lane.b32.xlu0 %v1223, 111
      %v2177 = vpop.permute.xlu0 %2176
      %2178 = vrot.lane.b32.xlu0 %v1463, 111
      %v2179 = vpop.permute.xlu0 %2178
      %2180 = vrot.lane.b32.xlu0 %v1701, 111
      %v2181 = vpop.permute.xlu0 %2180
      %v2182 = vsel %vm515, %v2167, %v2175
      %v2183 = vsel %vm515, %v2169, %v2177
      %v2184 = vsel %vm515, %v2171, %v2179
      %v2185 = vsel %vm515, %v2173, %v2181
      %v2186 = vsel %vm515, %v2159, %v2167
      %v2187 = vsel %vm515, %v2161, %v2169
      %v2188 = vsel %vm515, %v2163, %v2171
      %v2189 = vsel %vm515, %v2165, %v2173
      %v2190 = vsel %vm515, %v2151, %v2159
      %v2191 = vsel %vm515, %v2153, %v2161
      %v2192 = vsel %vm515, %v2155, %v2163
      %v2193 = vsel %vm515, %v2157, %v2165
      %v2194 = vsel %vm515, %v2175, %v2151
      %v2195 = vsel %vm515, %v2177, %v2153
      %v2196 = vsel %vm515, %v2179, %v2155
      %v2197 = vsel %vm515, %v2181, %v2157
      %v2198 = vsel %vm528, %v2190, 0.0
      %v2199 = vsel %vm529, %v2186, 0.0
      %v2200 = vsel %vm530, %v2182, 0.0
      %v2201 = vsel %vm531, %v2194, 0.0
      %v2202 = vsel %vm528, %v2191, 0.0
      %v2203 = vsel %vm529, %v2187, 0.0
      %v2204 = vsel %vm530, %v2183, 0.0
      %v2205 = vsel %vm531, %v2195, 0.0
      %v2206 = vsel %vm528, %v2192, 0.0
      %v2207 = vsel %vm529, %v2188, 0.0
      %v2208 = vsel %vm530, %v2184, 0.0
      %v2209 = vsel %vm531, %v2196, 0.0
      %v2210 = vsel %vm528, %v2193, 0.0
      %v2211 = vsel %vm529, %v2189, 0.0
      %v2212 = vsel %vm530, %v2185, 0.0
      %v2213 = vsel %vm531, %v2197, 0.0
      %v2214 = vld [vmem:[%s3] sm:$0xff]
      %v2215 = vld [vmem:[%s3 + $0x8] sm:$0xff]
      %v2216 = vld [vmem:[%s3 + $0x10] sm:$0xff]
      %v2217 = vld [vmem:[%s4] sm:$0xff]
      %2219 = vset.pattern.permute.xlu0 0
      %2220 = vperm.xlu0 %2219, %v2217
      %v2221 = vpop.permute.xlu0 %2220
      %vm2223 = vcmask 326656
      %v2225 = vsel %vm2223, %v2216, 0
      %2227 = vmatprep.subr.mxu0 %v1751
      %2228 = vmatpush1.msra.mxu0 %v1750
      %2229 = vmatprep.subr.mxu0 %v1755
      %2230 = vmatpush1.msra.mxu0 %v1754
      %2231 = vmatprep.subr.mxu0 %v1759
      %2232 = vmatpush1.msra.mxu0 %v1758
      %2233 = vmatprep.subr.mxu0 %v1763
      %2234 = vmatpush1.msra.mxu0 %v1762
      %2235 = vmatprep.subr.mxu0 %v1815
      %2236 = vmatpush1.msra.mxu0 %v1814
      %2237 = vmatprep.subr.mxu0 %v1819
      %2238 = vmatpush1.msra.mxu0 %v1818
      %2239 = vmatprep.subr.mxu0 %v1823
      %2240 = vmatpush1.msra.mxu0 %v1822
      %2241 = vmatprep.subr.mxu0 %v1827
      %2242 = vmatpush1.msra.mxu0 %v1826
      %2243 = vmatprep.subr.mxu0 %v1879
      %2244 = vmatpush1.msra.mxu0 %v1878
      %2245 = vmatprep.subr.mxu0 %v1883
      %2246 = vmatpush1.msra.mxu0 %v1882
      %2247 = vmatprep.subr.mxu0 %v1887
      %2248 = vmatpush1.msra.mxu0 %v1886
      %2249 = vmatprep.subr.mxu0 %v1891
      %2250 = vmatpush1.msra.mxu0 %v1890
      %2251 = vmatprep.subr.mxu0 %v1943
      %2252 = vmatpush1.msra.mxu0 %v1942
      %2253 = vmatprep.subr.mxu0 %v1947
      %2254 = vmatpush1.msra.mxu0 %v1946
      %2255 = vmatprep.subr.mxu0 %v1951
      %2256 = vmatpush1.msra.mxu0 %v1950
      %2257 = vmatprep.subr.mxu0 %v1955
      %2258 = vmatpush1.msra.mxu0 %v1954
      %2259 = vmatprep.subr.mxu0 %v1006
      %2260 = vmatpush1.msra.mxu0 %v1005
      %2261 = vmatprep.subr.mxu0 %v1221
      %2262 = vmatpush1.msra.mxu0 %v1220
      %2263 = vmatprep.subr.mxu0 %v1461
      %2264 = vmatpush1.msra.mxu0 %v1460
      %2265 = vmatprep.subr.mxu0 %v1699
      %2266 = vmatpush1.msra.mxu0 %v1698
      %2267 = vmatprep.subr.mxu0 %v2007
      %2268 = vmatpush1.msra.mxu0 %v2006
      %2269 = vmatprep.subr.mxu0 %v2011
      %2270 = vmatpush1.msra.mxu0 %v2010
      %2271 = vmatprep.subr.mxu0 %v2015
      %2272 = vmatpush1.msra.mxu0 %v2014
      %2273 = vmatprep.subr.mxu0 %v2019
      %2274 = vmatpush1.msra.mxu0 %v2018
      %2275 = vmatprep.subr.mxu0 %v2071
      %2276 = vmatpush1.msra.mxu0 %v2070
      %2277 = vmatprep.subr.mxu0 %v2075
      %2278 = vmatpush1.msra.mxu0 %v2074
      %2279 = vmatprep.subr.mxu0 %v2079
      %2280 = vmatpush1.msra.mxu0 %v2078
      %2281 = vmatprep.subr.mxu0 %v2083
      %2282 = vmatpush1.msra.mxu0 %v2082
      %2283 = vmatprep.subr.mxu0 %v2135
      %2284 = vmatpush1.msra.mxu0 %v2134
      %2285 = vmatprep.subr.mxu0 %v2139
      %2286 = vmatpush1.msra.mxu0 %v2138
      %2287 = vmatprep.subr.mxu0 %v2143
      %2288 = vmatpush1.msra.mxu0 %v2142
      %2289 = vmatprep.subr.mxu0 %v2147
      %2290 = vmatpush1.msra.mxu0 %v2146
      %2291 = vmatprep.mubr.f32.mxu0 %v2215
      %2292 = vmatmul.mubr.f32.gmra.mrb[0].mxu0 %v2214
      %v2293 = vpop.f32.mrb[0].mxu0
      %v2294 = vadd.f32 %v2221, %v2293
      %v2295 = vpop.f32.mrb[0].mxu0
      %v2296 = vadd.f32 %v2221, %v2295
      %2297 = vdwg.mxu0
      %2298 = vmatprep.subr.mxu0 %v2199
      %2299 = vmatpush1.msra.mxu0 %v2198
      %2300 = vmatprep.subr.mxu0 %v2203
      %2301 = vmatpush1.msra.mxu0 %v2202
      %2302 = vmatprep.subr.mxu0 %v2207
      %2303 = vmatpush1.msra.mxu0 %v2206
      %2304 = vmatprep.subr.mxu0 %v2211
      %2305 = vmatpush1.msra.mxu0 %v2210
      %2306 = vmatprep.subr.mxu0 %v297
      %2307 = vmatpush1.msra.mxu0 %v296
      %2308 = vmatprep.subr.mxu0 0.0
      %2309 = vmatpush1.msra.mxu0 0.0
      %2310 = vmatprep.subr.mxu0 0.0
      %2311 = vmatpush1.msra.mxu0 0.0
      %2312 = vmatprep.subr.mxu0 0.0
      %2313 = vmatpush1.msra.mxu0 0.0
      %2314 = vmatprep.subr.mxu0 0.0
      %2315 = vmatpush1.msra.mxu0 0.0
      %2316 = vmatprep.subr.mxu0 0.0
      %2317 = vmatpush1.msra.mxu0 0.0
      %2318 = vmatprep.subr.mxu0 0.0
      %2319 = vmatpush1.msra.mxu0 0.0
      %2320 = vmatprep.subr.mxu0 0.0
      %2321 = vmatpush1.msra.mxu0 0.0
      %2322 = vmatprep.subr.mxu0 0.0
      %2323 = vmatpush1.msra.mxu0 0.0
      %2324 = vmatprep.subr.mxu0 0.0
      %2325 = vmatpush1.msra.mxu0 0.0
      %2326 = vmatprep.subr.mxu0 0.0
      %2327 = vmatpush1.msra.mxu0 0.0
      %2328 = vmatprep.subr.mxu0 0.0
      %2329 = vmatpush1.msra.mxu0 0.0
      %2330 = vmatprep.subr.mxu0 0.0
      %2331 = vmatpush1.msra.mxu0 0.0
      %2332 = vmatprep.subr.mxu0 0.0
      %2333 = vmatpush1.msra.mxu0 0.0
      %2334 = vmatprep.subr.mxu0 0.0
      %2335 = vmatpush1.msra.mxu0 0.0
      %2336 = vmatprep.subr.mxu0 0.0
      %2337 = vmatpush1.msra.mxu0 0.0
      %2338 = vmatprep.subr.mxu0 0.0
      %2339 = vmatpush1.msra.mxu0 0.0
      %2340 = vmatprep.subr.mxu0 0.0
      %2341 = vmatpush1.msra.mxu0 0.0
      %2342 = vmatprep.subr.mxu0 0.0
      %2343 = vmatpush1.msra.mxu0 0.0
      %2344 = vmatprep.subr.mxu0 0.0
      %2345 = vmatpush1.msra.mxu0 0.0
      %2346 = vmatprep.subr.mxu0 0.0
      %2347 = vmatpush1.msra.mxu0 0.0
      %2348 = vmatprep.subr.mxu0 0.0
      %2349 = vmatpush1.msra.mxu0 0.0
      %2350 = vmatprep.subr.mxu0 0.0
      %2351 = vmatpush1.msra.mxu0 0.0
      %2352 = vmatprep.subr.mxu0 0.0
      %2353 = vmatpush1.msra.mxu0 0.0
      %2354 = vmatprep.subr.mxu0 0.0
      %2355 = vmatpush1.msra.mxu0 0.0
      %2356 = vmatprep.subr.mxu0 0.0
      %2357 = vmatpush1.msra.mxu0 0.0
      %2358 = vmatprep.subr.mxu0 0.0
      %2359 = vmatpush1.msra.mxu0 0.0
      %2360 = vmatprep.subr.mxu0 0.0
      %2361 = vmatpush1.msra.mxu0 0.0
      %2362 = vmatprep.mubr.f32.mxu0 0.0
      %2363 = vmatmul.mubr.f32.gmra.mrb[0].mxu0 %v2225
      %v2364 = vpop.f32.mrb[0].mxu0
      %v2365 = vadd.f32 %v2294, %v2364
      %v2366 = vpop.f32.mrb[0].mxu0
      %v2367 = vadd.f32 %v2296, %v2366
      %2368 = vdwg.mxu0
      %2369 = vmatprep.subr.mxu0 %v1753
      %2370 = vmatpush1.msra.mxu0 %v1752
      %2371 = vmatprep.subr.mxu0 %v1757
      %2372 = vmatpush1.msra.mxu0 %v1756
      %2373 = vmatprep.subr.mxu0 %v1761
      %2374 = vmatpush1.msra.mxu0 %v1760
      %2375 = vmatprep.subr.mxu0 %v1765
      %2376 = vmatpush1.msra.mxu0 %v1764
      %2377 = vmatprep.subr.mxu0 %v1817
      %2378 = vmatpush1.msra.mxu0 %v1816
      %2379 = vmatprep.subr.mxu0 %v1821
      %2380 = vmatpush1.msra.mxu0 %v1820
      %2381 = vmatprep.subr.mxu0 %v1825
      %2382 = vmatpush1.msra.mxu0 %v1824
      %2383 = vmatprep.subr.mxu0 %v1829
      %2384 = vmatpush1.msra.mxu0 %v1828
      %2385 = vmatprep.subr.mxu0 %v1881
      %2386 = vmatpush1.msra.mxu0 %v1880
      %2387 = vmatprep.subr.mxu0 %v1885
      %2388 = vmatpush1.msra.mxu0 %v1884
      %2389 = vmatprep.subr.mxu0 %v1889
      %2390 = vmatpush1.msra.mxu0 %v1888
      %2391 = vmatprep.subr.mxu0 %v1893
      %2392 = vmatpush1.msra.mxu0 %v1892
      %2393 = vmatprep.subr.mxu0 %v1945
      %2394 = vmatpush1.msra.mxu0 %v1944
      %2395 = vmatprep.subr.mxu0 %v1949
      %2396 = vmatpush1.msra.mxu0 %v1948
      %2397 = vmatprep.subr.mxu0 %v1953
      %2398 = vmatpush1.msra.mxu0 %v1952
      %2399 = vmatprep.subr.mxu0 %v1957
      %2400 = vmatpush1.msra.mxu0 %v1956
      %2401 = vmatprep.subr.mxu0 %v1008
      %2402 = vmatpush1.msra.mxu0 %v1007
      %2403 = vmatprep.subr.mxu0 %v1223
      %2404 = vmatpush1.msra.mxu0 %v1222
      %2405 = vmatprep.subr.mxu0 %v1463
      %2406 = vmatpush1.msra.mxu0 %v1462
      %2407 = vmatprep.subr.mxu0 %v1701
      %2408 = vmatpush1.msra.mxu0 %v1700
      %2409 = vmatprep.subr.mxu0 %v2009
      %2410 = vmatpush1.msra.mxu0 %v2008
      %2411 = vmatprep.subr.mxu0 %v2013
      %2412 = vmatpush1.msra.mxu0 %v2012
      %2413 = vmatprep.subr.mxu0 %v2017
      %2414 = vmatpush1.msra.mxu0 %v2016
      %2415 = vmatprep.subr.mxu0 %v2021
      %2416 = vmatpush1.msra.mxu0 %v2020
      %2417 = vmatprep.subr.mxu0 %v2073
      %2418 = vmatpush1.msra.mxu0 %v2072
      %2419 = vmatprep.subr.mxu0 %v2077
      %2420 = vmatpush1.msra.mxu0 %v2076
      %2421 = vmatprep.subr.mxu0 %v2081
      %2422 = vmatpush1.msra.mxu0 %v2080
      %2423 = vmatprep.subr.mxu0 %v2085
      %2424 = vmatpush1.msra.mxu0 %v2084
      %2425 = vmatprep.subr.mxu0 %v2137
      %2426 = vmatpush1.msra.mxu0 %v2136
      %2427 = vmatprep.subr.mxu0 %v2141
      %2428 = vmatpush1.msra.mxu0 %v2140
      %2429 = vmatprep.subr.mxu0 %v2145
      %2430 = vmatpush1.msra.mxu0 %v2144
      %2431 = vmatprep.subr.mxu0 %v2149
      %2432 = vmatpush1.msra.mxu0 %v2148
      %2433 = vmatprep.mubr.f32.mxu0 %v2215
      %2434 = vmatmul.mubr.f32.gmra.mrb[0].mxu0 %v2214
      %v2435 = vpop.f32.mrb[0].mxu0
      %v2436 = vadd.f32 %v2221, %v2435
      %v2437 = vpop.f32.mrb[0].mxu0
      %v2438 = vadd.f32 %v2221, %v2437
      %2439 = vdwg.mxu0
      %2440 = vmatprep.subr.mxu0 %v2201
      %2441 = vmatpush1.msra.mxu0 %v2200
      %2442 = vmatprep.subr.mxu0 %v2205
      %2443 = vmatpush1.msra.mxu0 %v2204
      %2444 = vmatprep.subr.mxu0 %v2209
      %2445 = vmatpush1.msra.mxu0 %v2208
      %2446 = vmatprep.subr.mxu0 %v2213
      %2447 = vmatpush1.msra.mxu0 %v2212
      %2448 = vmatprep.subr.mxu0 %v299
      %2449 = vmatpush1.msra.mxu0 %v298
      %2450 = vmatprep.subr.mxu0 0.0
      %2451 = vmatpush1.msra.mxu0 0.0
      %2452 = vmatprep.subr.mxu0 0.0
      %2453 = vmatpush1.msra.mxu0 0.0
      %2454 = vmatprep.subr.mxu0 0.0
      %2455 = vmatpush1.msra.mxu0 0.0
      %2456 = vmatprep.subr.mxu0 0.0
      %2457 = vmatpush1.msra.mxu0 0.0
      %2458 = vmatprep.subr.mxu0 0.0
      %2459 = vmatpush1.msra.mxu0 0.0
      %2460 = vmatprep.subr.mxu0 0.0
      %2461 = vmatpush1.msra.mxu0 0.0
      %2462 = vmatprep.subr.mxu0 0.0
      %2463 = vmatpush1.msra.mxu0 0.0
      %2464 = vmatprep.subr.mxu0 0.0
      %2465 = vmatpush1.msra.mxu0 0.0
      %2466 = vmatprep.subr.mxu0 0.0
      %2467 = vmatpush1.msra.mxu0 0.0
      %2468 = vmatprep.subr.mxu0 0.0
      %2469 = vmatpush1.msra.mxu0 0.0
      %2470 = vmatprep.subr.mxu0 0.0
      %2471 = vmatpush1.msra.mxu0 0.0
      %2472 = vmatprep.subr.mxu0 0.0
      %2473 = vmatpush1.msra.mxu0 0.0
      %2474 = vmatprep.subr.mxu0 0.0
      %2475 = vmatpush1.msra.mxu0 0.0
      %2476 = vmatprep.subr.mxu0 0.0
      %2477 = vmatpush1.msra.mxu0 0.0
      %2478 = vmatprep.subr.mxu0 0.0
      %2479 = vmatpush1.msra.mxu0 0.0
      %2480 = vmatprep.subr.mxu0 0.0
      %2481 = vmatpush1.msra.mxu0 0.0
      %2482 = vmatprep.subr.mxu0 0.0
      %2483 = vmatpush1.msra.mxu0 0.0
      %2484 = vmatprep.subr.mxu0 0.0
      %2485 = vmatpush1.msra.mxu0 0.0
      %2486 = vmatprep.subr.mxu0 0.0
      %2487 = vmatpush1.msra.mxu0 0.0
      %2488 = vmatprep.subr.mxu0 0.0
      %2489 = vmatpush1.msra.mxu0 0.0
      %2490 = vmatprep.subr.mxu0 0.0
      %2491 = vmatpush1.msra.mxu0 0.0
      %2492 = vmatprep.subr.mxu0 0.0
      %2493 = vmatpush1.msra.mxu0 0.0
      %2494 = vmatprep.subr.mxu0 0.0
      %2495 = vmatpush1.msra.mxu0 0.0
      %2496 = vmatprep.subr.mxu0 0.0
      %2497 = vmatpush1.msra.mxu0 0.0
      %2498 = vmatprep.subr.mxu0 0.0
      %2499 = vmatpush1.msra.mxu0 0.0
      %2500 = vmatprep.subr.mxu0 0.0
      %2501 = vmatpush1.msra.mxu0 0.0
      %2502 = vmatprep.subr.mxu0 0.0
      %2503 = vmatpush1.msra.mxu0 0.0
      %2504 = vmatprep.mubr.f32.mxu0 0.0
      %2505 = vmatmul.mubr.f32.gmra.mrb[0].mxu0 %v2225
      %v2506 = vpop.f32.mrb[0].mxu0
      %v2507 = vadd.f32 %v2436, %v2506
      %v2508 = vpop.f32.mrb[0].mxu0
      %v2509 = vadd.f32 %v2438, %v2508
      %2510 = vdwg.mxu0
      %v2511 = vmax.f32 %v2365, 0.0
      %v2512 = vmax.f32 %v2367, 0.0
      %v2513 = vmax.f32 %v2507, 0.0
      %v2514 = vmax.f32 %v2509, 0.0
      %v2515 = vld [vmem:[%s5] sm:$0xff]
      %2516 = vrot.lane.b32.xlu0 %v2511, 17
      %v2517 = vpop.permute.xlu0 %2516
      %2518 = vrot.lane.b32.xlu0 %v2512, 17
      %v2519 = vpop.permute.xlu0 %2518
      %2520 = vrot.lane.b32.xlu0 %v2513, 17
      %v2521 = vpop.permute.xlu0 %2520
      %2522 = vrot.lane.b32.xlu0 %v2514, 17
      %v2523 = vpop.permute.xlu0 %2522
      %v2524 = vsel %vm312, %v2521, %v2523
      %v2525 = vsel %vm312, %v2519, %v2521
      %v2526 = vsel %vm312, %v2517, %v2519
      %v2527 = vsel %vm312, %v2523, %v2517
      %v2528 = vsel %vm333, %v2527, 0.0
      %v2529 = vsel %vm334, %v2526, 0.0
      %v2530 = vsel %vm335, %v2525, 0.0
      %v2531 = vsel %vm336, %v2524, 0.0
      %2532 = vrot.lane.b32.xlu0 %v2511, 16
      %v2533 = vpop.permute.xlu0 %2532
      %2534 = vrot.lane.b32.xlu0 %v2512, 16
      %v2535 = vpop.permute.xlu0 %2534
      %2536 = vrot.lane.b32.xlu0 %v2513, 16
      %v2537 = vpop.permute.xlu0 %2536
      %2538 = vrot.lane.b32.xlu0 %v2514, 16
      %v2539 = vpop.permute.xlu0 %2538
      %v2540 = vsel %vm349, %v2537, %v2539
      %v2541 = vsel %vm349, %v2535, %v2537
      %v2542 = vsel %vm349, %v2533, %v2535
      %v2543 = vsel %vm349, %v2539, %v2533
      %v2544 = vsel %vm358, %v2543, 0.0
      %v2545 = vsel %vm359, %v2542, 0.0
      %v2546 = vsel %vm360, %v2541, 0.0
      %v2547 = vsel %vm361, %v2540, 0.0
      %2548 = vrot.lane.b32.xlu0 %v2511, 15
      %v2549 = vpop.permute.xlu0 %2548
      %2550 = vrot.lane.b32.xlu0 %v2512, 15
      %v2551 = vpop.permute.xlu0 %2550
      %2552 = vrot.lane.b32.xlu0 %v2513, 15
      %v2553 = vpop.permute.xlu0 %2552
      %2554 = vrot.lane.b32.xlu0 %v2514, 15
      %v2555 = vpop.permute.xlu0 %2554
      %v2556 = vsel %vm374, %v2553, %v2555
      %v2557 = vsel %vm374, %v2551, %v2553
      %v2558 = vsel %vm374, %v2549, %v2551
      %v2559 = vsel %vm374, %v2555, %v2549
      %v2560 = vsel %vm391, %v2559, 0.0
      %v2561 = vsel %vm392, %v2558, 0.0
      %v2562 = vsel %vm393, %v2557, 0.0
      %v2563 = vsel %vm394, %v2556, 0.0
      %2564 = vrot.lane.b32.xlu0 %v2511, 1
      %v2565 = vpop.permute.xlu0 %2564
      %2566 = vrot.lane.b32.xlu0 %v2512, 1
      %v2567 = vpop.permute.xlu0 %2566
      %2568 = vrot.lane.b32.xlu0 %v2513, 1
      %v2569 = vpop.permute.xlu0 %2568
      %2570 = vrot.lane.b32.xlu0 %v2514, 1
      %v2571 = vpop.permute.xlu0 %2570
      %v2572 = vsel %vm407, %v2569, %v2571
      %v2573 = vsel %vm407, %v2567, %v2569
      %v2574 = vsel %vm407, %v2565, %v2567
      %v2575 = vsel %vm407, %v2571, %v2565
      %v2576 = vsel %vm416, %v2575, 0.0
      %v2577 = vsel %vm417, %v2574, 0.0
      %v2578 = vsel %vm418, %v2573, 0.0
      %v2579 = vsel %vm419, %v2572, 0.0
      %2580 = vrot.lane.b32.xlu0 %v2511, 127
      %v2581 = vpop.permute.xlu0 %2580
      %2582 = vrot.lane.b32.xlu0 %v2512, 127
      %v2583 = vpop.permute.xlu0 %2582
      %2584 = vrot.lane.b32.xlu0 %v2513, 127
      %v2585 = vpop.permute.xlu0 %2584
      %2586 = vrot.lane.b32.xlu0 %v2514, 127
      %v2587 = vpop.permute.xlu0 %2586
      %v2588 = vsel %vm432, %v2585, %v2587
      %v2589 = vsel %vm432, %v2583, %v2585
      %v2590 = vsel %vm432, %v2581, %v2583
      %v2591 = vsel %vm432, %v2587, %v2581
      %v2592 = vsel %vm441, %v2590, 0.0
      %v2593 = vsel %vm442, %v2589, 0.0
      %v2594 = vsel %vm443, %v2588, 0.0
      %v2595 = vsel %vm444, %v2591, 0.0
      %2596 = vrot.lane.b32.xlu0 %v2511, 113
      %v2597 = vpop.permute.xlu0 %2596
      %2598 = vrot.lane.b32.xlu0 %v2512, 113
      %v2599 = vpop.permute.xlu0 %2598
      %2600 = vrot.lane.b32.xlu0 %v2513, 113
      %v2601 = vpop.permute.xlu0 %2600
      %2602 = vrot.lane.b32.xlu0 %v2514, 113
      %v2603 = vpop.permute.xlu0 %2602
      %v2604 = vsel %vm457, %v2601, %v2603
      %v2605 = vsel %vm457, %v2599, %v2601
      %v2606 = vsel %vm457, %v2597, %v2599
      %v2607 = vsel %vm457, %v2603, %v2597
      %v2608 = vsel %vm474, %v2606, 0.0
      %v2609 = vsel %vm475, %v2605, 0.0
      %v2610 = vsel %vm476, %v2604, 0.0
      %v2611 = vsel %vm477, %v2607, 0.0
      %2612 = vrot.lane.b32.xlu0 %v2511, 112
      %v2613 = vpop.permute.xlu0 %2612
      %2614 = vrot.lane.b32.xlu0 %v2512, 112
      %v2615 = vpop.permute.xlu0 %2614
      %2616 = vrot.lane.b32.xlu0 %v2513, 112
      %v2617 = vpop.permute.xlu0 %2616
      %2618 = vrot.lane.b32.xlu0 %v2514, 112
      %v2619 = vpop.permute.xlu0 %2618
      %v2620 = vsel %vm490, %v2617, %v2619
      %v2621 = vsel %vm490, %v2615, %v2617
      %v2622 = vsel %vm490, %v2613, %v2615
      %v2623 = vsel %vm490, %v2619, %v2613
      %v2624 = vsel %vm499, %v2622, 0.0
      %v2625 = vsel %vm500, %v2621, 0.0
      %v2626 = vsel %vm501, %v2620, 0.0
      %v2627 = vsel %vm502, %v2623, 0.0
      %2628 = vrot.lane.b32.xlu0 %v2511, 111
      %v2629 = vpop.permute.xlu0 %2628
      %2630 = vrot.lane.b32.xlu0 %v2512, 111
      %v2631 = vpop.permute.xlu0 %2630
      %2632 = vrot.lane.b32.xlu0 %v2513, 111
      %v2633 = vpop.permute.xlu0 %2632
      %2634 = vrot.lane.b32.xlu0 %v2514, 111
      %v2635 = vpop.permute.xlu0 %2634
      %v2636 = vsel %vm515, %v2633, %v2635
      %v2637 = vsel %vm515, %v2631, %v2633
      %v2638 = vsel %vm515, %v2629, %v2631
      %v2639 = vsel %vm515, %v2635, %v2629
      %v2640 = vsel %vm528, %v2638, 0.0
      %v2641 = vsel %vm529, %v2637, 0.0
      %v2642 = vsel %vm530, %v2636, 0.0
      %v2643 = vsel %vm531, %v2639, 0.0
      %v2644 = vld [vmem:[%s6] sm:$0xff]
      %2646 = vset.pattern.permute.xlu0 0
      %2647 = vperm.xlu0 %2646, %v2644
      %v2648 = vpop.permute.xlu0 %2647
      %v2651 = vsel %vm560, %v2515, 0
      %2653 = vmatprep.subr.mxu0 %v2529
      %2654 = vmatpush1.msra.mxu0 %v2528
      %2655 = vmatprep.subr.mxu0 %v2545
      %2656 = vmatpush1.msra.mxu0 %v2544
      %2657 = vmatprep.subr.mxu0 %v2561
      %2658 = vmatpush1.msra.mxu0 %v2560
      %2659 = vmatprep.subr.mxu0 %v2577
      %2660 = vmatpush1.msra.mxu0 %v2576
      %2661 = vmatprep.subr.mxu0 %v2512
      %2662 = vmatpush1.msra.mxu0 %v2511
      %2663 = vmatprep.subr.mxu0 %v2593
      %2664 = vmatpush1.msra.mxu0 %v2592
      %2665 = vmatprep.subr.mxu0 %v2609
      %2666 = vmatpush1.msra.mxu0 %v2608
      %2667 = vmatprep.subr.mxu0 %v2625
      %2668 = vmatpush1.msra.mxu0 %v2624
      %2669 = vmatprep.subr.mxu0 %v2641
      %2670 = vmatpush1.msra.mxu0 %v2640
      %2671 = vmatprep.subr.mxu0 0.0
      %2672 = vmatpush1.msra.mxu0 0.0
      %2673 = vmatprep.subr.mxu0 0.0
      %2674 = vmatpush1.msra.mxu0 0.0
      %2675 = vmatprep.subr.mxu0 0.0
      %2676 = vmatpush1.msra.mxu0 0.0
      %2677 = vmatprep.subr.mxu0 0.0
      %2678 = vmatpush1.msra.mxu0 0.0
      %2679 = vmatprep.subr.mxu0 0.0
      %2680 = vmatpush1.msra.mxu0 0.0
      %2681 = vmatprep.subr.mxu0 0.0
      %2682 = vmatpush1.msra.mxu0 0.0
      %2683 = vmatprep.subr.mxu0 0.0
      %2684 = vmatpush1.msra.mxu0 0.0
      %2685 = vmatprep.subr.mxu0 0.0
      %2686 = vmatpush1.msra.mxu0 0.0
      %2687 = vmatprep.subr.mxu0 0.0
      %2688 = vmatpush1.msra.mxu0 0.0
      %2689 = vmatprep.subr.mxu0 0.0
      %2690 = vmatpush1.msra.mxu0 0.0
      %2691 = vmatprep.subr.mxu0 0.0
      %2692 = vmatpush1.msra.mxu0 0.0
      %2693 = vmatprep.subr.mxu0 0.0
      %2694 = vmatpush1.msra.mxu0 0.0
      %2695 = vmatprep.subr.mxu0 0.0
      %2696 = vmatpush1.msra.mxu0 0.0
      %2697 = vmatprep.subr.mxu0 0.0
      %2698 = vmatpush1.msra.mxu0 0.0
      %2699 = vmatprep.subr.mxu0 0.0
      %2700 = vmatpush1.msra.mxu0 0.0
      %2701 = vmatprep.subr.mxu0 0.0
      %2702 = vmatpush1.msra.mxu0 0.0
      %2703 = vmatprep.subr.mxu0 0.0
      %2704 = vmatpush1.msra.mxu0 0.0
      %2705 = vmatprep.subr.mxu0 0.0
      %2706 = vmatpush1.msra.mxu0 0.0
      %2707 = vmatprep.subr.mxu0 0.0
      %2708 = vmatpush1.msra.mxu0 0.0
      %2709 = vmatprep.subr.mxu0 0.0
      %2710 = vmatpush1.msra.mxu0 0.0
      %2711 = vmatprep.subr.mxu0 0.0
      %2712 = vmatpush1.msra.mxu0 0.0
      %2713 = vmatprep.subr.mxu0 0.0
      %2714 = vmatpush1.msra.mxu0 0.0
      %2715 = vmatprep.subr.mxu0 0.0
      %2716 = vmatpush1.msra.mxu0 0.0
      %2717 = vmatprep.mubr.f32.mxu0 0.0
      %2718 = vmatmul.mubr.f32.gmra.mrb[0].mxu0 %v2651
      %v2719 = vpop.f32.mrb[0].mxu0
      %v2720 = vadd.f32 %v2648, %v2719
      %v2721 = vpop.f32.mrb[0].mxu0
      %v2722 = vadd.f32 %v2648, %v2721
      %2723 = vdwg.mxu0
      %2724 = vmatprep.subr.mxu0 %v2531
      %2725 = vmatpush1.msra.mxu0 %v2530
      %2726 = vmatprep.subr.mxu0 %v2547
      %2727 = vmatpush1.msra.mxu0 %v2546
      %2728 = vmatprep.subr.mxu0 %v2563
      %2729 = vmatpush1.msra.mxu0 %v2562
      %2730 = vmatprep.subr.mxu0 %v2579
      %2731 = vmatpush1.msra.mxu0 %v2578
      %2732 = vmatprep.subr.mxu0 %v2514
      %2733 = vmatpush1.msra.mxu0 %v2513
      %2734 = vmatprep.subr.mxu0 %v2595
      %2735 = vmatpush1.msra.mxu0 %v2594
      %2736 = vmatprep.subr.mxu0 %v2611
      %2737 = vmatpush1.msra.mxu0 %v2610
      %2738 = vmatprep.subr.mxu0 %v2627
      %2739 = vmatpush1.msra.mxu0 %v2626
      %2740 = vmatprep.subr.mxu0 %v2643
      %2741 = vmatpush1.msra.mxu0 %v2642
      %2742 = vmatprep.subr.mxu0 0.0
      %2743 = vmatpush1.msra.mxu0 0.0
      %2744 = vmatprep.subr.mxu0 0.0
      %2745 = vmatpush1.msra.mxu0 0.0
      %2746 = vmatprep.subr.mxu0 0.0
      %2747 = vmatpush1.msra.mxu0 0.0
      %2748 = vmatprep.subr.mxu0 0.0
      %2749 = vmatpush1.msra.mxu0 0.0
      %2750 = vmatprep.subr.mxu0 0.0
      %2751 = vmatpush1.msra.mxu0 0.0
      %2752 = vmatprep.subr.mxu0 0.0
      %2753 = vmatpush1.msra.mxu0 0.0
      %2754 = vmatprep.subr.mxu0 0.0
      %2755 = vmatpush1.msra.mxu0 0.0
      %2756 = vmatprep.subr.mxu0 0.0
      %2757 = vmatpush1.msra.mxu0 0.0
      %2758 = vmatprep.subr.mxu0 0.0
      %2759 = vmatpush1.msra.mxu0 0.0
      %2760 = vmatprep.subr.mxu0 0.0
      %2761 = vmatpush1.msra.mxu0 0.0
      %2762 = vmatprep.subr.mxu0 0.0
      %2763 = vmatpush1.msra.mxu0 0.0
      %2764 = vmatprep.subr.mxu0 0.0
      %2765 = vmatpush1.msra.mxu0 0.0
      %2766 = vmatprep.subr.mxu0 0.0
      %2767 = vmatpush1.msra.mxu0 0.0
      %2768 = vmatprep.subr.mxu0 0.0
      %2769 = vmatpush1.msra.mxu0 0.0
      %2770 = vmatprep.subr.mxu0 0.0
      %2771 = vmatpush1.msra.mxu0 0.0
      %2772 = vmatprep.subr.mxu0 0.0
      %2773 = vmatpush1.msra.mxu0 0.0
      %2774 = vmatprep.subr.mxu0 0.0
      %2775 = vmatpush1.msra.mxu0 0.0
      %2776 = vmatprep.subr.mxu0 0.0
      %2777 = vmatpush1.msra.mxu0 0.0
      %2778 = vmatprep.subr.mxu0 0.0
      %2779 = vmatpush1.msra.mxu0 0.0
      %2780 = vmatprep.subr.mxu0 0.0
      %2781 = vmatpush1.msra.mxu0 0.0
      %2782 = vmatprep.subr.mxu0 0.0
      %2783 = vmatpush1.msra.mxu0 0.0
      %2784 = vmatprep.subr.mxu0 0.0
      %2785 = vmatpush1.msra.mxu0 0.0
      %2786 = vmatprep.subr.mxu0 0.0
      %2787 = vmatpush1.msra.mxu0 0.0
      %2788 = vmatprep.mubr.f32.mxu0 0.0
      %2789 = vmatmul.mubr.f32.gmra.mrb[0].mxu0 %v2651
      %v2790 = vpop.f32.mrb[0].mxu0
      %v2791 = vadd.f32 %v2648, %v2790
      %v2792 = vpop.f32.mrb[0].mxu0
      %v2793 = vadd.f32 %v2648, %v2792
      %2794 = vdwg.mxu0
      %v2795 = vmax.f32 %v2720, 0.0
      %v2796 = vmax.f32 %v2722, 0.0
      %v2797 = vmax.f32 %v2791, 0.0
      %v2798 = vmax.f32 %v2793, 0.0
      %2799 = vst [vmem:[%s278] sm:$0xff] %v2795
      %2800 = vst [vmem:[%s278 + $0x8] sm:$0xff] %v2796
      %2801 = vst [vmem:[%s278 + $0x10] sm:$0xff] %v2797
      %2802 = vst [vmem:[%s278 + $0x18] sm:$0xff] %v2798
      %p2803 = scmp.lt.s32.totalorder %s18, 1
      %s2804 = scalar_select %p2803, %s18, 1
      %s2805 = smul.addr %s2804, 4
      %s2806 = smul.addr %s2805, 8
      %s2807 = scalar_lea.vmem %s7, %s2806
      // Predicated region
      $region49: #{landmark_p4x_forward.1} parent=47 // pred_check
        %p2808 = pneg %p188
      $region50: #{landmark_p4x_forward.1} parent=47 // pred_check_branch
        %2810 = sbr.rel (%p2808) target = $region52
      $region51: #{landmark_p4x_forward.1} parent=47 // pred_region
        _
      $region52: #{landmark_p4x_forward.1} parent=47 // pred_fallthru
        _
    $region48: #{landmark_p4x_forward.1} parent=5 // pred_fallthru
      _
    %p2811 = scmp.le.s32.totalorder 2, %s13
    // Predicated region
    $region53: #{landmark_p4x_forward.1} parent=5 // pred_check
      %p2812 = pneg %p2811
    $region54: #{landmark_p4x_forward.1} parent=5 // pred_check_branch
      %2814 = sbr.rel (%p2812) target = $region56
    $region55: #{landmark_p4x_forward.1} parent=5 // pred_region
      %s2815 = ssub.s32 %s13, 2
      // Predicated region
      $region57: #{landmark_p4x_forward.1} parent=55 // pred_check
        %p2816 = pneg %p194
      $region58: #{landmark_p4x_forward.1} parent=55 // pred_check_branch
        %2818 = sbr.rel (%p2816) target = $region60
      $region59: #{landmark_p4x_forward.1} parent=55 // pred_region
        %p2819 = scmp.lt.s32.totalorder %s19, 1
        %s2820 = scalar_select %p2819, %s19, 1
        %s2821 = smul.addr %s2820, 4
        %s2822 = smul.addr %s2821, 8
        %s2823 = scalar_lea.vmem %s7, %s2822
      $region60: #{landmark_p4x_forward.1} parent=55 // pred_fallthru
        _
    $region56: #{landmark_p4x_forward.1} parent=5 // pred_fallthru
      _
  $region6: #{landmark_p4x_forward.1} parent=0 // loop_footer
    %s17 = sadd.s32 1, %s13
  $region7: #{landmark_p4x_forward.1} parent=0 // loop_footer_branch
    %12 = sbr.rel target = $region3
  $region8: #{landmark_p4x_forward.1} parent=0 // loop_exit
    _

</llo_original>
